<compile_context>
chip_gen: v5e
topology: v5e:2x2
jax: 0.10.0
libtpu: 0.0.40
codegen_flags: <defaults>
</compile_context>

<pallas_src>
import functools

import jax
import jax.numpy as jnp
import numpy as np
from jax.experimental import pallas as pl
from jax.experimental.pallas import tpu as pltpu

EPS = 1e-5
LANE = 128                       # channel dims are padded to the TPU lane width
_VMEM_LIMIT = 48 * 1024 * 1024   # scoped-VMEM budget; safe on v5e/v6e and v7x (64 MiB phys)
_TARGET_BLOCK_BYTES = 2 << 20    # ~2 MiB activation block per grid step


# ----------------------------- small helpers -------------------------------


def _round_up(v, m):
    return (v + m - 1) // m * m


def _pick_batch_tile(n, bytes_per_image, target=_TARGET_BLOCK_BYTES):
    """Largest divisor of n whose per-step block fits `target` bytes, while
    keeping >= 2 grid steps when n >= 2 (so both v7x TensorCores get work)."""
    best = 1
    for d in range(1, n + 1):
        if n % d:
            continue
        if d * bytes_per_image > target:
            continue
        if n >= 2 and n // d < 2:
            continue
        best = d
    return best


# ----------------------------- kernel helpers ------------------------------


def _pad_hw1(x):
    """Zero-pad a (B, H, W, C) tile by 1 pixel on each spatial side."""
    B, H, W, C = x.shape
    zw = jnp.zeros((B, H, 1, C), x.dtype)
    x = jnp.concatenate([zw, x, zw], axis=2)           # (B, H, W+2, C)
    zh = jnp.zeros((B, 1, W + 2, C), x.dtype)
    return jnp.concatenate([zh, x, zh], axis=1)        # (B, H+2, W+2, C)


def _conv3x3_taps(x, w_ref):
    """3x3 same-conv of a (B, H, W, Cp) tile already in the MXU compute dtype.

    Nine accumulated (B*H*W, Cp) @ (Cp, Cp) MXU matmuls with f32 accumulation.
    Because Cp is a multiple of 128 the tap extraction is sublane/major-dim
    shifts only — no lane-axis shuffles anywhere.
    """
    B, H, W, C = x.shape
    xp = _pad_hw1(x)                                   # fused 1-pixel zero pad
    acc = None
    t = 0
    for dy in range(3):
        for dx in range(3):
            tap = xp[:, dy:dy + H, dx:dx + W, :].reshape(B * H * W, C)
            d = jnp.dot(tap, w_ref[t], preferred_element_type=jnp.float32)
            acc = d if acc is None else acc + d
            t += 1
    return acc                                         # (B*H*W, Cout_p) f32


def _channel_stats(y):
    """Per-channel [sum; sum-of-squares] of an (M, C) f32 tile -> (2, C)."""
    s = jnp.sum(y, axis=0, keepdims=True)
    ss = jnp.sum(y * y, axis=0, keepdims=True)
    return jnp.concatenate([s, ss], axis=0)


# -------------------------------- kernels ----------------------------------


def _conv_stats_kernel(x_ref, w_ref, y_ref, st_ref):
    # x_ref: (B_T, H, W, Cp) f32   w_ref: (9, Cp, Cp) compute dtype
    # y_ref: (B_T, H, W, Cp) compute dtype   st_ref: (1, 2, Cp) f32
    B, H, W, _ = x_ref.shape
    acc = _conv3x3_taps(x_ref[...].astype(w_ref.dtype), w_ref)
    y_ref[...] = acc.reshape(B, H, W, -1).astype(y_ref.dtype)
    st_ref[0] = _channel_stats(acc)


def _bn_relu_conv_stats_kernel(y1_ref, scale_ref, shift_ref, w_ref, y_ref, st_ref):
    # y1_ref: (B_T, H, W, Cp) compute dtype   scale/shift: (1, Cp) f32
    B, H, W, C = y1_ref.shape
    scale = scale_ref[...].reshape(1, 1, 1, C)
    shift = shift_ref[...].reshape(1, 1, 1, C)
    # bn1 (global batch stats folded into scale/shift) + relu, in f32.
    h = jnp.maximum(y1_ref[...].astype(jnp.float32) * scale + shift, 0.0)
    acc = _conv3x3_taps(h.astype(w_ref.dtype), w_ref)
    y_ref[...] = acc.reshape(B, H, W, -1).astype(y_ref.dtype)
    st_ref[0] = _channel_stats(acc)


def _bn_add_relu_kernel(y2_ref, sc_ref, scale_ref, shift_ref, o_ref):
    # y2_ref: (B_T, H, W, Cp) compute dtype   sc_ref / o_ref: (B_T, H, W, Cp) f32
    C = o_ref.shape[-1]
    scale = scale_ref[...].reshape(1, 1, 1, C)
    shift = shift_ref[...].reshape(1, 1, 1, C)
    h = y2_ref[...].astype(jnp.float32) * scale + shift
    o_ref[...] = jnp.maximum(h + sc_ref[...].astype(jnp.float32), 0.0).astype(o_ref.dtype)


# -------------------------------- wrapper -----------------------------------


def _scale_shift(partial_stats, gamma_p, beta_p, count):
    """Combine per-tile [sum, sum_sq] partials into folded BN scale/shift (f32)."""
    s = jnp.sum(partial_stats, axis=0)                 # (2, Cp)
    mean = s[0] / count
    var = jnp.maximum(s[1] / count - mean * mean, 0.0) # biased (training-mode) var
    scale = gamma_p * jax.lax.rsqrt(var + EPS)
    shift = beta_p - mean * scale
    cp = scale.shape[0]
    return (scale.reshape(1, cp).astype(jnp.float32),
            shift.reshape(1, cp).astype(jnp.float32))


@functools.partial(jax.jit, static_argnames=("stride", "down_sample", "compute_dtype"))
def residual_block_nhwc(x, w1, g1, b1, w2, g2, b2, *, stride=1, down_sample=False,
                        compute_dtype=jnp.bfloat16):
    """NHWC residual block.  x: (N, H, W, Cin) f32, weights HWIO.  Returns NHWC f32."""
    if stride != 1:
        # TODO(synk): strided conv1 + strided shortcut pooling not implemented.
        raise NotImplementedError("stride != 1 not supported by this kernel")

    N, H, W, Cin = x.shape
    Cout = w1.shape[-1]
    if not down_sample and Cin != Cout:
        raise ValueError("identity shortcut requires Cin == Cout")
    if down_sample and Cout < Cin:
        raise ValueError("IdentityPadding requires Cout >= Cin")

    # Lane-pad channels once: every kernel load/store and every MXU operand is
    # then lane-dense (no masked stores, no lane-axis shuffles).
    Cp = _round_up(max(Cin, Cout), LANE)
    x_p = jnp.pad(x.astype(jnp.float32), ((0, 0), (0, 0), (0, 0), (0, Cp - Cin)))

    def prep_w(w):                                     # HWIO -> (9, Cp, Cp)
        w = jnp.pad(w.astype(jnp.float32),
                    ((0, 0), (0, 0), (0, Cp - w.shape[2]), (0, Cp - w.shape[3])))
        return w.reshape(9, Cp, Cp).astype(compute_dtype)

    def prep_vec(v):
        return jnp.pad(v.astype(jnp.float32), (0, Cp - v.shape[0]))

    w1p, w2p = prep_w(w1), prep_w(w2)
    g1p, b1p, g2p, b2p = prep_vec(g1), prep_vec(b1), prep_vec(g2), prep_vec(b2)

    # Batch several images per grid step (amortize the ~0.35 us/step overhead,
    # grow the MXU M dim); keep >= 2 grid steps so both v7x TCs are fed.
    B_T = _pick_batch_tile(N, H * W * Cp * 4)
    G = N // B_T
    grid = (G,)

    cparams = pltpu.CompilerParams(
        dimension_semantics=("parallel",),
        vmem_limit_bytes=_VMEM_LIMIT)

    act_spec = pl.BlockSpec((B_T, H, W, Cp), lambda n: (n, 0, 0, 0))
    w_spec = pl.BlockSpec((9, Cp, Cp), lambda n: (0, 0, 0))
    vec_spec = pl.BlockSpec((1, Cp), lambda n: (0, 0))
    stat_spec = pl.BlockSpec((1, 2, Cp), lambda n: (n, 0, 0))
    # TODO(synk): add pipeline_mode=pl.Buffered(3) on the y1/y2 input specs if
    # profiling shows exposed DMA after the block-size increase.

    cd_bytes = jnp.dtype(compute_dtype).itemsize
    act_f32_b = N * H * W * Cp * 4
    act_cd_b = N * H * W * Cp * cd_bytes
    w_b = 9 * Cp * Cp * cd_bytes
    stat_b = G * 2 * Cp * 4
    conv_flops = 2 * N * H * W * 9 * Cp * Cp

    # ---- pass 1: conv1 + per-tile BN1 partial statistics ----
    y1, ps1 = pl.pallas_call(
        _conv_stats_kernel,
        grid=grid,
        in_specs=[act_spec, w_spec],
        out_specs=[act_spec, stat_spec],
        out_shape=[jax.ShapeDtypeStruct((N, H, W, Cp), compute_dtype),
                   jax.ShapeDtypeStruct((G, 2, Cp), jnp.float32)],
        compiler_params=cparams,
        cost_estimate=pl.CostEstimate(flops=conv_flops, transcendentals=0,
                                      bytes_accessed=act_f32_b + w_b + act_cd_b + stat_b),
    )(x_p, w1p)

    scale1, shift1 = _scale_shift(ps1, g1p, b1p, float(N * H * W))

    # ---- pass 2: bn1 + relu + conv2 + per-tile BN2 partial statistics ----
    y2, ps2 = pl.pallas_call(
        _bn_relu_conv_stats_kernel,
        grid=grid,
        in_specs=[act_spec, vec_spec, vec_spec, w_spec],
        out_specs=[act_spec, stat_spec],
        out_shape=[jax.ShapeDtypeStruct((N, H, W, Cp), compute_dtype),
                   jax.ShapeDtypeStruct((G, 2, Cp), jnp.float32)],
        compiler_params=cparams,
        cost_estimate=pl.CostEstimate(flops=conv_flops + 4 * N * H * W * Cp,
                                      transcendentals=0,
                                      bytes_accessed=2 * act_cd_b + w_b + stat_b),
    )(y1, scale1, shift1, w2p)

    scale2, shift2 = _scale_shift(ps2, g2p, b2p, float(N * H * W))

    # ---- pass 3: bn2 + shortcut add + relu ----
    # The shortcut is x_p itself: its zero channels beyond Cin implement both
    # the IdentityPadding channel pad (down_sample=True) and the lane pad for
    # free, so there is no wrapper-side jnp.pad / extra HBM activation copy.
    # TODO(synk): when chaining blocks, fuse this pass into the next block's
    # pass 1 (bn2+add+relu+conv1_next+stats) to drop a full HBM round trip.
    out_p = pl.pallas_call(
        _bn_add_relu_kernel,
        grid=grid,
        in_specs=[act_spec, act_spec, vec_spec, vec_spec],
        out_specs=act_spec,
        out_shape=jax.ShapeDtypeStruct((N, H, W, Cp), jnp.float32),
        compiler_params=cparams,
        cost_estimate=pl.CostEstimate(flops=4 * N * H * W * Cp, transcendentals=0,
                                      bytes_accessed=act_cd_b + 2 * act_f32_b),
    )(y2, x_p, scale2, shift2)

    return out_p[..., :Cout]


@functools.partial(jax.jit, static_argnames=("stride", "down_sample", "compute_dtype"))
def residual_block(x_nchw, w1, g1, b1, w2, g2, b2, *, stride=1, down_sample=False,
                   compute_dtype=jnp.bfloat16):
    """PyTorch-layout entry point: NCHW in / NCHW out.

    For best end-to-end performance chain residual_block_nhwc calls and keep
    activations channels-last across blocks (skips these transposes).
    """
    x = jnp.transpose(x_nchw, (0, 2, 3, 1)).astype(jnp.float32)
    out = residual_block_nhwc(x, w1, g1, b1, w2, g2, b2, stride=stride,
                              down_sample=down_sample, compute_dtype=compute_dtype)
    return jnp.transpose(out, (0, 3, 1, 2))


# ------------------------------- reference ----------------------------------


def _reference(x_nchw, w1, g1, b1, w2, g2, b2, *, down_sample=False):
    """Plain-JAX reference (NHWC internals) for validation."""
    x = jnp.transpose(x_nchw, (0, 2, 3, 1))
    Cin = x.shape[-1]
    Cout = w1.shape[-1]

    def conv(a, w):
        return jax.lax.conv_general_dilated(
            a, w, window_strides=(1, 1), padding=((1, 1), (1, 1)),
            dimension_numbers=("NHWC", "HWIO", "NHWC"),
            precision=jax.lax.Precision.HIGHEST)

    def bn(a, g, b):
        m = jnp.mean(a, axis=(0, 1, 2), keepdims=True)
        v = jnp.mean((a - m) ** 2, axis=(0, 1, 2), keepdims=True)
        return (a - m) * jax.lax.rsqrt(v + EPS) * g + b

    shortcut = (jnp.pad(x, ((0, 0), (0, 0), (0, 0), (0, Cout - Cin)))
                if down_sample else x)
    h = jnp.maximum(bn(conv(x, w1), g1, b1), 0.0)
    h = bn(conv(h, w2), g2, b2)
    out = jnp.maximum(h + shortcut, 0.0)
    return jnp.transpose(out, (0, 3, 1, 2))


# ---------------------------------- test -------------------------------------


if __name__ == "__main__":
    N, Cin, Cout, H, W = 2, 4, 4, 16, 16

    key = jax.random.PRNGKey(0)
    kx, k1, k2, kg1, kb1, kg2, kb2 = jax.random.split(key, 7)

    x = jax.random.normal(kx, (N, Cin, H, W), jnp.float32)
    w1 = jax.random.normal(k1, (3, 3, Cin, Cout), jnp.float32) * 0.2
    w2 = jax.random.normal(k2, (3, 3, Cout, Cout), jnp.float32) * 0.2
    g1 = 1.0 + 0.1 * jax.random.normal(kg1, (Cout,), jnp.float32)
    b1 = 0.1 * jax.random.normal(kb1, (Cout,), jnp.float32)
    g2 = 1.0 + 0.1 * jax.random.normal(kg2, (Cout,), jnp.float32)
    b2 = 0.1 * jax.random.normal(kb2, (Cout,), jnp.float32)

    ref = jax.block_until_ready(_reference(x, w1, g1, b1, w2, g2, b2))

    # Exact-semantics path (f32 MXU inputs, f32 intermediates).
    out_f32 = jax.block_until_ready(
        residual_block(x, w1, g1, b1, w2, g2, b2, compute_dtype=jnp.float32))
    np.testing.assert_allclose(np.asarray(out_f32), np.asarray(ref),
                               rtol=2e-2, atol=2e-2)

    # Fast path (bf16 MXU inputs + bf16 intermediates, f32 accumulation & BN).
    out_bf16 = jax.block_until_ready(
        residual_block(x, w1, g1, b1, w2, g2, b2, compute_dtype=jnp.bfloat16))
    np.testing.assert_allclose(np.asarray(out_bf16), np.asarray(ref),
                               rtol=5e-2, atol=2e-1)

    # down_sample=True (IdentityPadding, stride=1) path with Cin != Cout.
    Cout2 = 8
    kd1, kd2, kdg1, kdb1, kdg2, kdb2 = jax.random.split(jax.random.PRNGKey(1), 6)
    wd1 = jax.random.normal(kd1, (3, 3, Cin, Cout2), jnp.float32) * 0.2
    wd2 = jax.random.normal(kd2, (3, 3, Cout2, Cout2), jnp.float32) * 0.2
    gd1 = 1.0 + 0.1 * jax.random.normal(kdg1, (Cout2,), jnp.float32)
    bd1 = 0.1 * jax.random.normal(kdb1, (Cout2,), jnp.float32)
    gd2 = 1.0 + 0.1 * jax.random.normal(kdg2, (Cout2,), jnp.float32)
    bd2 = 0.1 * jax.random.normal(kdb2, (Cout2,), jnp.float32)

    out_ds = jax.block_until_ready(
        residual_block(x, wd1, gd1, bd1, wd2, gd2, bd2,
                       down_sample=True, compute_dtype=jnp.float32))
    ref_ds = jax.block_until_ready(
        _reference(x, wd1, gd1, bd1, wd2, gd2, bd2, down_sample=True))
    np.testing.assert_allclose(np.asarray(out_ds), np.asarray(ref_ds),
                               rtol=2e-2, atol=2e-2)

    print("KERNEL_OK")
</pallas_src>

<mosaic_0001>
module attributes {stable_mosaic.version = 11 : i64} {
  func.func @_conv_stats_kernel(%arg0: i32, %arg1: memref<1x16x16x128xf32, #tpu.memory_space<vmem>>, %arg2: memref<9x128x128xf32, #tpu.memory_space<vmem>>, %arg3: memref<1x16x16x128xf32, #tpu.memory_space<vmem>>, %arg4: memref<1x2x128xf32, #tpu.memory_space<vmem>>) attributes {dimension_semantics = [#tpu.dimension_semantics<parallel>], iteration_bounds = array<i64: 2>, scalar_prefetch = 0 : i64, scratch_operands = 0 : i64, tpu.core_type = #tpu.core_type<tc>, window_params = [{transform_indices = @transform_0, window_bounds = array<i64: 1, 16, 16, 128>}, {pipeline_mode = #tpu.pipeline_mode<synchronous>, transform_indices = @transform_1, window_bounds = array<i64: 9, 128, 128>}, {transform_indices = @transform_2, window_bounds = array<i64: 1, 16, 16, 128>}, {transform_indices = @transform_3, window_bounds = array<i64: 1, 2, 128>}]} {
    %c0 = arith.constant 0 : index
    %c0_0 = arith.constant 0 : index
    %c0_1 = arith.constant 0 : index
    %c0_2 = arith.constant 0 : index
    %0 = vector.load %arg1[%c0, %c0_0, %c0_1, %c0_2] : memref<1x16x16x128xf32, #tpu.memory_space<vmem>>, vector<1x16x16x128xf32>
    %cst = arith.constant 0.000000e+00 : f32
    %1 = vector.broadcast %cst : f32 to vector<1x16x1x128xf32>
    %2 = tpu.concatenate %1, %0, %1 in 2 : vector<1x16x1x128xf32>, vector<1x16x16x128xf32>, vector<1x16x1x128xf32> -> vector<1x16x18x128xf32>
    %cst_3 = arith.constant 0.000000e+00 : f32
    %3 = vector.broadcast %cst_3 : f32 to vector<1x1x18x128xf32>
    %4 = tpu.concatenate %3, %2, %3 in 1 : vector<1x1x18x128xf32>, vector<1x16x18x128xf32>, vector<1x1x18x128xf32> -> vector<1x18x18x128xf32>
    %5 = vector.extract_strided_slice %4 {offsets = [0, 0, 0, 0], sizes = [1, 16, 16, 128], strides = [1, 1, 1, 1]} : vector<1x18x18x128xf32> to vector<1x16x16x128xf32>
    %6 = vector.shape_cast %5 : vector<1x16x16x128xf32> to vector<256x128xf32>
    %c0_4 = arith.constant 0 : index
    %c0_5 = arith.constant 0 : index
    %c0_6 = arith.constant 0 : index
    %7 = vector.load %arg2[%c0_4, %c0_5, %c0_6] : memref<9x128x128xf32, #tpu.memory_space<vmem>>, vector<1x128x128xf32>
    %8 = vector.shape_cast %7 : vector<1x128x128xf32> to vector<128x128xf32>
    %cst_7 = arith.constant dense<0.000000e+00> : vector<256x128xf32>
    %9 = tpu.matmul %6, %8, %cst_7 {dimension_numbers = #tpu.dot_dimension_numbers<[1], [0], [0], [1], [0, 0, 1, 1], [], []>} : vector<256x128xf32>, vector<128x128xf32>, vector<256x128xf32> -> vector<256x128xf32>
    %10 = vector.extract_strided_slice %4 {offsets = [0, 0, 1, 0], sizes = [1, 16, 16, 128], strides = [1, 1, 1, 1]} : vector<1x18x18x128xf32> to vector<1x16x16x128xf32>
    %11 = vector.shape_cast %10 : vector<1x16x16x128xf32> to vector<256x128xf32>
    %c1 = arith.constant 1 : index
    %c0_8 = arith.constant 0 : index
    %c0_9 = arith.constant 0 : index
    %12 = vector.load %arg2[%c1, %c0_8, %c0_9] : memref<9x128x128xf32, #tpu.memory_space<vmem>>, vector<1x128x128xf32>
    %13 = vector.shape_cast %12 : vector<1x128x128xf32> to vector<128x128xf32>
    %cst_10 = arith.constant dense<0.000000e+00> : vector<256x128xf32>
    %14 = tpu.matmul %11, %13, %cst_10 {dimension_numbers = #tpu.dot_dimension_numbers<[1], [0], [0], [1], [0, 0, 1, 1], [], []>} : vector<256x128xf32>, vector<128x128xf32>, vector<256x128xf32> -> vector<256x128xf32>
    %15 = arith.addf %9, %14 : vector<256x128xf32>
    %16 = vector.extract_strided_slice %4 {offsets = [0, 0, 2, 0], sizes = [1, 16, 16, 128], strides = [1, 1, 1, 1]} : vector<1x18x18x128xf32> to vector<1x16x16x128xf32>
    %17 = vector.shape_cast %16 : vector<1x16x16x128xf32> to vector<256x128xf32>
    %c2 = arith.constant 2 : index
    %c0_11 = arith.constant 0 : index
    %c0_12 = arith.constant 0 : index
    %18 = vector.load %arg2[%c2, %c0_11, %c0_12] : memref<9x128x128xf32, #tpu.memory_space<vmem>>, vector<1x128x128xf32>
    %19 = vector.shape_cast %18 : vector<1x128x128xf32> to vector<128x128xf32>
    %cst_13 = arith.constant dense<0.000000e+00> : vector<256x128xf32>
    %20 = tpu.matmul %17, %19, %cst_13 {dimension_numbers = #tpu.dot_dimension_numbers<[1], [0], [0], [1], [0, 0, 1, 1], [], []>} : vector<256x128xf32>, vector<128x128xf32>, vector<256x128xf32> -> vector<256x128xf32>
    %21 = arith.addf %15, %20 : vector<256x128xf32>
    %22 = vector.extract_strided_slice %4 {offsets = [0, 1, 0, 0], sizes = [1, 16, 16, 128], strides = [1, 1, 1, 1]} : vector<1x18x18x128xf32> to vector<1x16x16x128xf32>
    %23 = vector.shape_cast %22 : vector<1x16x16x128xf32> to vector<256x128xf32>
    %c3 = arith.constant 3 : index
    %c0_14 = arith.constant 0 : index
    %c0_15 = arith.constant 0 : index
    %24 = vector.load %arg2[%c3, %c0_14, %c0_15] : memref<9x128x128xf32, #tpu.memory_space<vmem>>, vector<1x128x128xf32>
    %25 = vector.shape_cast %24 : vector<1x128x128xf32> to vector<128x128xf32>
    %cst_16 = arith.constant dense<0.000000e+00> : vector<256x128xf32>
    %26 = tpu.matmul %23, %25, %cst_16 {dimension_numbers = #tpu.dot_dimension_numbers<[1], [0], [0], [1], [0, 0, 1, 1], [], []>} : vector<256x128xf32>, vector<128x128xf32>, vector<256x128xf32> -> vector<256x128xf32>
    %27 = arith.addf %21, %26 : vector<256x128xf32>
    %28 = vector.extract_strided_slice %4 {offsets = [0, 1, 1, 0], sizes = [1, 16, 16, 128], strides = [1, 1, 1, 1]} : vector<1x18x18x128xf32> to vector<1x16x16x128xf32>
    %29 = vector.shape_cast %28 : vector<1x16x16x128xf32> to vector<256x128xf32>
    %c4 = arith.constant 4 : index
    %c0_17 = arith.constant 0 : index
    %c0_18 = arith.constant 0 : index
    %30 = vector.load %arg2[%c4, %c0_17, %c0_18] : memref<9x128x128xf32, #tpu.memory_space<vmem>>, vector<1x128x128xf32>
    %31 = vector.shape_cast %30 : vector<1x128x128xf32> to vector<128x128xf32>
    %cst_19 = arith.constant dense<0.000000e+00> : vector<256x128xf32>
    %32 = tpu.matmul %29, %31, %cst_19 {dimension_numbers = #tpu.dot_dimension_numbers<[1], [0], [0], [1], [0, 0, 1, 1], [], []>} : vector<256x128xf32>, vector<128x128xf32>, vector<256x128xf32> -> vector<256x128xf32>
    %33 = arith.addf %27, %32 : vector<256x128xf32>
    %34 = vector.extract_strided_slice %4 {offsets = [0, 1, 2, 0], sizes = [1, 16, 16, 128], strides = [1, 1, 1, 1]} : vector<1x18x18x128xf32> to vector<1x16x16x128xf32>
    %35 = vector.shape_cast %34 : vector<1x16x16x128xf32> to vector<256x128xf32>
    %c5 = arith.constant 5 : index
    %c0_20 = arith.constant 0 : index
    %c0_21 = arith.constant 0 : index
    %36 = vector.load %arg2[%c5, %c0_20, %c0_21] : memref<9x128x128xf32, #tpu.memory_space<vmem>>, vector<1x128x128xf32>
    %37 = vector.shape_cast %36 : vector<1x128x128xf32> to vector<128x128xf32>
    %cst_22 = arith.constant dense<0.000000e+00> : vector<256x128xf32>
    %38 = tpu.matmul %35, %37, %cst_22 {dimension_numbers = #tpu.dot_dimension_numbers<[1], [0], [0], [1], [0, 0, 1, 1], [], []>} : vector<256x128xf32>, vector<128x128xf32>, vector<256x128xf32> -> vector<256x128xf32>
    %39 = arith.addf %33, %38 : vector<256x128xf32>
    %40 = vector.extract_strided_slice %4 {offsets = [0, 2, 0, 0], sizes = [1, 16, 16, 128], strides = [1, 1, 1, 1]} : vector<1x18x18x128xf32> to vector<1x16x16x128xf32>
    %41 = vector.shape_cast %40 : vector<1x16x16x128xf32> to vector<256x128xf32>
    %c6 = arith.constant 6 : index
    %c0_23 = arith.constant 0 : index
    %c0_24 = arith.constant 0 : index
    %42 = vector.load %arg2[%c6, %c0_23, %c0_24] : memref<9x128x128xf32, #tpu.memory_space<vmem>>, vector<1x128x128xf32>
    %43 = vector.shape_cast %42 : vector<1x128x128xf32> to vector<128x128xf32>
    %cst_25 = arith.constant dense<0.000000e+00> : vector<256x128xf32>
    %44 = tpu.matmul %41, %43, %cst_25 {dimension_numbers = #tpu.dot_dimension_numbers<[1], [0], [0], [1], [0, 0, 1, 1], [], []>} : vector<256x128xf32>, vector<128x128xf32>, vector<256x128xf32> -> vector<256x128xf32>
    %45 = arith.addf %39, %44 : vector<256x128xf32>
    %46 = vector.extract_strided_slice %4 {offsets = [0, 2, 1, 0], sizes = [1, 16, 16, 128], strides = [1, 1, 1, 1]} : vector<1x18x18x128xf32> to vector<1x16x16x128xf32>
    %47 = vector.shape_cast %46 : vector<1x16x16x128xf32> to vector<256x128xf32>
    %c7 = arith.constant 7 : index
    %c0_26 = arith.constant 0 : index
    %c0_27 = arith.constant 0 : index
    %48 = vector.load %arg2[%c7, %c0_26, %c0_27] : memref<9x128x128xf32, #tpu.memory_space<vmem>>, vector<1x128x128xf32>
    %49 = vector.shape_cast %48 : vector<1x128x128xf32> to vector<128x128xf32>
    %cst_28 = arith.constant dense<0.000000e+00> : vector<256x128xf32>
    %50 = tpu.matmul %47, %49, %cst_28 {dimension_numbers = #tpu.dot_dimension_numbers<[1], [0], [0], [1], [0, 0, 1, 1], [], []>} : vector<256x128xf32>, vector<128x128xf32>, vector<256x128xf32> -> vector<256x128xf32>
    %51 = arith.addf %45, %50 : vector<256x128xf32>
    %52 = vector.extract_strided_slice %4 {offsets = [0, 2, 2, 0], sizes = [1, 16, 16, 128], strides = [1, 1, 1, 1]} : vector<1x18x18x128xf32> to vector<1x16x16x128xf32>
    %53 = vector.shape_cast %52 : vector<1x16x16x128xf32> to vector<256x128xf32>
    %c8 = arith.constant 8 : index
    %c0_29 = arith.constant 0 : index
    %c0_30 = arith.constant 0 : index
    %54 = vector.load %arg2[%c8, %c0_29, %c0_30] : memref<9x128x128xf32, #tpu.memory_space<vmem>>, vector<1x128x128xf32>
    %55 = vector.shape_cast %54 : vector<1x128x128xf32> to vector<128x128xf32>
    %cst_31 = arith.constant dense<0.000000e+00> : vector<256x128xf32>
    %56 = tpu.matmul %53, %55, %cst_31 {dimension_numbers = #tpu.dot_dimension_numbers<[1], [0], [0], [1], [0, 0, 1, 1], [], []>} : vector<256x128xf32>, vector<128x128xf32>, vector<256x128xf32> -> vector<256x128xf32>
    %57 = arith.addf %51, %56 : vector<256x128xf32>
    %58 = vector.shape_cast %57 : vector<256x128xf32> to vector<1x16x16x128xf32>
    %c0_32 = arith.constant 0 : index
    %c0_33 = arith.constant 0 : index
    %c0_34 = arith.constant 0 : index
    %c0_35 = arith.constant 0 : index
    %59 = vector.load %arg3[%c0_32, %c0_33, %c0_34, %c0_35] : memref<1x16x16x128xf32, #tpu.memory_space<vmem>>, vector<1x16x16x128xf32>
    tpu.vector_store %arg3[%c0_32, %c0_33, %c0_34, %c0_35], %58 {strides = array<i32>} : memref<1x16x16x128xf32, #tpu.memory_space<vmem>>, vector<1x16x16x128xf32>,
    %cst_36 = arith.constant dense<0.000000e+00> : vector<128xf32>
    %60 = vector.multi_reduction <add>, %57, %cst_36 [0] : vector<256x128xf32> to vector<128xf32>
    %61 = vector.shape_cast %60 : vector<128xf32> to vector<1x128xf32>
    %62 = arith.mulf %57, %57 : vector<256x128xf32>
    %cst_37 = arith.constant dense<0.000000e+00> : vector<128xf32>
    %63 = vector.multi_reduction <add>, %62, %cst_37 [0] : vector<256x128xf32> to vector<128xf32>
    %64 = vector.shape_cast %63 : vector<128xf32> to vector<1x128xf32>
    %65 = tpu.concatenate %61, %64 in 0 : vector<1x128xf32>, vector<1x128xf32> -> vector<2x128xf32>
    %c0_38 = arith.constant 0 : index
    %c0_39 = arith.constant 0 : index
    %c0_40 = arith.constant 0 : index
    %66 = vector.load %arg4[%c0_38, %c0_39, %c0_40] : memref<1x2x128xf32, #tpu.memory_space<vmem>>, vector<1x2x128xf32>
    %67 = vector.shape_cast %66 : vector<1x2x128xf32> to vector<2x128xf32>
    %68 = vector.shape_cast %65 : vector<2x128xf32> to vector<1x2x128xf32>
    tpu.vector_store %arg4[%c0_38, %c0_39, %c0_40], %68 {strides = array<i32>} : memref<1x2x128xf32, #tpu.memory_space<vmem>>, vector<1x2x128xf32>,
    return
  }
  func.func @transform_0(%arg0: i32) -> (i32, i32, i32, i32) {
    %c0_i32 = arith.constant 0 : i32
    %c0_i32_0 = arith.constant 0 : i32
    %c0_i32_1 = arith.constant 0 : i32
    %c0_i32_2 = arith.constant 0 : i32
    return %arg0, %c0_i32, %c0_i32_0, %c0_i32_1 : i32, i32, i32, i32
  }
  func.func @transform_1(%arg0: i32) -> (i32, i32, i32) {
    %c0_i32 = arith.constant 0 : i32
    %c0_i32_0 = arith.constant 0 : i32
    %c0_i32_1 = arith.constant 0 : i32
    %c0_i32_2 = arith.constant 0 : i32
    return %c0_i32, %c0_i32_0, %c0_i32_1 : i32, i32, i32
  }
  func.func @transform_2(%arg0: i32) -> (i32, i32, i32, i32) {
    %c0_i32 = arith.constant 0 : i32
    %c0_i32_0 = arith.constant 0 : i32
    %c0_i32_1 = arith.constant 0 : i32
    %c0_i32_2 = arith.constant 0 : i32
    return %arg0, %c0_i32, %c0_i32_0, %c0_i32_1 : i32, i32, i32, i32
  }
  func.func @transform_3(%arg0: i32) -> (i32, i32, i32) {
    %c0_i32 = arith.constant 0 : i32
    %c0_i32_0 = arith.constant 0 : i32
    %c0_i32_1 = arith.constant 0 : i32
    return %arg0, %c0_i32, %c0_i32_0 : i32, i32, i32
  }
}

module attributes {stable_mosaic.version = 11 : i64} {
  func.func @_bn_add_relu_kernel(%arg0: i32, %arg1: memref<1x16x16x128xf32, #tpu.memory_space<vmem>>, %arg2: memref<1x16x16x128xf32, #tpu.memory_space<vmem>>, %arg3: memref<1x128xf32, #tpu.memory_space<vmem>>, %arg4: memref<1x128xf32, #tpu.memory_space<vmem>>, %arg5: memref<1x16x16x128xf32, #tpu.memory_space<vmem>>) attributes {dimension_semantics = [#tpu.dimension_semantics<parallel>], iteration_bounds = array<i64: 2>, scalar_prefetch = 0 : i64, scratch_operands = 0 : i64, tpu.core_type = #tpu.core_type<tc>, window_params = [{transform_indices = @transform_0, window_bounds = array<i64: 1, 16, 16, 128>}, {transform_indices = @transform_1, window_bounds = array<i64: 1, 16, 16, 128>}, {pipeline_mode = #tpu.pipeline_mode<synchronous>, transform_indices = @transform_2, window_bounds = array<i64: 1, 128>}, {pipeline_mode = #tpu.pipeline_mode<synchronous>, transform_indices = @transform_3, window_bounds = array<i64: 1, 128>}, {transform_indices = @transform_4, window_bounds = array<i64: 1, 16, 16, 128>}]} {
    %c0 = arith.constant 0 : index
    %c0_0 = arith.constant 0 : index
    %0 = vector.load %arg3[%c0, %c0_0] : memref<1x128xf32, #tpu.memory_space<vmem>>, vector<1x128xf32>
    %1 = vector.shape_cast %0 : vector<1x128xf32> to vector<1x1x1x128xf32>
    %c0_1 = arith.constant 0 : index
    %c0_2 = arith.constant 0 : index
    %2 = vector.load %arg4[%c0_1, %c0_2] : memref<1x128xf32, #tpu.memory_space<vmem>>, vector<1x128xf32>
    %3 = vector.shape_cast %2 : vector<1x128xf32> to vector<1x1x1x128xf32>
    %c0_3 = arith.constant 0 : index
    %c0_4 = arith.constant 0 : index
    %c0_5 = arith.constant 0 : index
    %c0_6 = arith.constant 0 : index
    %4 = vector.load %arg1[%c0_3, %c0_4, %c0_5, %c0_6] : memref<1x16x16x128xf32, #tpu.memory_space<vmem>>, vector<1x16x16x128xf32>
    %5 = vector.broadcast %1 : vector<1x1x1x128xf32> to vector<1x16x16x128xf32>
    %6 = arith.mulf %4, %5 : vector<1x16x16x128xf32>
    %7 = vector.broadcast %3 : vector<1x1x1x128xf32> to vector<1x16x16x128xf32>
    %8 = arith.addf %6, %7 : vector<1x16x16x128xf32>
    %c0_7 = arith.constant 0 : index
    %c0_8 = arith.constant 0 : index
    %c0_9 = arith.constant 0 : index
    %c0_10 = arith.constant 0 : index
    %9 = vector.load %arg2[%c0_7, %c0_8, %c0_9, %c0_10] : memref<1x16x16x128xf32, #tpu.memory_space<vmem>>, vector<1x16x16x128xf32>
    %10 = arith.addf %8, %9 : vector<1x16x16x128xf32>
    %cst = arith.constant 0.000000e+00 : f32
    %11 = vector.broadcast %cst : f32 to vector<1x16x16x128xf32>
    %12 = arith.maximumf %10, %11 : vector<1x16x16x128xf32>
    %c0_11 = arith.constant 0 : index
    %c0_12 = arith.constant 0 : index
    %c0_13 = arith.constant 0 : index
    %c0_14 = arith.constant 0 : index
    %13 = vector.load %arg5[%c0_11, %c0_12, %c0_13, %c0_14] : memref<1x16x16x128xf32, #tpu.memory_space<vmem>>, vector<1x16x16x128xf32>
    tpu.vector_store %arg5[%c0_11, %c0_12, %c0_13, %c0_14], %12 {strides = array<i32>} : memref<1x16x16x128xf32, #tpu.memory_space<vmem>>, vector<1x16x16x128xf32>,
    return
  }
  func.func @transform_0(%arg0: i32) -> (i32, i32, i32, i32) {
    %c0_i32 = arith.constant 0 : i32
    %c0_i32_0 = arith.constant 0 : i32
    %c0_i32_1 = arith.constant 0 : i32
    %c0_i32_2 = arith.constant 0 : i32
    return %arg0, %c0_i32, %c0_i32_0, %c0_i32_1 : i32, i32, i32, i32
  }
  func.func @transform_1(%arg0: i32) -> (i32, i32, i32, i32) {
    %c0_i32 = arith.constant 0 : i32
    %c0_i32_0 = arith.constant 0 : i32
    %c0_i32_1 = arith.constant 0 : i32
    %c0_i32_2 = arith.constant 0 : i32
    return %arg0, %c0_i32, %c0_i32_0, %c0_i32_1 : i32, i32, i32, i32
  }
  func.func @transform_2(%arg0: i32) -> (i32, i32) {
    %c0_i32 = arith.constant 0 : i32
    %c0_i32_0 = arith.constant 0 : i32
    %c0_i32_1 = arith.constant 0 : i32
    return %c0_i32, %c0_i32_0 : i32, i32
  }
  func.func @transform_3(%arg0: i32) -> (i32, i32) {
    %c0_i32 = arith.constant 0 : i32
    %c0_i32_0 = arith.constant 0 : i32
    %c0_i32_1 = arith.constant 0 : i32
    return %c0_i32, %c0_i32_0 : i32, i32
  }
  func.func @transform_4(%arg0: i32) -> (i32, i32, i32, i32) {
    %c0_i32 = arith.constant 0 : i32
    %c0_i32_0 = arith.constant 0 : i32
    %c0_i32_1 = arith.constant 0 : i32
    %c0_i32_2 = arith.constant 0 : i32
    return %arg0, %c0_i32, %c0_i32_0, %c0_i32_1 : i32, i32, i32, i32
  }
}

module attributes {stable_mosaic.version = 11 : i64} {
  func.func @_bn_relu_conv_stats_kernel(%arg0: i32, %arg1: memref<1x16x16x128xf32, #tpu.memory_space<vmem>>, %arg2: memref<1x128xf32, #tpu.memory_space<vmem>>, %arg3: memref<1x128xf32, #tpu.memory_space<vmem>>, %arg4: memref<9x128x128xf32, #tpu.memory_space<vmem>>, %arg5: memref<1x16x16x128xf32, #tpu.memory_space<vmem>>, %arg6: memref<1x2x128xf32, #tpu.memory_space<vmem>>) attributes {dimension_semantics = [#tpu.dimension_semantics<parallel>], iteration_bounds = array<i64: 2>, scalar_prefetch = 0 : i64, scratch_operands = 0 : i64, tpu.core_type = #tpu.core_type<tc>, window_params = [{transform_indices = @transform_0, window_bounds = array<i64: 1, 16, 16, 128>}, {pipeline_mode = #tpu.pipeline_mode<synchronous>, transform_indices = @transform_1, window_bounds = array<i64: 1, 128>}, {pipeline_mode = #tpu.pipeline_mode<synchronous>, transform_indices = @transform_2, window_bounds = array<i64: 1, 128>}, {pipeline_mode = #tpu.pipeline_mode<synchronous>, transform_indices = @transform_3, window_bounds = array<i64: 9, 128, 128>}, {transform_indices = @transform_4, window_bounds = array<i64: 1, 16, 16, 128>}, {transform_indices = @transform_5, window_bounds = array<i64: 1, 2, 128>}]} {
    %c0 = arith.constant 0 : index
    %c0_0 = arith.constant 0 : index
    %0 = vector.load %arg2[%c0, %c0_0] : memref<1x128xf32, #tpu.memory_space<vmem>>, vector<1x128xf32>
    %1 = vector.shape_cast %0 : vector<1x128xf32> to vector<1x1x1x128xf32>
    %c0_1 = arith.constant 0 : index
    %c0_2 = arith.constant 0 : index
    %2 = vector.load %arg3[%c0_1, %c0_2] : memref<1x128xf32, #tpu.memory_space<vmem>>, vector<1x128xf32>
    %3 = vector.shape_cast %2 : vector<1x128xf32> to vector<1x1x1x128xf32>
    %c0_3 = arith.constant 0 : index
    %c0_4 = arith.constant 0 : index
    %c0_5 = arith.constant 0 : index
    %c0_6 = arith.constant 0 : index
    %4 = vector.load %arg1[%c0_3, %c0_4, %c0_5, %c0_6] : memref<1x16x16x128xf32, #tpu.memory_space<vmem>>, vector<1x16x16x128xf32>
    %5 = vector.broadcast %1 : vector<1x1x1x128xf32> to vector<1x16x16x128xf32>
    %6 = arith.mulf %4, %5 : vector<1x16x16x128xf32>
    %7 = vector.broadcast %3 : vector<1x1x1x128xf32> to vector<1x16x16x128xf32>
    %8 = arith.addf %6, %7 : vector<1x16x16x128xf32>
    %cst = arith.constant 0.000000e+00 : f32
    %9 = vector.broadcast %cst : f32 to vector<1x16x16x128xf32>
    %10 = arith.maximumf %8, %9 : vector<1x16x16x128xf32>
    %cst_7 = arith.constant 0.000000e+00 : f32
    %11 = vector.broadcast %cst_7 : f32 to vector<1x16x1x128xf32>
    %12 = tpu.concatenate %11, %10, %11 in 2 : vector<1x16x1x128xf32>, vector<1x16x16x128xf32>, vector<1x16x1x128xf32> -> vector<1x16x18x128xf32>
    %cst_8 = arith.constant 0.000000e+00 : f32
    %13 = vector.broadcast %cst_8 : f32 to vector<1x1x18x128xf32>
    %14 = tpu.concatenate %13, %12, %13 in 1 : vector<1x1x18x128xf32>, vector<1x16x18x128xf32>, vector<1x1x18x128xf32> -> vector<1x18x18x128xf32>
    %15 = vector.extract_strided_slice %14 {offsets = [0, 0, 0, 0], sizes = [1, 16, 16, 128], strides = [1, 1, 1, 1]} : vector<1x18x18x128xf32> to vector<1x16x16x128xf32>
    %16 = vector.shape_cast %15 : vector<1x16x16x128xf32> to vector<256x128xf32>
    %c0_9 = arith.constant 0 : index
    %c0_10 = arith.constant 0 : index
    %c0_11 = arith.constant 0 : index
    %17 = vector.load %arg4[%c0_9, %c0_10, %c0_11] : memref<9x128x128xf32, #tpu.memory_space<vmem>>, vector<1x128x128xf32>
    %18 = vector.shape_cast %17 : vector<1x128x128xf32> to vector<128x128xf32>
    %cst_12 = arith.constant dense<0.000000e+00> : vector<256x128xf32>
    %19 = tpu.matmul %16, %18, %cst_12 {dimension_numbers = #tpu.dot_dimension_numbers<[1], [0], [0], [1], [0, 0, 1, 1], [], []>} : vector<256x128xf32>, vector<128x128xf32>, vector<256x128xf32> -> vector<256x128xf32>
    %20 = vector.extract_strided_slice %14 {offsets = [0, 0, 1, 0], sizes = [1, 16, 16, 128], strides = [1, 1, 1, 1]} : vector<1x18x18x128xf32> to vector<1x16x16x128xf32>
    %21 = vector.shape_cast %20 : vector<1x16x16x128xf32> to vector<256x128xf32>
    %c1 = arith.constant 1 : index
    %c0_13 = arith.constant 0 : index
    %c0_14 = arith.constant 0 : index
    %22 = vector.load %arg4[%c1, %c0_13, %c0_14] : memref<9x128x128xf32, #tpu.memory_space<vmem>>, vector<1x128x128xf32>
    %23 = vector.shape_cast %22 : vector<1x128x128xf32> to vector<128x128xf32>
    %cst_15 = arith.constant dense<0.000000e+00> : vector<256x128xf32>
    %24 = tpu.matmul %21, %23, %cst_15 {dimension_numbers = #tpu.dot_dimension_numbers<[1], [0], [0], [1], [0, 0, 1, 1], [], []>} : vector<256x128xf32>, vector<128x128xf32>, vector<256x128xf32> -> vector<256x128xf32>
    %25 = arith.addf %19, %24 : vector<256x128xf32>
    %26 = vector.extract_strided_slice %14 {offsets = [0, 0, 2, 0], sizes = [1, 16, 16, 128], strides = [1, 1, 1, 1]} : vector<1x18x18x128xf32> to vector<1x16x16x128xf32>
    %27 = vector.shape_cast %26 : vector<1x16x16x128xf32> to vector<256x128xf32>
    %c2 = arith.constant 2 : index
    %c0_16 = arith.constant 0 : index
    %c0_17 = arith.constant 0 : index
    %28 = vector.load %arg4[%c2, %c0_16, %c0_17] : memref<9x128x128xf32, #tpu.memory_space<vmem>>, vector<1x128x128xf32>
    %29 = vector.shape_cast %28 : vector<1x128x128xf32> to vector<128x128xf32>
    %cst_18 = arith.constant dense<0.000000e+00> : vector<256x128xf32>
    %30 = tpu.matmul %27, %29, %cst_18 {dimension_numbers = #tpu.dot_dimension_numbers<[1], [0], [0], [1], [0, 0, 1, 1], [], []>} : vector<256x128xf32>, vector<128x128xf32>, vector<256x128xf32> -> vector<256x128xf32>
    %31 = arith.addf %25, %30 : vector<256x128xf32>
    %32 = vector.extract_strided_slice %14 {offsets = [0, 1, 0, 0], sizes = [1, 16, 16, 128], strides = [1, 1, 1, 1]} : vector<1x18x18x128xf32> to vector<1x16x16x128xf32>
    %33 = vector.shape_cast %32 : vector<1x16x16x128xf32> to vector<256x128xf32>
    %c3 = arith.constant 3 : index
    %c0_19 = arith.constant 0 : index
    %c0_20 = arith.constant 0 : index
    %34 = vector.load %arg4[%c3, %c0_19, %c0_20] : memref<9x128x128xf32, #tpu.memory_space<vmem>>, vector<1x128x128xf32>
    %35 = vector.shape_cast %34 : vector<1x128x128xf32> to vector<128x128xf32>
    %cst_21 = arith.constant dense<0.000000e+00> : vector<256x128xf32>
    %36 = tpu.matmul %33, %35, %cst_21 {dimension_numbers = #tpu.dot_dimension_numbers<[1], [0], [0], [1], [0, 0, 1, 1], [], []>} : vector<256x128xf32>, vector<128x128xf32>, vector<256x128xf32> -> vector<256x128xf32>
    %37 = arith.addf %31, %36 : vector<256x128xf32>
    %38 = vector.extract_strided_slice %14 {offsets = [0, 1, 1, 0], sizes = [1, 16, 16, 128], strides = [1, 1, 1, 1]} : vector<1x18x18x128xf32> to vector<1x16x16x128xf32>
    %39 = vector.shape_cast %38 : vector<1x16x16x128xf32> to vector<256x128xf32>
    %c4 = arith.constant 4 : index
    %c0_22 = arith.constant 0 : index
    %c0_23 = arith.constant 0 : index
    %40 = vector.load %arg4[%c4, %c0_22, %c0_23] : memref<9x128x128xf32, #tpu.memory_space<vmem>>, vector<1x128x128xf32>
    %41 = vector.shape_cast %40 : vector<1x128x128xf32> to vector<128x128xf32>
    %cst_24 = arith.constant dense<0.000000e+00> : vector<256x128xf32>
    %42 = tpu.matmul %39, %41, %cst_24 {dimension_numbers = #tpu.dot_dimension_numbers<[1], [0], [0], [1], [0, 0, 1, 1], [], []>} : vector<256x128xf32>, vector<128x128xf32>, vector<256x128xf32> -> vector<256x128xf32>
    %43 = arith.addf %37, %42 : vector<256x128xf32>
    %44 = vector.extract_strided_slice %14 {offsets = [0, 1, 2, 0], sizes = [1, 16, 16, 128], strides = [1, 1, 1, 1]} : vector<1x18x18x128xf32> to vector<1x16x16x128xf32>
    %45 = vector.shape_cast %44 : vector<1x16x16x128xf32> to vector<256x128xf32>
    %c5 = arith.constant 5 : index
    %c0_25 = arith.constant 0 : index
    %c0_26 = arith.constant 0 : index
    %46 = vector.load %arg4[%c5, %c0_25, %c0_26] : memref<9x128x128xf32, #tpu.memory_space<vmem>>, vector<1x128x128xf32>
    %47 = vector.shape_cast %46 : vector<1x128x128xf32> to vector<128x128xf32>
    %cst_27 = arith.constant dense<0.000000e+00> : vector<256x128xf32>
    %48 = tpu.matmul %45, %47, %cst_27 {dimension_numbers = #tpu.dot_dimension_numbers<[1], [0], [0], [1], [0, 0, 1, 1], [], []>} : vector<256x128xf32>, vector<128x128xf32>, vector<256x128xf32> -> vector<256x128xf32>
    %49 = arith.addf %43, %48 : vector<256x128xf32>
    %50 = vector.extract_strided_slice %14 {offsets = [0, 2, 0, 0], sizes = [1, 16, 16, 128], strides = [1, 1, 1, 1]} : vector<1x18x18x128xf32> to vector<1x16x16x128xf32>
    %51 = vector.shape_cast %50 : vector<1x16x16x128xf32> to vector<256x128xf32>
    %c6 = arith.constant 6 : index
    %c0_28 = arith.constant 0 : index
    %c0_29 = arith.constant 0 : index
    %52 = vector.load %arg4[%c6, %c0_28, %c0_29] : memref<9x128x128xf32, #tpu.memory_space<vmem>>, vector<1x128x128xf32>
    %53 = vector.shape_cast %52 : vector<1x128x128xf32> to vector<128x128xf32>
    %cst_30 = arith.constant dense<0.000000e+00> : vector<256x128xf32>
    %54 = tpu.matmul %51, %53, %cst_30 {dimension_numbers = #tpu.dot_dimension_numbers<[1], [0], [0], [1], [0, 0, 1, 1], [], []>} : vector<256x128xf32>, vector<128x128xf32>, vector<256x128xf32> -> vector<256x128xf32>
    %55 = arith.addf %49, %54 : vector<256x128xf32>
    %56 = vector.extract_strided_slice %14 {offsets = [0, 2, 1, 0], sizes = [1, 16, 16, 128], strides = [1, 1, 1, 1]} : vector<1x18x18x128xf32> to vector<1x16x16x128xf32>
    %57 = vector.shape_cast %56 : vector<1x16x16x128xf32> to vector<256x128xf32>
    %c7 = arith.constant 7 : index
    %c0_31 = arith.constant 0 : index
    %c0_32 = arith.constant 0 : index
    %58 = vector.load %arg4[%c7, %c0_31, %c0_32] : memref<9x128x128xf32, #tpu.memory_space<vmem>>, vector<1x128x128xf32>
    %59 = vector.shape_cast %58 : vector<1x128x128xf32> to vector<128x128xf32>
    %cst_33 = arith.constant dense<0.000000e+00> : vector<256x128xf32>
    %60 = tpu.matmul %57, %59, %cst_33 {dimension_numbers = #tpu.dot_dimension_numbers<[1], [0], [0], [1], [0, 0, 1, 1], [], []>} : vector<256x128xf32>, vector<128x128xf32>, vector<256x128xf32> -> vector<256x128xf32>
    %61 = arith.addf %55, %60 : vector<256x128xf32>
    %62 = vector.extract_strided_slice %14 {offsets = [0, 2, 2, 0], sizes = [1, 16, 16, 128], strides = [1, 1, 1, 1]} : vector<1x18x18x128xf32> to vector<1x16x16x128xf32>
    %63 = vector.shape_cast %62 : vector<1x16x16x128xf32> to vector<256x128xf32>
    %c8 = arith.constant 8 : index
    %c0_34 = arith.constant 0 : index
    %c0_35 = arith.constant 0 : index
    %64 = vector.load %arg4[%c8, %c0_34, %c0_35] : memref<9x128x128xf32, #tpu.memory_space<vmem>>, vector<1x128x128xf32>
    %65 = vector.shape_cast %64 : vector<1x128x128xf32> to vector<128x128xf32>
    %cst_36 = arith.constant dense<0.000000e+00> : vector<256x128xf32>
    %66 = tpu.matmul %63, %65, %cst_36 {dimension_numbers = #tpu.dot_dimension_numbers<[1], [0], [0], [1], [0, 0, 1, 1], [], []>} : vector<256x128xf32>, vector<128x128xf32>, vector<256x128xf32> -> vector<256x128xf32>
    %67 = arith.addf %61, %66 : vector<256x128xf32>
    %68 = vector.shape_cast %67 : vector<256x128xf32> to vector<1x16x16x128xf32>
    %c0_37 = arith.constant 0 : index
    %c0_38 = arith.constant 0 : index
    %c0_39 = arith.constant 0 : index
    %c0_40 = arith.constant 0 : index
    %69 = vector.load %arg5[%c0_37, %c0_38, %c0_39, %c0_40] : memref<1x16x16x128xf32, #tpu.memory_space<vmem>>, vector<1x16x16x128xf32>
    tpu.vector_store %arg5[%c0_37, %c0_38, %c0_39, %c0_40], %68 {strides = array<i32>} : memref<1x16x16x128xf32, #tpu.memory_space<vmem>>, vector<1x16x16x128xf32>,
    %cst_41 = arith.constant dense<0.000000e+00> : vector<128xf32>
    %70 = vector.multi_reduction <add>, %67, %cst_41 [0] : vector<256x128xf32> to vector<128xf32>
    %71 = vector.shape_cast %70 : vector<128xf32> to vector<1x128xf32>
    %72 = arith.mulf %67, %67 : vector<256x128xf32>
    %cst_42 = arith.constant dense<0.000000e+00> : vector<128xf32>
    %73 = vector.multi_reduction <add>, %72, %cst_42 [0] : vector<256x128xf32> to vector<128xf32>
    %74 = vector.shape_cast %73 : vector<128xf32> to vector<1x128xf32>
    %75 = tpu.concatenate %71, %74 in 0 : vector<1x128xf32>, vector<1x128xf32> -> vector<2x128xf32>
    %c0_43 = arith.constant 0 : index
    %c0_44 = arith.constant 0 : index
    %c0_45 = arith.constant 0 : index
    %76 = vector.load %arg6[%c0_43, %c0_44, %c0_45] : memref<1x2x128xf32, #tpu.memory_space<vmem>>, vector<1x2x128xf32>
    %77 = vector.shape_cast %76 : vector<1x2x128xf32> to vector<2x128xf32>
    %78 = vector.shape_cast %75 : vector<2x128xf32> to vector<1x2x128xf32>
    tpu.vector_store %arg6[%c0_43, %c0_44, %c0_45], %78 {strides = array<i32>} : memref<1x2x128xf32, #tpu.memory_space<vmem>>, vector<1x2x128xf32>,
    return
  }
  func.func @transform_0(%arg0: i32) -> (i32, i32, i32, i32) {
    %c0_i32 = arith.constant 0 : i32
    %c0_i32_0 = arith.constant 0 : i32
    %c0_i32_1 = arith.constant 0 : i32
    %c0_i32_2 = arith.constant 0 : i32
    return %arg0, %c0_i32, %c0_i32_0, %c0_i32_1 : i32, i32, i32, i32
  }
  func.func @transform_1(%arg0: i32) -> (i32, i32) {
    %c0_i32 = arith.constant 0 : i32
    %c0_i32_0 = arith.constant 0 : i32
    %c0_i32_1 = arith.constant 0 : i32
    return %c0_i32, %c0_i32_0 : i32, i32
  }
  func.func @transform_2(%arg0: i32) -> (i32, i32) {
    %c0_i32 = arith.constant 0 : i32
    %c0_i32_0 = arith.constant 0 : i32
    %c0_i32_1 = arith.constant 0 : i32
    return %c0_i32, %c0_i32_0 : i32, i32
  }
  func.func @transform_3(%arg0: i32) -> (i32, i32, i32) {
    %c0_i32 = arith.constant 0 : i32
    %c0_i32_0 = arith.constant 0 : i32
    %c0_i32_1 = arith.constant 0 : i32
    %c0_i32_2 = arith.constant 0 : i32
    return %c0_i32, %c0_i32_0, %c0_i32_1 : i32, i32, i32
  }
  func.func @transform_4(%arg0: i32) -> (i32, i32, i32, i32) {
    %c0_i32 = arith.constant 0 : i32
    %c0_i32_0 = arith.constant 0 : i32
    %c0_i32_1 = arith.constant 0 : i32
    %c0_i32_2 = arith.constant 0 : i32
    return %arg0, %c0_i32, %c0_i32_0, %c0_i32_1 : i32, i32, i32, i32
  }
  func.func @transform_5(%arg0: i32) -> (i32, i32, i32) {
    %c0_i32 = arith.constant 0 : i32
    %c0_i32_0 = arith.constant 0 : i32
    %c0_i32_1 = arith.constant 0 : i32
    return %arg0, %c0_i32, %c0_i32_0 : i32, i32, i32
  }
}

</mosaic_0001>

<llo_original>
// kernel: residual_block_nhwc.5
$region0: #{residual_block_nhwc.5}
  #allocation0 [shape = 'u32[]', space=smem, size = 0x4, offset = 0x4, fixed_abs, tag = 'smem constant byte address 0x4 - core index']
  #allocation1 [shape = 'u32[72,128]{1,0:T(1,128)}', space=vmem, size = 0x9000, scoped, tag = 'internal scratch']
  %s0 = inlined_call_operand.vmem [shape: f32[2,16,16,128], index: 0, kind: input, shape index: {}]
  %s1 = inlined_call_operand.vmem [shape: f32[2,16,16,128], index: 1, kind: input, shape index: {}]
  %s2 = inlined_call_operand.vmem [shape: f32[1,128], index: 2, kind: input, shape index: {}]
  %s3 = inlined_call_operand.vmem [shape: f32[1,128], index: 3, kind: input, shape index: {}]
  %s4 = inlined_call_operand.vmem [shape: f32[2,16,16,128], index: 4, kind: output, shape index: {}]
  %s5 = sld [smem:[#allocation0]]
  $region49: #{residual_block_nhwc.5} parent=0
    _
  %s7 = ssub.s32 1, %s5
  %s8 = scalar_select 0, %s7, %s5
  loop: start=0, step=1, limit=4
  $region2: #{residual_block_nhwc.5} parent=0 // loop_pre_header
    _
  $region3: #{residual_block_nhwc.5} parent=0 // loop_header
    %s10 = sphi 0, %s14
    %p11 = scmp.ge.s32.totalorder %s10, 4
    %s20 = sphi 0, %s22
    %s23 = sphi 0, %s20
    %s24 = sphi 0, %s23
    %s40 = sphi 0, %s24
    %s46 = sphi 0, %s48
    %s49 = sphi 0, %s46
    %s50 = sphi 0, %s49
    %s66 = sphi 0, %s50
    %s70 = sphi 0, %s70
    %s72 = sphi 0, %s70
    %s73 = sphi 0, %s72
    %s87 = sphi 0, %s73
    %s91 = sphi 0, %s91
    %s93 = sphi 0, %s91
    %s94 = sphi 0, %s93
    %s108 = sphi 0, %s94
    %s114 = sphi 0, %s116
    %s117 = sphi 0, %s114
    %s118 = sphi 0, %s117
    %s134 = sphi 0, %s118
  $region4: #{residual_block_nhwc.5} parent=0 // loop_header_branch
    %13 = sbr.rel (%p11) target = $region8
  $region5: #{residual_block_nhwc.5} parent=0 // loop_body
    %s15 = ssub.s32 %s10, 1
    %s16 = ssub.s32 %s10, 2
    %s17 = sadd.s32 %s10, 1
    %s18 = ssub.s32 %s10, %s17
    %p19 = scmp.eq.s32.totalorder %s18, 0
    %s21 = sadd.s32 %s20, 1
    %s22 = scalar_select %p19, %s20, %s21
    %p25 = pneg %p19
    %p26 = scmp.eq.s32.totalorder %s10, 1
    %p27 = por %p25, %p26
    %p28 = scmp.ne.s32.totalorder %s20, %s23
    %p29 = scmp.eq.s32.totalorder %s10, 0
    %p30 = por %p28, %p29
    %p31 = scmp.ne.s32.totalorder %s20, %s23
    %p32 = scmp.eq.s32.totalorder %s15, 1
    %p33 = por %p31, %p32
    %p34 = scmp.ne.s32.totalorder %s23, %s24
    %p35 = scmp.eq.s32.totalorder %s15, 0
    %p36 = por %p34, %p35
    %p37 = scmp.ne.s32.totalorder %s23, %s24
    %p38 = scmp.eq.s32.totalorder %s16, 1
    %p39 = por %p37, %p38
    %p41 = scmp.ne.s32.totalorder %s24, %s40
    %p42 = scmp.eq.s32.totalorder %s16, 0
    %p43 = por %p41, %p42
    %s44 = ssub.s32 %s10, %s17
    %p45 = scmp.eq.s32.totalorder %s44, 0
    %s47 = sadd.s32 %s46, 1
    %s48 = scalar_select %p45, %s46, %s47
    %p51 = pneg %p45
    %p52 = scmp.eq.s32.totalorder %s10, 1
    %p53 = por %p51, %p52
    %p54 = scmp.ne.s32.totalorder %s46, %s49
    %p55 = scmp.eq.s32.totalorder %s10, 0
    %p56 = por %p54, %p55
    %p57 = scmp.ne.s32.totalorder %s46, %s49
    %p58 = scmp.eq.s32.totalorder %s15, 1
    %p59 = por %p57, %p58
    %p60 = scmp.ne.s32.totalorder %s49, %s50
    %p61 = scmp.eq.s32.totalorder %s15, 0
    %p62 = por %p60, %p61
    %p63 = scmp.ne.s32.totalorder %s49, %s50
    %p64 = scmp.eq.s32.totalorder %s16, 1
    %p65 = por %p63, %p64
    %p67 = scmp.ne.s32.totalorder %s50, %s66
    %p68 = scmp.eq.s32.totalorder %s16, 0
    %p69 = por %p67, %p68
    %s71 = sadd.s32 %s70, 1
    %p74 = scmp.eq.s32.totalorder %s10, 1
    %p75 = scmp.ne.s32.totalorder %s70, %s72
    %p76 = scmp.eq.s32.totalorder %s10, 0
    %p77 = por %p75, %p76
    %p78 = scmp.ne.s32.totalorder %s70, %s72
    %p79 = scmp.eq.s32.totalorder %s15, 1
    %p80 = por %p78, %p79
    %p81 = scmp.ne.s32.totalorder %s72, %s73
    %p82 = scmp.eq.s32.totalorder %s15, 0
    %p83 = por %p81, %p82
    %p84 = scmp.ne.s32.totalorder %s72, %s73
    %p85 = scmp.eq.s32.totalorder %s16, 1
    %p86 = por %p84, %p85
    %p88 = scmp.ne.s32.totalorder %s73, %s87
    %p89 = scmp.eq.s32.totalorder %s16, 0
    %p90 = por %p88, %p89
    %s92 = sadd.s32 %s91, 1
    %p95 = scmp.eq.s32.totalorder %s10, 1
    %p96 = scmp.ne.s32.totalorder %s91, %s93
    %p97 = scmp.eq.s32.totalorder %s10, 0
    %p98 = por %p96, %p97
    %p99 = scmp.ne.s32.totalorder %s91, %s93
    %p100 = scmp.eq.s32.totalorder %s15, 1
    %p101 = por %p99, %p100
    %p102 = scmp.ne.s32.totalorder %s93, %s94
    %p103 = scmp.eq.s32.totalorder %s15, 0
    %p104 = por %p102, %p103
    %p105 = scmp.ne.s32.totalorder %s93, %s94
    %p106 = scmp.eq.s32.totalorder %s16, 1
    %p107 = por %p105, %p106
    %p109 = scmp.ne.s32.totalorder %s94, %s108
    %p110 = scmp.eq.s32.totalorder %s16, 0
    %p111 = por %p109, %p110
    %s112 = ssub.s32 %s10, %s17
    %p113 = scmp.eq.s32.totalorder %s112, 0
    %s115 = sadd.s32 %s114, 1
    %s116 = scalar_select %p113, %s114, %s115
    %p119 = pneg %p113
    %p120 = scmp.eq.s32.totalorder %s10, 1
    %p121 = por %p119, %p120
    %p122 = scmp.ne.s32.totalorder %s114, %s117
    %p123 = scmp.eq.s32.totalorder %s10, 0
    %p124 = por %p122, %p123
    %p125 = scmp.ne.s32.totalorder %s114, %s117
    %p126 = scmp.eq.s32.totalorder %s15, 1
    %p127 = por %p125, %p126
    %p128 = scmp.ne.s32.totalorder %s117, %s118
    %p129 = scmp.eq.s32.totalorder %s15, 0
    %p130 = por %p128, %p129
    %p131 = scmp.ne.s32.totalorder %s117, %s118
    %p132 = scmp.eq.s32.totalorder %s16, 1
    %p133 = por %p131, %p132
    %p135 = scmp.ne.s32.totalorder %s118, %s134
    %p136 = scmp.eq.s32.totalorder %s16, 0
    %p137 = por %p135, %p136
    %p138 = scmp.le.s32.totalorder 1, %s10
    %p139 = scmp.lt.s32.totalorder %s10, 3
    %p140 = pnand %p138, %p139
    %p141 = pneg %p140
    // Predicated region
    $region9: #{residual_block_nhwc.5} parent=5 // pred_check
      _
    $region10: #{residual_block_nhwc.5} parent=5 // pred_check_branch
      %143 = sbr.rel (%p140) target = $region12
    $region11: #{residual_block_nhwc.5} parent=5 // pred_region
      %s144 = ssub.s32 %s10, 1
      // Predicated region
      $region13: #{residual_block_nhwc.5} parent=11 // pred_check
        %p145 = pneg %p83
      $region14: #{residual_block_nhwc.5} parent=11 // pred_check_branch
        %147 = sbr.rel (%p145) target = $region16
      $region15: #{residual_block_nhwc.5} parent=11 // pred_region
        _
      $region16: #{residual_block_nhwc.5} parent=11 // pred_fallthru
        _
      // Predicated region
      $region17: #{residual_block_nhwc.5} parent=11 // pred_check
        %p148 = pneg %p104
      $region18: #{residual_block_nhwc.5} parent=11 // pred_check_branch
        %150 = sbr.rel (%p148) target = $region20
      $region19: #{residual_block_nhwc.5} parent=11 // pred_region
        _
      $region20: #{residual_block_nhwc.5} parent=11 // pred_fallthru
        _
    $region12: #{residual_block_nhwc.5} parent=5 // pred_fallthru
      _
    %p151 = scmp.lt.s32.totalorder %s10, 2
    // Predicated region
    $region21: #{residual_block_nhwc.5} parent=5 // pred_check
      %p152 = pneg %p151
    $region22: #{residual_block_nhwc.5} parent=5 // pred_check_branch
      %154 = sbr.rel (%p152) target = $region24
    $region23: #{residual_block_nhwc.5} parent=5 // pred_region
      // Predicated region
      $region25: #{residual_block_nhwc.5} parent=23 // pred_check
        %p155 = pneg %p30
      $region26: #{residual_block_nhwc.5} parent=23 // pred_check_branch
        %157 = sbr.rel (%p155) target = $region28
      $region27: #{residual_block_nhwc.5} parent=23 // pred_region
        %p158 = scmp.lt.s32.totalorder %s10, 1
        %s159 = scalar_select %p158, %s10, 1
        %s160 = smul.addr %s159, 32
        %s161 = smul.addr %s160, 8
        %s162 = scalar_lea.vmem %s0, %s161
      $region28: #{residual_block_nhwc.5} parent=23 // pred_fallthru
        _
      // Predicated region
      $region29: #{residual_block_nhwc.5} parent=23 // pred_check
        %p163 = pneg %p56
      $region30: #{residual_block_nhwc.5} parent=23 // pred_check_branch
        %165 = sbr.rel (%p163) target = $region32
      $region31: #{residual_block_nhwc.5} parent=23 // pred_region
        %p166 = scmp.lt.s32.totalorder %s10, 1
        %s167 = scalar_select %p166, %s10, 1
        %s168 = smul.addr %s167, 32
        %s169 = smul.addr %s168, 8
        %s170 = scalar_lea.vmem %s1, %s169
      $region32: #{residual_block_nhwc.5} parent=23 // pred_fallthru
        _
    $region24: #{residual_block_nhwc.5} parent=5 // pred_fallthru
      _
    %p171 = scmp.le.s32.totalorder 1, %s10
    %p172 = scmp.lt.s32.totalorder %s10, 3
    %p173 = pnand %p171, %p172
    %p174 = pneg %p173
    // Predicated region
    $region33: #{residual_block_nhwc.5} parent=5 // pred_check
      _
    $region34: #{residual_block_nhwc.5} parent=5 // pred_check_branch
      %176 = sbr.rel (%p173) target = $region36
    $region35: #{residual_block_nhwc.5} parent=5 // pred_region
      %s177 = ssub.s32 %s10, 1
      %p178 = scmp.lt.s32.totalorder %s15, 1
      %s179 = scalar_select %p178, %s15, 1
      %s180 = smul.addr %s179, 32
      %s181 = smul.addr %s180, 8
      %s182 = scalar_lea.vmem %s0, %s181
      %p183 = pneg %p36
      %p184 = pneg %p33
      %p185 = scmp.lt.s32.totalorder %s15, 1
      %s186 = scalar_select %p185, %s15, 1
      %s187 = smul.addr %s186, 32
      %s188 = smul.addr %s187, 8
      %s189 = scalar_lea.vmem %s1, %s188
      %p190 = pneg %p62
      %p191 = pneg %p59
      %p192 = pneg %p83
      %p193 = pneg %p80
      %p194 = pneg %p104
      %p195 = pneg %p101
      %p196 = pneg %p130
      %p197 = pneg %p127
      %p198 = scmp.lt.s32.totalorder %s15, 1
      %s199 = scalar_select %p198, %s15, 1
      %s200 = smul.addr %s199, 32
      %s201 = smul.addr %s200, 8
      %s202 = scalar_lea.vmem %s4, %s201
      %p203 = scmp.lt.s32.totalorder %s15, 1
      %s204 = scalar_select %p203, %s15, 1
      %s205 = smul.addr %s204, 32
      %s206 = smul.addr %s205, 8
      %s207 = scalar_lea.vmem %s0, %s206
      %p208 = scmp.lt.s32.totalorder %s15, 1
      %s209 = scalar_select %p208, %s15, 1
      %s210 = smul.addr %s209, 32
      %s211 = smul.addr %s210, 8
      %s212 = scalar_lea.vmem %s1, %s211
      %p213 = scmp.lt.s32.totalorder %s15, 1
      %s214 = scalar_select %p213, %s15, 1
      %s215 = smul.addr %s214, 32
      %s216 = smul.addr %s215, 8
      %s217 = scalar_lea.vmem %s4, %s216
      %v218 = vld [vmem:[%s2] sm:$0x1]
      %v219 = vld [vmem:[%s3] sm:$0x1]
      %v220 = vld [vmem:[%s207] sm:$0xff]
      %v221 = vld [vmem:[%s207 + $0x8] sm:$0xff]
      %v222 = vld [vmem:[%s207 + $0x10] sm:$0xff]
      %v223 = vld [vmem:[%s207 + $0x18] sm:$0xff]
      %v224 = vld [vmem:[%s207 + $0x20] sm:$0xff]
      %v225 = vld [vmem:[%s207 + $0x28] sm:$0xff]
      %v226 = vld [vmem:[%s207 + $0x30] sm:$0xff]
      %v227 = vld [vmem:[%s207 + $0x38] sm:$0xff]
      %v228 = vld [vmem:[%s207 + $0x40] sm:$0xff]
      %v229 = vld [vmem:[%s207 + $0x48] sm:$0xff]
      %v230 = vld [vmem:[%s207 + $0x50] sm:$0xff]
      %v231 = vld [vmem:[%s207 + $0x58] sm:$0xff]
      %v232 = vld [vmem:[%s207 + $0x60] sm:$0xff]
      %v233 = vld [vmem:[%s207 + $0x68] sm:$0xff]
      %v234 = vld [vmem:[%s207 + $0x70] sm:$0xff]
      %v235 = vld [vmem:[%s207 + $0x78] sm:$0xff]
      %v236 = vld [vmem:[%s207 + $0x80] sm:$0xff]
      %v237 = vld [vmem:[%s207 + $0x88] sm:$0xff]
      %v238 = vld [vmem:[%s207 + $0x90] sm:$0xff]
      %v239 = vld [vmem:[%s207 + $0x98] sm:$0xff]
      %v240 = vld [vmem:[%s207 + $0xa0] sm:$0xff]
      %v241 = vld [vmem:[%s207 + $0xa8] sm:$0xff]
      %v242 = vld [vmem:[%s207 + $0xb0] sm:$0xff]
      %v243 = vld [vmem:[%s207 + $0xb8] sm:$0xff]
      %v244 = vld [vmem:[%s207 + $0xc0] sm:$0xff]
      %v245 = vld [vmem:[%s207 + $0xc8] sm:$0xff]
      %v246 = vld [vmem:[%s207 + $0xd0] sm:$0xff]
      %v247 = vld [vmem:[%s207 + $0xd8] sm:$0xff]
      %v248 = vld [vmem:[%s207 + $0xe0] sm:$0xff]
      %v249 = vld [vmem:[%s207 + $0xe8] sm:$0xff]
      %v250 = vld [vmem:[%s207 + $0xf0] sm:$0xff]
      %v251 = vld [vmem:[%s207 + $0xf8] sm:$0xff]
      %v253 = vperm.slane %v218, 0
      %v255 = vmul.f32 %v220, %v253
      %v256 = vmul.f32 %v221, %v253
      %v257 = vmul.f32 %v222, %v253
      %v258 = vmul.f32 %v223, %v253
      %v259 = vmul.f32 %v224, %v253
      %v260 = vmul.f32 %v225, %v253
      %v261 = vmul.f32 %v226, %v253
      %v262 = vmul.f32 %v227, %v253
      %v263 = vmul.f32 %v228, %v253
      %v264 = vmul.f32 %v229, %v253
      %v265 = vmul.f32 %v230, %v253
      %v266 = vmul.f32 %v231, %v253
      %v267 = vmul.f32 %v232, %v253
      %v268 = vmul.f32 %v233, %v253
      %v269 = vmul.f32 %v234, %v253
      %v270 = vmul.f32 %v235, %v253
      %v271 = vmul.f32 %v236, %v253
      %v272 = vmul.f32 %v237, %v253
      %v273 = vmul.f32 %v238, %v253
      %v274 = vmul.f32 %v239, %v253
      %v275 = vmul.f32 %v240, %v253
      %v276 = vmul.f32 %v241, %v253
      %v277 = vmul.f32 %v242, %v253
      %v278 = vmul.f32 %v243, %v253
      %v279 = vmul.f32 %v244, %v253
      %v280 = vmul.f32 %v245, %v253
      %v281 = vmul.f32 %v246, %v253
      %v282 = vmul.f32 %v247, %v253
      %v283 = vmul.f32 %v248, %v253
      %v284 = vmul.f32 %v249, %v253
      %v285 = vmul.f32 %v250, %v253
      %v286 = vmul.f32 %v251, %v253
      %v288 = vperm.slane %v219, 0
      %v290 = vadd.f32 %v255, %v288
      %v291 = vadd.f32 %v256, %v288
      %v292 = vadd.f32 %v257, %v288
      %v293 = vadd.f32 %v258, %v288
      %v294 = vadd.f32 %v259, %v288
      %v295 = vadd.f32 %v260, %v288
      %v296 = vadd.f32 %v261, %v288
      %v297 = vadd.f32 %v262, %v288
      %v298 = vadd.f32 %v263, %v288
      %v299 = vadd.f32 %v264, %v288
      %v300 = vadd.f32 %v265, %v288
      %v301 = vadd.f32 %v266, %v288
      %v302 = vadd.f32 %v267, %v288
      %v303 = vadd.f32 %v268, %v288
      %v304 = vadd.f32 %v269, %v288
      %v305 = vadd.f32 %v270, %v288
      %v306 = vadd.f32 %v271, %v288
      %v307 = vadd.f32 %v272, %v288
      %v308 = vadd.f32 %v273, %v288
      %v309 = vadd.f32 %v274, %v288
      %v310 = vadd.f32 %v275, %v288
      %v311 = vadd.f32 %v276, %v288
      %v312 = vadd.f32 %v277, %v288
      %v313 = vadd.f32 %v278, %v288
      %v314 = vadd.f32 %v279, %v288
      %v315 = vadd.f32 %v280, %v288
      %v316 = vadd.f32 %v281, %v288
      %v317 = vadd.f32 %v282, %v288
      %v318 = vadd.f32 %v283, %v288
      %v319 = vadd.f32 %v284, %v288
      %v320 = vadd.f32 %v285, %v288
      %v321 = vadd.f32 %v286, %v288
      %v322 = vld [vmem:[%s212] sm:$0xff]
      %v323 = vld [vmem:[%s212 + $0x8] sm:$0xff]
      %v324 = vld [vmem:[%s212 + $0x10] sm:$0xff]
      %v325 = vld [vmem:[%s212 + $0x18] sm:$0xff]
      %v326 = vld [vmem:[%s212 + $0x20] sm:$0xff]
      %v327 = vld [vmem:[%s212 + $0x28] sm:$0xff]
      %v328 = vld [vmem:[%s212 + $0x30] sm:$0xff]
      %v329 = vld [vmem:[%s212 + $0x38] sm:$0xff]
      %v330 = vld [vmem:[%s212 + $0x40] sm:$0xff]
      %v331 = vld [vmem:[%s212 + $0x48] sm:$0xff]
      %v332 = vld [vmem:[%s212 + $0x50] sm:$0xff]
      %v333 = vld [vmem:[%s212 + $0x58] sm:$0xff]
      %v334 = vld [vmem:[%s212 + $0x60] sm:$0xff]
      %v335 = vld [vmem:[%s212 + $0x68] sm:$0xff]
      %v336 = vld [vmem:[%s212 + $0x70] sm:$0xff]
      %v337 = vld [vmem:[%s212 + $0x78] sm:$0xff]
      %v338 = vld [vmem:[%s212 + $0x80] sm:$0xff]
      %v339 = vld [vmem:[%s212 + $0x88] sm:$0xff]
      %v340 = vld [vmem:[%s212 + $0x90] sm:$0xff]
      %v341 = vld [vmem:[%s212 + $0x98] sm:$0xff]
      %v342 = vld [vmem:[%s212 + $0xa0] sm:$0xff]
      %v343 = vld [vmem:[%s212 + $0xa8] sm:$0xff]
      %v344 = vld [vmem:[%s212 + $0xb0] sm:$0xff]
      %v345 = vld [vmem:[%s212 + $0xb8] sm:$0xff]
      %v346 = vld [vmem:[%s212 + $0xc0] sm:$0xff]
      %v347 = vld [vmem:[%s212 + $0xc8] sm:$0xff]
      %v348 = vld [vmem:[%s212 + $0xd0] sm:$0xff]
      %v349 = vld [vmem:[%s212 + $0xd8] sm:$0xff]
      %v350 = vld [vmem:[%s212 + $0xe0] sm:$0xff]
      %v351 = vld [vmem:[%s212 + $0xe8] sm:$0xff]
      %v352 = vld [vmem:[%s212 + $0xf0] sm:$0xff]
      %v353 = vld [vmem:[%s212 + $0xf8] sm:$0xff]
      %v354 = vadd.f32 %v290, %v322
      %v355 = vadd.f32 %v291, %v323
      %v356 = vadd.f32 %v292, %v324
      %v357 = vadd.f32 %v293, %v325
      %v358 = vadd.f32 %v294, %v326
      %v359 = vadd.f32 %v295, %v327
      %v360 = vadd.f32 %v296, %v328
      %v361 = vadd.f32 %v297, %v329
      %v362 = vadd.f32 %v298, %v330
      %v363 = vadd.f32 %v299, %v331
      %v364 = vadd.f32 %v300, %v332
      %v365 = vadd.f32 %v301, %v333
      %v366 = vadd.f32 %v302, %v334
      %v367 = vadd.f32 %v303, %v335
      %v368 = vadd.f32 %v304, %v336
      %v369 = vadd.f32 %v305, %v337
      %v370 = vadd.f32 %v306, %v338
      %v371 = vadd.f32 %v307, %v339
      %v372 = vadd.f32 %v308, %v340
      %v373 = vadd.f32 %v309, %v341
      %v374 = vadd.f32 %v310, %v342
      %v375 = vadd.f32 %v311, %v343
      %v376 = vadd.f32 %v312, %v344
      %v377 = vadd.f32 %v313, %v345
      %v378 = vadd.f32 %v314, %v346
      %v379 = vadd.f32 %v315, %v347
      %v380 = vadd.f32 %v316, %v348
      %v381 = vadd.f32 %v317, %v349
      %v382 = vadd.f32 %v318, %v350
      %v383 = vadd.f32 %v319, %v351
      %v384 = vadd.f32 %v320, %v352
      %v385 = vadd.f32 %v321, %v353
      %v386 = vmax.f32 %v354, 0.0
      %v387 = vmax.f32 %v355, 0.0
      %v388 = vmax.f32 %v356, 0.0
      %v389 = vmax.f32 %v357, 0.0
      %v390 = vmax.f32 %v358, 0.0
      %v391 = vmax.f32 %v359, 0.0
      %v392 = vmax.f32 %v360, 0.0
      %v393 = vmax.f32 %v361, 0.0
      %v394 = vmax.f32 %v362, 0.0
      %v395 = vmax.f32 %v363, 0.0
      %v396 = vmax.f32 %v364, 0.0
      %v397 = vmax.f32 %v365, 0.0
      %v398 = vmax.f32 %v366, 0.0
      %v399 = vmax.f32 %v367, 0.0
      %v400 = vmax.f32 %v368, 0.0
      %v401 = vmax.f32 %v369, 0.0
      %v402 = vmax.f32 %v370, 0.0
      %v403 = vmax.f32 %v371, 0.0
      %v404 = vmax.f32 %v372, 0.0
      %v405 = vmax.f32 %v373, 0.0
      %v406 = vmax.f32 %v374, 0.0
      %v407 = vmax.f32 %v375, 0.0
      %v408 = vmax.f32 %v376, 0.0
      %v409 = vmax.f32 %v377, 0.0
      %v410 = vmax.f32 %v378, 0.0
      %v411 = vmax.f32 %v379, 0.0
      %v412 = vmax.f32 %v380, 0.0
      %v413 = vmax.f32 %v381, 0.0
      %v414 = vmax.f32 %v382, 0.0
      %v415 = vmax.f32 %v383, 0.0
      %v416 = vmax.f32 %v384, 0.0
      %v417 = vmax.f32 %v385, 0.0
      %418 = vst [vmem:[%s217] sm:$0xff] %v386
      %419 = vst [vmem:[%s217 + $0x8] sm:$0xff] %v387
      %420 = vst [vmem:[%s217 + $0x10] sm:$0xff] %v388
      %421 = vst [vmem:[%s217 + $0x18] sm:$0xff] %v389
      %422 = vst [vmem:[%s217 + $0x20] sm:$0xff] %v390
      %423 = vst [vmem:[%s217 + $0x28] sm:$0xff] %v391
      %424 = vst [vmem:[%s217 + $0x30] sm:$0xff] %v392
      %425 = vst [vmem:[%s217 + $0x38] sm:$0xff] %v393
      %426 = vst [vmem:[%s217 + $0x40] sm:$0xff] %v394
      %427 = vst [vmem:[%s217 + $0x48] sm:$0xff] %v395
      %428 = vst [vmem:[%s217 + $0x50] sm:$0xff] %v396
      %429 = vst [vmem:[%s217 + $0x58] sm:$0xff] %v397
      %430 = vst [vmem:[%s217 + $0x60] sm:$0xff] %v398
      %431 = vst [vmem:[%s217 + $0x68] sm:$0xff] %v399
      %432 = vst [vmem:[%s217 + $0x70] sm:$0xff] %v400
      %433 = vst [vmem:[%s217 + $0x78] sm:$0xff] %v401
      %434 = vst [vmem:[%s217 + $0x80] sm:$0xff] %v402
      %435 = vst [vmem:[%s217 + $0x88] sm:$0xff] %v403
      %436 = vst [vmem:[%s217 + $0x90] sm:$0xff] %v404
      %437 = vst [vmem:[%s217 + $0x98] sm:$0xff] %v405
      %438 = vst [vmem:[%s217 + $0xa0] sm:$0xff] %v406
      %439 = vst [vmem:[%s217 + $0xa8] sm:$0xff] %v407
      %440 = vst [vmem:[%s217 + $0xb0] sm:$0xff] %v408
      %441 = vst [vmem:[%s217 + $0xb8] sm:$0xff] %v409
      %442 = vst [vmem:[%s217 + $0xc0] sm:$0xff] %v410
      %443 = vst [vmem:[%s217 + $0xc8] sm:$0xff] %v411
      %444 = vst [vmem:[%s217 + $0xd0] sm:$0xff] %v412
      %445 = vst [vmem:[%s217 + $0xd8] sm:$0xff] %v413
      %446 = vst [vmem:[%s217 + $0xe0] sm:$0xff] %v414
      %447 = vst [vmem:[%s217 + $0xe8] sm:$0xff] %v415
      %448 = vst [vmem:[%s217 + $0xf0] sm:$0xff] %v416
      %449 = vst [vmem:[%s217 + $0xf8] sm:$0xff] %v417
      %p450 = scmp.lt.s32.totalorder %s15, 1
      %s451 = scalar_select %p450, %s15, 1
      %s452 = smul.addr %s451, 32
      %s453 = smul.addr %s452, 8
      %s454 = scalar_lea.vmem %s4, %s453
      // Predicated region
      $region37: #{residual_block_nhwc.5} parent=35 // pred_check
        %p455 = pneg %p127
      $region38: #{residual_block_nhwc.5} parent=35 // pred_check_branch
        %457 = sbr.rel (%p455) target = $region40
      $region39: #{residual_block_nhwc.5} parent=35 // pred_region
        _
      $region40: #{residual_block_nhwc.5} parent=35 // pred_fallthru
        _
    $region36: #{residual_block_nhwc.5} parent=5 // pred_fallthru
      _
    %p458 = scmp.le.s32.totalorder 2, %s10
    // Predicated region
    $region41: #{residual_block_nhwc.5} parent=5 // pred_check
      %p459 = pneg %p458
    $region42: #{residual_block_nhwc.5} parent=5 // pred_check_branch
      %461 = sbr.rel (%p459) target = $region44
    $region43: #{residual_block_nhwc.5} parent=5 // pred_region
      %s462 = ssub.s32 %s10, 2
      // Predicated region
      $region45: #{residual_block_nhwc.5} parent=43 // pred_check
        %p463 = pneg %p133
      $region46: #{residual_block_nhwc.5} parent=43 // pred_check_branch
        %465 = sbr.rel (%p463) target = $region48
      $region47: #{residual_block_nhwc.5} parent=43 // pred_region
        %p466 = scmp.lt.s32.totalorder %s16, 1
        %s467 = scalar_select %p466, %s16, 1
        %s468 = smul.addr %s467, 32
        %s469 = smul.addr %s468, 8
        %s470 = scalar_lea.vmem %s4, %s469
      $region48: #{residual_block_nhwc.5} parent=43 // pred_fallthru
        _
    $region44: #{residual_block_nhwc.5} parent=5 // pred_fallthru
      _
  $region6: #{residual_block_nhwc.5} parent=0 // loop_footer
    %s14 = sadd.s32 1, %s10
  $region7: #{residual_block_nhwc.5} parent=0 // loop_footer_branch
    %9 = sbr.rel target = $region3
  $region8: #{residual_block_nhwc.5} parent=0 // loop_exit
    _

// kernel: residual_block_nhwc.3
$region0: #{residual_block_nhwc.3}
  #allocation0 [shape = 'u32[]', space=smem, size = 0x4, offset = 0x4, fixed_abs, tag = 'smem constant byte address 0x4 - core index']
  #allocation1 [shape = 'u32[72,128]{1,0:T(1,128)}', space=vmem, size = 0x9000, scoped, tag = 'internal scratch']
  %s0 = inlined_call_operand.vmem [shape: f32[2,16,16,128], index: 0, kind: input, shape index: {}]
  %s1 = inlined_call_operand.vmem [shape: f32[9,128,128], index: 1, kind: input, shape index: {}]
  %s2 = inlined_call_operand.vmem [shape: f32[2,16,16,128], index: 2, kind: output, shape index: {0}]
  %s3 = inlined_call_operand.vmem [shape: f32[2,2,128], index: 3, kind: output, shape index: {1}]
  %4 = xla_tuple %s2, %s3
  %s5 = sld [smem:[#allocation0]]
  $region49: #{residual_block_nhwc.3} parent=0
    _
  %s7 = ssub.s32 1, %s5
  %s8 = scalar_select 0, %s7, %s5
  loop: start=0, step=1, limit=4
  $region2: #{residual_block_nhwc.3} parent=0 // loop_pre_header
    _
  $region3: #{residual_block_nhwc.3} parent=0 // loop_header
    %s10 = sphi 0, %s14
    %p11 = scmp.ge.s32.totalorder %s10, 4
    %s20 = sphi 0, %s22
    %s23 = sphi 0, %s20
    %s24 = sphi 0, %s23
    %s40 = sphi 0, %s24
    %s44 = sphi 0, %s44
    %s46 = sphi 0, %s44
    %s47 = sphi 0, %s46
    %s61 = sphi 0, %s47
    %s67 = sphi 0, %s69
    %s70 = sphi 0, %s67
    %s71 = sphi 0, %s70
    %s87 = sphi 0, %s71
    %s93 = sphi 0, %s95
    %s96 = sphi 0, %s93
    %s97 = sphi 0, %s96
    %s113 = sphi 0, %s97
  $region4: #{residual_block_nhwc.3} parent=0 // loop_header_branch
    %13 = sbr.rel (%p11) target = $region8
  $region5: #{residual_block_nhwc.3} parent=0 // loop_body
    %s15 = ssub.s32 %s10, 1
    %s16 = ssub.s32 %s10, 2
    %s17 = sadd.s32 %s10, 1
    %s18 = ssub.s32 %s10, %s17
    %p19 = scmp.eq.s32.totalorder %s18, 0
    %s21 = sadd.s32 %s20, 1
    %s22 = scalar_select %p19, %s20, %s21
    %p25 = pneg %p19
    %p26 = scmp.eq.s32.totalorder %s10, 1
    %p27 = por %p25, %p26
    %p28 = scmp.ne.s32.totalorder %s20, %s23
    %p29 = scmp.eq.s32.totalorder %s10, 0
    %p30 = por %p28, %p29
    %p31 = scmp.ne.s32.totalorder %s20, %s23
    %p32 = scmp.eq.s32.totalorder %s15, 1
    %p33 = por %p31, %p32
    %p34 = scmp.ne.s32.totalorder %s23, %s24
    %p35 = scmp.eq.s32.totalorder %s15, 0
    %p36 = por %p34, %p35
    %p37 = scmp.ne.s32.totalorder %s23, %s24
    %p38 = scmp.eq.s32.totalorder %s16, 1
    %p39 = por %p37, %p38
    %p41 = scmp.ne.s32.totalorder %s24, %s40
    %p42 = scmp.eq.s32.totalorder %s16, 0
    %p43 = por %p41, %p42
    %s45 = sadd.s32 %s44, 1
    %p48 = scmp.eq.s32.totalorder %s10, 1
    %p49 = scmp.ne.s32.totalorder %s44, %s46
    %p50 = scmp.eq.s32.totalorder %s10, 0
    %p51 = por %p49, %p50
    %p52 = scmp.ne.s32.totalorder %s44, %s46
    %p53 = scmp.eq.s32.totalorder %s15, 1
    %p54 = por %p52, %p53
    %p55 = scmp.ne.s32.totalorder %s46, %s47
    %p56 = scmp.eq.s32.totalorder %s15, 0
    %p57 = por %p55, %p56
    %p58 = scmp.ne.s32.totalorder %s46, %s47
    %p59 = scmp.eq.s32.totalorder %s16, 1
    %p60 = por %p58, %p59
    %p62 = scmp.ne.s32.totalorder %s47, %s61
    %p63 = scmp.eq.s32.totalorder %s16, 0
    %p64 = por %p62, %p63
    %s65 = ssub.s32 %s10, %s17
    %p66 = scmp.eq.s32.totalorder %s65, 0
    %s68 = sadd.s32 %s67, 1
    %s69 = scalar_select %p66, %s67, %s68
    %p72 = pneg %p66
    %p73 = scmp.eq.s32.totalorder %s10, 1
    %p74 = por %p72, %p73
    %p75 = scmp.ne.s32.totalorder %s67, %s70
    %p76 = scmp.eq.s32.totalorder %s10, 0
    %p77 = por %p75, %p76
    %p78 = scmp.ne.s32.totalorder %s67, %s70
    %p79 = scmp.eq.s32.totalorder %s15, 1
    %p80 = por %p78, %p79
    %p81 = scmp.ne.s32.totalorder %s70, %s71
    %p82 = scmp.eq.s32.totalorder %s15, 0
    %p83 = por %p81, %p82
    %p84 = scmp.ne.s32.totalorder %s70, %s71
    %p85 = scmp.eq.s32.totalorder %s16, 1
    %p86 = por %p84, %p85
    %p88 = scmp.ne.s32.totalorder %s71, %s87
    %p89 = scmp.eq.s32.totalorder %s16, 0
    %p90 = por %p88, %p89
    %s91 = ssub.s32 %s10, %s17
    %p92 = scmp.eq.s32.totalorder %s91, 0
    %s94 = sadd.s32 %s93, 1
    %s95 = scalar_select %p92, %s93, %s94
    %p98 = pneg %p92
    %p99 = scmp.eq.s32.totalorder %s10, 1
    %p100 = por %p98, %p99
    %p101 = scmp.ne.s32.totalorder %s93, %s96
    %p102 = scmp.eq.s32.totalorder %s10, 0
    %p103 = por %p101, %p102
    %p104 = scmp.ne.s32.totalorder %s93, %s96
    %p105 = scmp.eq.s32.totalorder %s15, 1
    %p106 = por %p104, %p105
    %p107 = scmp.ne.s32.totalorder %s96, %s97
    %p108 = scmp.eq.s32.totalorder %s15, 0
    %p109 = por %p107, %p108
    %p110 = scmp.ne.s32.totalorder %s96, %s97
    %p111 = scmp.eq.s32.totalorder %s16, 1
    %p112 = por %p110, %p111
    %p114 = scmp.ne.s32.totalorder %s97, %s113
    %p115 = scmp.eq.s32.totalorder %s16, 0
    %p116 = por %p114, %p115
    %p117 = scmp.le.s32.totalorder 1, %s10
    %p118 = scmp.lt.s32.totalorder %s10, 3
    %p119 = pnand %p117, %p118
    %p120 = pneg %p119
    // Predicated region
    $region9: #{residual_block_nhwc.3} parent=5 // pred_check
      _
    $region10: #{residual_block_nhwc.3} parent=5 // pred_check_branch
      %122 = sbr.rel (%p119) target = $region12
    $region11: #{residual_block_nhwc.3} parent=5 // pred_region
      %s123 = ssub.s32 %s10, 1
      // Predicated region
      $region13: #{residual_block_nhwc.3} parent=11 // pred_check
        %p124 = pneg %p57
      $region14: #{residual_block_nhwc.3} parent=11 // pred_check_branch
        %126 = sbr.rel (%p124) target = $region16
      $region15: #{residual_block_nhwc.3} parent=11 // pred_region
        _
      $region16: #{residual_block_nhwc.3} parent=11 // pred_fallthru
        _
    $region12: #{residual_block_nhwc.3} parent=5 // pred_fallthru
      _
    %p127 = scmp.lt.s32.totalorder %s10, 2
    // Predicated region
    $region17: #{residual_block_nhwc.3} parent=5 // pred_check
      %p128 = pneg %p127
    $region18: #{residual_block_nhwc.3} parent=5 // pred_check_branch
      %130 = sbr.rel (%p128) target = $region20
    $region19: #{residual_block_nhwc.3} parent=5 // pred_region
      // Predicated region
      $region21: #{residual_block_nhwc.3} parent=19 // pred_check
        %p131 = pneg %p30
      $region22: #{residual_block_nhwc.3} parent=19 // pred_check_branch
        %133 = sbr.rel (%p131) target = $region24
      $region23: #{residual_block_nhwc.3} parent=19 // pred_region
        %p134 = scmp.lt.s32.totalorder %s10, 1
        %s135 = scalar_select %p134, %s10, 1
        %s136 = smul.addr %s135, 32
        %s137 = smul.addr %s136, 8
        %s138 = scalar_lea.vmem %s0, %s137
      $region24: #{residual_block_nhwc.3} parent=19 // pred_fallthru
        _
    $region20: #{residual_block_nhwc.3} parent=5 // pred_fallthru
      _
    %p139 = scmp.le.s32.totalorder 1, %s10
    %p140 = scmp.lt.s32.totalorder %s10, 3
    %p141 = pnand %p139, %p140
    %p142 = pneg %p141
    // Predicated region
    $region25: #{residual_block_nhwc.3} parent=5 // pred_check
      _
    $region26: #{residual_block_nhwc.3} parent=5 // pred_check_branch
      %144 = sbr.rel (%p141) target = $region28
    $region27: #{residual_block_nhwc.3} parent=5 // pred_region
      %s145 = ssub.s32 %s10, 1
      %p146 = scmp.lt.s32.totalorder %s15, 1
      %s147 = scalar_select %p146, %s15, 1
      %s148 = smul.addr %s147, 32
      %s149 = smul.addr %s148, 8
      %s150 = scalar_lea.vmem %s0, %s149
      %p151 = pneg %p36
      %p152 = pneg %p33
      %p153 = pneg %p57
      %p154 = pneg %p54
      %p155 = pneg %p83
      %p156 = pneg %p80
      %p157 = scmp.lt.s32.totalorder %s15, 1
      %s158 = scalar_select %p157, %s15, 1
      %s159 = smul.addr %s158, 32
      %s160 = smul.addr %s159, 8
      %s161 = scalar_lea.vmem %s2, %s160
      %p162 = pneg %p109
      %p163 = pneg %p106
      %p164 = scmp.lt.s32.totalorder %s15, 1
      %s165 = scalar_select %p164, %s15, 1
      %s166 = smul.addr %s165, 2
      %s167 = scalar_lea.vmem %s3, %s166
      %p168 = scmp.lt.s32.totalorder %s15, 1
      %s169 = scalar_select %p168, %s15, 1
      %s170 = smul.addr %s169, 32
      %s171 = smul.addr %s170, 8
      %s172 = scalar_lea.vmem %s0, %s171
      %p173 = scmp.lt.s32.totalorder %s15, 1
      %s174 = scalar_select %p173, %s15, 1
      %s175 = smul.addr %s174, 32
      %s176 = smul.addr %s175, 8
      %s177 = scalar_lea.vmem %s2, %s176
      %p178 = scmp.lt.s32.totalorder %s15, 1
      %s179 = scalar_select %p178, %s15, 1
      %s180 = smul.addr %s179, 2
      %s181 = scalar_lea.vmem %s3, %s180
      %v182 = vld [vmem:[%s172] sm:$0xff]
      %v183 = vld [vmem:[%s172 + $0x8] sm:$0xff]
      %v184 = vld [vmem:[%s172 + $0x10] sm:$0xff]
      %v185 = vld [vmem:[%s172 + $0x18] sm:$0xff]
      %v186 = vld [vmem:[%s172 + $0x20] sm:$0xff]
      %v187 = vld [vmem:[%s172 + $0x28] sm:$0xff]
      %v188 = vld [vmem:[%s172 + $0x30] sm:$0xff]
      %v189 = vld [vmem:[%s172 + $0x38] sm:$0xff]
      %v190 = vld [vmem:[%s172 + $0x40] sm:$0xff]
      %v191 = vld [vmem:[%s172 + $0x48] sm:$0xff]
      %v192 = vld [vmem:[%s172 + $0x50] sm:$0xff]
      %v193 = vld [vmem:[%s172 + $0x58] sm:$0xff]
      %v194 = vld [vmem:[%s172 + $0x60] sm:$0xff]
      %v195 = vld [vmem:[%s172 + $0x68] sm:$0xff]
      %v196 = vld [vmem:[%s172 + $0x70] sm:$0xff]
      %v197 = vld [vmem:[%s172 + $0x78] sm:$0xff]
      %v198 = vld [vmem:[%s172 + $0x80] sm:$0xff]
      %v199 = vld [vmem:[%s172 + $0x88] sm:$0xff]
      %v200 = vld [vmem:[%s172 + $0x90] sm:$0xff]
      %v201 = vld [vmem:[%s172 + $0x98] sm:$0xff]
      %v202 = vld [vmem:[%s172 + $0xa0] sm:$0xff]
      %v203 = vld [vmem:[%s172 + $0xa8] sm:$0xff]
      %v204 = vld [vmem:[%s172 + $0xb0] sm:$0xff]
      %v205 = vld [vmem:[%s172 + $0xb8] sm:$0xff]
      %v206 = vld [vmem:[%s172 + $0xc0] sm:$0xff]
      %v207 = vld [vmem:[%s172 + $0xc8] sm:$0xff]
      %v208 = vld [vmem:[%s172 + $0xd0] sm:$0xff]
      %v209 = vld [vmem:[%s172 + $0xd8] sm:$0xff]
      %v210 = vld [vmem:[%s172 + $0xe0] sm:$0xff]
      %v211 = vld [vmem:[%s172 + $0xe8] sm:$0xff]
      %v212 = vld [vmem:[%s172 + $0xf0] sm:$0xff]
      %v213 = vld [vmem:[%s172 + $0xf8] sm:$0xff]
      %vm246 = vcmask 1040384
      %v247 = vrot.slane %v182, 7
      %v248 = vrot.slane %v183, 7
      %v249 = vsel %vm246, %v247, %v248
      %v250 = vrot.slane %v184, 7
      %v251 = vrot.slane %v185, 7
      %v252 = vsel %vm246, %v250, %v251
      %v253 = vrot.slane %v186, 7
      %v254 = vrot.slane %v187, 7
      %v255 = vsel %vm246, %v253, %v254
      %v256 = vrot.slane %v188, 7
      %v257 = vrot.slane %v189, 7
      %v258 = vsel %vm246, %v256, %v257
      %v259 = vrot.slane %v190, 7
      %v260 = vrot.slane %v191, 7
      %v261 = vsel %vm246, %v259, %v260
      %v262 = vrot.slane %v192, 7
      %v263 = vrot.slane %v193, 7
      %v264 = vsel %vm246, %v262, %v263
      %v265 = vrot.slane %v194, 7
      %v266 = vrot.slane %v195, 7
      %v267 = vsel %vm246, %v265, %v266
      %v268 = vrot.slane %v196, 7
      %v269 = vrot.slane %v197, 7
      %v270 = vsel %vm246, %v268, %v269
      %v271 = vrot.slane %v198, 7
      %v272 = vrot.slane %v199, 7
      %v273 = vsel %vm246, %v271, %v272
      %v274 = vrot.slane %v200, 7
      %v275 = vrot.slane %v201, 7
      %v276 = vsel %vm246, %v274, %v275
      %v277 = vrot.slane %v202, 7
      %v278 = vrot.slane %v203, 7
      %v279 = vsel %vm246, %v277, %v278
      %v280 = vrot.slane %v204, 7
      %v281 = vrot.slane %v205, 7
      %v282 = vsel %vm246, %v280, %v281
      %v283 = vrot.slane %v206, 7
      %v284 = vrot.slane %v207, 7
      %v285 = vsel %vm246, %v283, %v284
      %v286 = vrot.slane %v208, 7
      %v287 = vrot.slane %v209, 7
      %v288 = vsel %vm246, %v286, %v287
      %v289 = vrot.slane %v210, 7
      %v290 = vrot.slane %v211, 7
      %v291 = vsel %vm246, %v289, %v290
      %v292 = vrot.slane %v212, 7
      %v293 = vrot.slane %v213, 7
      %v294 = vsel %vm246, %v292, %v293
      %v343 = vsel %vm246, 0.0, %v247
      %v344 = vsel %vm246, 0.0, %v250
      %v345 = vsel %vm246, 0.0, %v253
      %v346 = vsel %vm246, 0.0, %v256
      %v347 = vsel %vm246, 0.0, %v259
      %v348 = vsel %vm246, 0.0, %v262
      %v349 = vsel %vm246, 0.0, %v265
      %v350 = vsel %vm246, 0.0, %v268
      %v351 = vsel %vm246, 0.0, %v271
      %v352 = vsel %vm246, 0.0, %v274
      %v353 = vsel %vm246, 0.0, %v277
      %v354 = vsel %vm246, 0.0, %v280
      %v355 = vsel %vm246, 0.0, %v283
      %v356 = vsel %vm246, 0.0, %v286
      %v357 = vsel %vm246, 0.0, %v289
      %v358 = vsel %vm246, 0.0, %v292
      %v359 = vsel %vm246, %v248, 0.0
      %v360 = vsel %vm246, %v251, 0.0
      %v361 = vsel %vm246, %v254, 0.0
      %v362 = vsel %vm246, %v257, 0.0
      %v363 = vsel %vm246, %v260, 0.0
      %v364 = vsel %vm246, %v263, 0.0
      %v365 = vsel %vm246, %v266, 0.0
      %v366 = vsel %vm246, %v269, 0.0
      %v367 = vsel %vm246, %v272, 0.0
      %v368 = vsel %vm246, %v275, 0.0
      %v369 = vsel %vm246, %v278, 0.0
      %v370 = vsel %vm246, %v281, 0.0
      %v371 = vsel %vm246, %v284, 0.0
      %v372 = vsel %vm246, %v287, 0.0
      %v373 = vsel %vm246, %v290, 0.0
      %v374 = vsel %vm246, %v293, 0.0
      %v375 = vld [vmem:[%s1] sm:$0xff]
      %v376 = vld [vmem:[%s1 + $0x8] sm:$0xff]
      %v377 = vld [vmem:[%s1 + $0x10] sm:$0xff]
      %v378 = vld [vmem:[%s1 + $0x18] sm:$0xff]
      %v379 = vld [vmem:[%s1 + $0x20] sm:$0xff]
      %v380 = vld [vmem:[%s1 + $0x28] sm:$0xff]
      %v381 = vld [vmem:[%s1 + $0x30] sm:$0xff]
      %v382 = vld [vmem:[%s1 + $0x38] sm:$0xff]
      %v383 = vld [vmem:[%s1 + $0x40] sm:$0xff]
      %v384 = vld [vmem:[%s1 + $0x48] sm:$0xff]
      %v385 = vld [vmem:[%s1 + $0x50] sm:$0xff]
      %v386 = vld [vmem:[%s1 + $0x58] sm:$0xff]
      %v387 = vld [vmem:[%s1 + $0x60] sm:$0xff]
      %v388 = vld [vmem:[%s1 + $0x68] sm:$0xff]
      %v389 = vld [vmem:[%s1 + $0x70] sm:$0xff]
      %v390 = vld [vmem:[%s1 + $0x78] sm:$0xff]
      %vm422 = vcmask 1046528
      %v423 = vrot.slane 0.0, 1
      %v424 = vsel %vm422, %v423, %v423
      %v425 = vrot.slane %v343, 1
      %v426 = vrot.slane %v249, 1
      %v427 = vsel %vm422, %v425, %v426
      %v428 = vrot.slane %v359, 1
      %v429 = vsel %vm422, %v426, %v428
      %v430 = vrot.slane %v344, 1
      %v431 = vrot.slane %v252, 1
      %v432 = vsel %vm422, %v430, %v431
      %v433 = vrot.slane %v360, 1
      %v434 = vsel %vm422, %v431, %v433
      %v435 = vrot.slane %v345, 1
      %v436 = vrot.slane %v255, 1
      %v437 = vsel %vm422, %v435, %v436
      %v438 = vrot.slane %v361, 1
      %v439 = vsel %vm422, %v436, %v438
      %v440 = vrot.slane %v346, 1
      %v441 = vrot.slane %v258, 1
      %v442 = vsel %vm422, %v440, %v441
      %v443 = vrot.slane %v362, 1
      %v444 = vsel %vm422, %v441, %v443
      %v445 = vrot.slane %v347, 1
      %v446 = vrot.slane %v261, 1
      %v447 = vsel %vm422, %v445, %v446
      %v448 = vrot.slane %v363, 1
      %v449 = vsel %vm422, %v446, %v448
      %v450 = vrot.slane %v348, 1
      %v451 = vrot.slane %v264, 1
      %v452 = vsel %vm422, %v450, %v451
      %v453 = vrot.slane %v364, 1
      %v454 = vsel %vm422, %v451, %v453
      %v455 = vrot.slane %v349, 1
      %v456 = vrot.slane %v267, 1
      %v457 = vsel %vm422, %v455, %v456
      %v458 = vrot.slane %v365, 1
      %v459 = vsel %vm422, %v456, %v458
      %v460 = vrot.slane %v350, 1
      %v461 = vrot.slane %v270, 1
      %v462 = vsel %vm422, %v460, %v461
      %v463 = vrot.slane %v366, 1
      %v464 = vsel %vm422, %v461, %v463
      %v465 = vrot.slane %v351, 1
      %v466 = vrot.slane %v273, 1
      %v467 = vsel %vm422, %v465, %v466
      %v468 = vrot.slane %v367, 1
      %v469 = vsel %vm422, %v466, %v468
      %v470 = vrot.slane %v352, 1
      %v471 = vrot.slane %v276, 1
      %v472 = vsel %vm422, %v470, %v471
      %v473 = vrot.slane %v368, 1
      %v474 = vsel %vm422, %v471, %v473
      %v475 = vrot.slane %v353, 1
      %v476 = vrot.slane %v279, 1
      %v477 = vsel %vm422, %v475, %v476
      %v478 = vrot.slane %v369, 1
      %v479 = vsel %vm422, %v476, %v478
      %v480 = vrot.slane %v354, 1
      %v481 = vrot.slane %v282, 1
      %v482 = vsel %vm422, %v480, %v481
      %v483 = vrot.slane %v370, 1
      %v484 = vsel %vm422, %v481, %v483
      %v485 = vrot.slane %v355, 1
      %v486 = vrot.slane %v285, 1
      %v487 = vsel %vm422, %v485, %v486
      %v488 = vrot.slane %v371, 1
      %v489 = vsel %vm422, %v486, %v488
      %v490 = vrot.slane %v356, 1
      %v491 = vrot.slane %v288, 1
      %v492 = vsel %vm422, %v490, %v491
      %v493 = vrot.slane %v372, 1
      %v494 = vsel %vm422, %v491, %v493
      %v495 = vrot.slane %v357, 1
      %v496 = vrot.slane %v291, 1
      %v497 = vsel %vm422, %v495, %v496
      %v498 = vrot.slane %v373, 1
      %v499 = vsel %vm422, %v496, %v498
      %s531 = scalar_lea.vmem %s1, 128
      %v532 = vld [vmem:[%s531] sm:$0xff]
      %v533 = vld [vmem:[%s531 + $0x8] sm:$0xff]
      %v534 = vld [vmem:[%s531 + $0x10] sm:$0xff]
      %v535 = vld [vmem:[%s531 + $0x18] sm:$0xff]
      %v536 = vld [vmem:[%s531 + $0x20] sm:$0xff]
      %v537 = vld [vmem:[%s531 + $0x28] sm:$0xff]
      %v538 = vld [vmem:[%s531 + $0x30] sm:$0xff]
      %v539 = vld [vmem:[%s531 + $0x38] sm:$0xff]
      %v540 = vld [vmem:[%s531 + $0x40] sm:$0xff]
      %v541 = vld [vmem:[%s531 + $0x48] sm:$0xff]
      %v542 = vld [vmem:[%s531 + $0x50] sm:$0xff]
      %v543 = vld [vmem:[%s531 + $0x58] sm:$0xff]
      %v544 = vld [vmem:[%s531 + $0x60] sm:$0xff]
      %v545 = vld [vmem:[%s531 + $0x68] sm:$0xff]
      %v546 = vld [vmem:[%s531 + $0x70] sm:$0xff]
      %v547 = vld [vmem:[%s531 + $0x78] sm:$0xff]
      %548 = vmatpush.msra.mxu0 %v547
      %549 = vmatpush.msra.mxu0 %v546
      %550 = vmatpush.msra.mxu0 %v545
      %551 = vmatpush.msra.mxu0 %v544
      %552 = vmatpush.msra.mxu0 %v543
      %553 = vmatpush.msra.mxu0 %v542
      %554 = vmatpush.msra.mxu0 %v541
      %555 = vmatpush.msra.mxu0 %v540
      %556 = vmatpush.msra.mxu0 %v539
      %557 = vmatpush.msra.mxu0 %v538
      %558 = vmatpush.msra.mxu0 %v537
      %559 = vmatpush.msra.mxu0 %v536
      %560 = vmatpush.msra.mxu0 %v535
      %561 = vmatpush.msra.mxu0 %v534
      %562 = vmatpush.msra.mxu0 %v533
      %563 = vmatpush.msra.mxu0 %v532
      %564 = vmatmul.f32.gmra.mxu0 %v424
      %v565 = vpop.f32.mrf.mxu0
      %v566 = vadd.f32 0.0, %v565
      %567 = vmatmul.f32.gmra.mxu0 %v424
      %v568 = vpop.f32.mrf.mxu0
      %v569 = vadd.f32 0.0, %v568
      %570 = vmatmul.f32.gmra.mxu0 %v427
      %v571 = vpop.f32.mrf.mxu0
      %v572 = vadd.f32 0.0, %v571
      %573 = vmatmul.f32.gmra.mxu0 %v429
      %v574 = vpop.f32.mrf.mxu0
      %v575 = vadd.f32 0.0, %v574
      %576 = vmatmul.f32.gmra.mxu0 %v432
      %v577 = vpop.f32.mrf.mxu0
      %v578 = vadd.f32 0.0, %v577
      %579 = vmatmul.f32.gmra.mxu0 %v434
      %v580 = vpop.f32.mrf.mxu0
      %v581 = vadd.f32 0.0, %v580
      %582 = vmatmul.f32.gmra.mxu0 %v437
      %v583 = vpop.f32.mrf.mxu0
      %v584 = vadd.f32 0.0, %v583
      %585 = vmatmul.f32.gmra.mxu0 %v439
      %v586 = vpop.f32.mrf.mxu0
      %v587 = vadd.f32 0.0, %v586
      %588 = vmatmul.f32.gmra.mxu0 %v442
      %v589 = vpop.f32.mrf.mxu0
      %v590 = vadd.f32 0.0, %v589
      %591 = vmatmul.f32.gmra.mxu0 %v444
      %v592 = vpop.f32.mrf.mxu0
      %v593 = vadd.f32 0.0, %v592
      %594 = vmatmul.f32.gmra.mxu0 %v447
      %v595 = vpop.f32.mrf.mxu0
      %v596 = vadd.f32 0.0, %v595
      %597 = vmatmul.f32.gmra.mxu0 %v449
      %v598 = vpop.f32.mrf.mxu0
      %v599 = vadd.f32 0.0, %v598
      %600 = vmatmul.f32.gmra.mxu0 %v452
      %v601 = vpop.f32.mrf.mxu0
      %v602 = vadd.f32 0.0, %v601
      %603 = vmatmul.f32.gmra.mxu0 %v454
      %v604 = vpop.f32.mrf.mxu0
      %v605 = vadd.f32 0.0, %v604
      %606 = vmatmul.f32.gmra.mxu0 %v457
      %v607 = vpop.f32.mrf.mxu0
      %v608 = vadd.f32 0.0, %v607
      %609 = vmatmul.f32.gmra.mxu0 %v459
      %v610 = vpop.f32.mrf.mxu0
      %v611 = vadd.f32 0.0, %v610
      %612 = vmatmul.f32.gmra.mxu0 %v462
      %v613 = vpop.f32.mrf.mxu0
      %v614 = vadd.f32 0.0, %v613
      %615 = vmatmul.f32.gmra.mxu0 %v464
      %v616 = vpop.f32.mrf.mxu0
      %v617 = vadd.f32 0.0, %v616
      %618 = vmatmul.f32.gmra.mxu0 %v467
      %v619 = vpop.f32.mrf.mxu0
      %v620 = vadd.f32 0.0, %v619
      %621 = vmatmul.f32.gmra.mxu0 %v469
      %v622 = vpop.f32.mrf.mxu0
      %v623 = vadd.f32 0.0, %v622
      %624 = vmatmul.f32.gmra.mxu0 %v472
      %v625 = vpop.f32.mrf.mxu0
      %v626 = vadd.f32 0.0, %v625
      %627 = vmatmul.f32.gmra.mxu0 %v474
      %v628 = vpop.f32.mrf.mxu0
      %v629 = vadd.f32 0.0, %v628
      %630 = vmatmul.f32.gmra.mxu0 %v477
      %v631 = vpop.f32.mrf.mxu0
      %v632 = vadd.f32 0.0, %v631
      %633 = vmatmul.f32.gmra.mxu0 %v479
      %v634 = vpop.f32.mrf.mxu0
      %v635 = vadd.f32 0.0, %v634
      %636 = vmatmul.f32.gmra.mxu0 %v482
      %v637 = vpop.f32.mrf.mxu0
      %v638 = vadd.f32 0.0, %v637
      %639 = vmatmul.f32.gmra.mxu0 %v484
      %v640 = vpop.f32.mrf.mxu0
      %v641 = vadd.f32 0.0, %v640
      %642 = vmatmul.f32.gmra.mxu0 %v487
      %v643 = vpop.f32.mrf.mxu0
      %v644 = vadd.f32 0.0, %v643
      %645 = vmatmul.f32.gmra.mxu0 %v489
      %v646 = vpop.f32.mrf.mxu0
      %v647 = vadd.f32 0.0, %v646
      %648 = vmatmul.f32.gmra.mxu0 %v492
      %v649 = vpop.f32.mrf.mxu0
      %v650 = vadd.f32 0.0, %v649
      %651 = vmatmul.f32.gmra.mxu0 %v494
      %v652 = vpop.f32.mrf.mxu0
      %v653 = vadd.f32 0.0, %v652
      %654 = vmatmul.f32.gmra.mxu0 %v497
      %v655 = vpop.f32.mrf.mxu0
      %v656 = vadd.f32 0.0, %v655
      %657 = vmatmul.f32.gmra.mxu0 %v499
      %v658 = vpop.f32.mrf.mxu0
      %v659 = vadd.f32 0.0, %v658
      %660 = vdwg.mxu0
      %661 = vmatpush.msra.mxu0 %v390
      %662 = vmatpush.msra.mxu0 %v389
      %663 = vmatpush.msra.mxu0 %v388
      %664 = vmatpush.msra.mxu0 %v387
      %665 = vmatpush.msra.mxu0 %v386
      %666 = vmatpush.msra.mxu0 %v385
      %667 = vmatpush.msra.mxu0 %v384
      %668 = vmatpush.msra.mxu0 %v383
      %669 = vmatpush.msra.mxu0 %v382
      %670 = vmatpush.msra.mxu0 %v381
      %671 = vmatpush.msra.mxu0 %v380
      %672 = vmatpush.msra.mxu0 %v379
      %673 = vmatpush.msra.mxu0 %v378
      %674 = vmatpush.msra.mxu0 %v377
      %675 = vmatpush.msra.mxu0 %v376
      %676 = vmatpush.msra.mxu0 %v375
      %677 = vmatmul.f32.gmra.mxu0 0.0
      %v678 = vpop.f32.mrf.mxu0
      %v679 = vadd.f32 %v566, %v678
      %680 = vmatmul.f32.gmra.mxu0 0.0
      %v681 = vpop.f32.mrf.mxu0
      %v682 = vadd.f32 %v569, %v681
      %683 = vmatmul.f32.gmra.mxu0 %v343
      %v684 = vpop.f32.mrf.mxu0
      %v685 = vadd.f32 %v572, %v684
      %686 = vmatmul.f32.gmra.mxu0 %v249
      %v687 = vpop.f32.mrf.mxu0
      %v688 = vadd.f32 %v575, %v687
      %689 = vmatmul.f32.gmra.mxu0 %v344
      %v690 = vpop.f32.mrf.mxu0
      %v691 = vadd.f32 %v578, %v690
      %692 = vmatmul.f32.gmra.mxu0 %v252
      %v693 = vpop.f32.mrf.mxu0
      %v694 = vadd.f32 %v581, %v693
      %695 = vmatmul.f32.gmra.mxu0 %v345
      %v696 = vpop.f32.mrf.mxu0
      %v697 = vadd.f32 %v584, %v696
      %698 = vmatmul.f32.gmra.mxu0 %v255
      %v699 = vpop.f32.mrf.mxu0
      %v700 = vadd.f32 %v587, %v699
      %701 = vmatmul.f32.gmra.mxu0 %v346
      %v702 = vpop.f32.mrf.mxu0
      %v703 = vadd.f32 %v590, %v702
      %704 = vmatmul.f32.gmra.mxu0 %v258
      %v705 = vpop.f32.mrf.mxu0
      %v706 = vadd.f32 %v593, %v705
      %707 = vmatmul.f32.gmra.mxu0 %v347
      %v708 = vpop.f32.mrf.mxu0
      %v709 = vadd.f32 %v596, %v708
      %710 = vmatmul.f32.gmra.mxu0 %v261
      %v711 = vpop.f32.mrf.mxu0
      %v712 = vadd.f32 %v599, %v711
      %713 = vmatmul.f32.gmra.mxu0 %v348
      %v714 = vpop.f32.mrf.mxu0
      %v715 = vadd.f32 %v602, %v714
      %716 = vmatmul.f32.gmra.mxu0 %v264
      %v717 = vpop.f32.mrf.mxu0
      %v718 = vadd.f32 %v605, %v717
      %719 = vmatmul.f32.gmra.mxu0 %v349
      %v720 = vpop.f32.mrf.mxu0
      %v721 = vadd.f32 %v608, %v720
      %722 = vmatmul.f32.gmra.mxu0 %v267
      %v723 = vpop.f32.mrf.mxu0
      %v724 = vadd.f32 %v611, %v723
      %725 = vmatmul.f32.gmra.mxu0 %v350
      %v726 = vpop.f32.mrf.mxu0
      %v727 = vadd.f32 %v614, %v726
      %728 = vmatmul.f32.gmra.mxu0 %v270
      %v729 = vpop.f32.mrf.mxu0
      %v730 = vadd.f32 %v617, %v729
      %731 = vmatmul.f32.gmra.mxu0 %v351
      %v732 = vpop.f32.mrf.mxu0
      %v733 = vadd.f32 %v620, %v732
      %734 = vmatmul.f32.gmra.mxu0 %v273
      %v735 = vpop.f32.mrf.mxu0
      %v736 = vadd.f32 %v623, %v735
      %737 = vmatmul.f32.gmra.mxu0 %v352
      %v738 = vpop.f32.mrf.mxu0
      %v739 = vadd.f32 %v626, %v738
      %740 = vmatmul.f32.gmra.mxu0 %v276
      %v741 = vpop.f32.mrf.mxu0
      %v742 = vadd.f32 %v629, %v741
      %743 = vmatmul.f32.gmra.mxu0 %v353
      %v744 = vpop.f32.mrf.mxu0
      %v745 = vadd.f32 %v632, %v744
      %746 = vmatmul.f32.gmra.mxu0 %v279
      %v747 = vpop.f32.mrf.mxu0
      %v748 = vadd.f32 %v635, %v747
      %749 = vmatmul.f32.gmra.mxu0 %v354
      %v750 = vpop.f32.mrf.mxu0
      %v751 = vadd.f32 %v638, %v750
      %752 = vmatmul.f32.gmra.mxu0 %v282
      %v753 = vpop.f32.mrf.mxu0
      %v754 = vadd.f32 %v641, %v753
      %755 = vmatmul.f32.gmra.mxu0 %v355
      %v756 = vpop.f32.mrf.mxu0
      %v757 = vadd.f32 %v644, %v756
      %758 = vmatmul.f32.gmra.mxu0 %v285
      %v759 = vpop.f32.mrf.mxu0
      %v760 = vadd.f32 %v647, %v759
      %761 = vmatmul.f32.gmra.mxu0 %v356
      %v762 = vpop.f32.mrf.mxu0
      %v763 = vadd.f32 %v650, %v762
      %764 = vmatmul.f32.gmra.mxu0 %v288
      %v765 = vpop.f32.mrf.mxu0
      %v766 = vadd.f32 %v653, %v765
      %767 = vmatmul.f32.gmra.mxu0 %v357
      %v768 = vpop.f32.mrf.mxu0
      %v769 = vadd.f32 %v656, %v768
      %770 = vmatmul.f32.gmra.mxu0 %v291
      %v771 = vpop.f32.mrf.mxu0
      %v772 = vadd.f32 %v659, %v771
      %773 = vdwg.mxu0
      %vm774 = vcmask 1045504
      %v775 = vrot.slane 0.0, 2
      %v776 = vsel %vm774, %v775, %v775
      %v777 = vrot.slane %v343, 2
      %v778 = vrot.slane %v249, 2
      %v779 = vsel %vm774, %v777, %v778
      %v780 = vrot.slane %v359, 2
      %v781 = vsel %vm774, %v778, %v780
      %v782 = vrot.slane %v344, 2
      %v783 = vrot.slane %v252, 2
      %v784 = vsel %vm774, %v782, %v783
      %v785 = vrot.slane %v360, 2
      %v786 = vsel %vm774, %v783, %v785
      %v787 = vrot.slane %v345, 2
      %v788 = vrot.slane %v255, 2
      %v789 = vsel %vm774, %v787, %v788
      %v790 = vrot.slane %v361, 2
      %v791 = vsel %vm774, %v788, %v790
      %v792 = vrot.slane %v346, 2
      %v793 = vrot.slane %v258, 2
      %v794 = vsel %vm774, %v792, %v793
      %v795 = vrot.slane %v362, 2
      %v796 = vsel %vm774, %v793, %v795
      %v797 = vrot.slane %v347, 2
      %v798 = vrot.slane %v261, 2
      %v799 = vsel %vm774, %v797, %v798
      %v800 = vrot.slane %v363, 2
      %v801 = vsel %vm774, %v798, %v800
      %v802 = vrot.slane %v348, 2
      %v803 = vrot.slane %v264, 2
      %v804 = vsel %vm774, %v802, %v803
      %v805 = vrot.slane %v364, 2
      %v806 = vsel %vm774, %v803, %v805
      %v807 = vrot.slane %v349, 2
      %v808 = vrot.slane %v267, 2
      %v809 = vsel %vm774, %v807, %v808
      %v810 = vrot.slane %v365, 2
      %v811 = vsel %vm774, %v808, %v810
      %v812 = vrot.slane %v350, 2
      %v813 = vrot.slane %v270, 2
      %v814 = vsel %vm774, %v812, %v813
      %v815 = vrot.slane %v366, 2
      %v816 = vsel %vm774, %v813, %v815
      %v817 = vrot.slane %v351, 2
      %v818 = vrot.slane %v273, 2
      %v819 = vsel %vm774, %v817, %v818
      %v820 = vrot.slane %v367, 2
      %v821 = vsel %vm774, %v818, %v820
      %v822 = vrot.slane %v352, 2
      %v823 = vrot.slane %v276, 2
      %v824 = vsel %vm774, %v822, %v823
      %v825 = vrot.slane %v368, 2
      %v826 = vsel %vm774, %v823, %v825
      %v827 = vrot.slane %v353, 2
      %v828 = vrot.slane %v279, 2
      %v829 = vsel %vm774, %v827, %v828
      %v830 = vrot.slane %v369, 2
      %v831 = vsel %vm774, %v828, %v830
      %v832 = vrot.slane %v354, 2
      %v833 = vrot.slane %v282, 2
      %v834 = vsel %vm774, %v832, %v833
      %v835 = vrot.slane %v370, 2
      %v836 = vsel %vm774, %v833, %v835
      %v837 = vrot.slane %v355, 2
      %v838 = vrot.slane %v285, 2
      %v839 = vsel %vm774, %v837, %v838
      %v840 = vrot.slane %v371, 2
      %v841 = vsel %vm774, %v838, %v840
      %v842 = vrot.slane %v356, 2
      %v843 = vrot.slane %v288, 2
      %v844 = vsel %vm774, %v842, %v843
      %v845 = vrot.slane %v372, 2
      %v846 = vsel %vm774, %v843, %v845
      %v847 = vrot.slane %v357, 2
      %v848 = vrot.slane %v291, 2
      %v849 = vsel %vm774, %v847, %v848
      %v850 = vrot.slane %v373, 2
      %v851 = vsel %vm774, %v848, %v850
      %s883 = scalar_lea.vmem %s1, 256
      %v884 = vld [vmem:[%s883] sm:$0xff]
      %v885 = vld [vmem:[%s883 + $0x8] sm:$0xff]
      %v886 = vld [vmem:[%s883 + $0x10] sm:$0xff]
      %v887 = vld [vmem:[%s883 + $0x18] sm:$0xff]
      %v888 = vld [vmem:[%s883 + $0x20] sm:$0xff]
      %v889 = vld [vmem:[%s883 + $0x28] sm:$0xff]
      %v890 = vld [vmem:[%s883 + $0x30] sm:$0xff]
      %v891 = vld [vmem:[%s883 + $0x38] sm:$0xff]
      %v892 = vld [vmem:[%s883 + $0x40] sm:$0xff]
      %v893 = vld [vmem:[%s883 + $0x48] sm:$0xff]
      %v894 = vld [vmem:[%s883 + $0x50] sm:$0xff]
      %v895 = vld [vmem:[%s883 + $0x58] sm:$0xff]
      %v896 = vld [vmem:[%s883 + $0x60] sm:$0xff]
      %v897 = vld [vmem:[%s883 + $0x68] sm:$0xff]
      %v898 = vld [vmem:[%s883 + $0x70] sm:$0xff]
      %v899 = vld [vmem:[%s883 + $0x78] sm:$0xff]
      %900 = vmatpush.msra.mxu0 %v899
      %901 = vmatpush.msra.mxu0 %v898
      %902 = vmatpush.msra.mxu0 %v897
      %903 = vmatpush.msra.mxu0 %v896
      %904 = vmatpush.msra.mxu0 %v895
      %905 = vmatpush.msra.mxu0 %v894
      %906 = vmatpush.msra.mxu0 %v893
      %907 = vmatpush.msra.mxu0 %v892
      %908 = vmatpush.msra.mxu0 %v891
      %909 = vmatpush.msra.mxu0 %v890
      %910 = vmatpush.msra.mxu0 %v889
      %911 = vmatpush.msra.mxu0 %v888
      %912 = vmatpush.msra.mxu0 %v887
      %913 = vmatpush.msra.mxu0 %v886
      %914 = vmatpush.msra.mxu0 %v885
      %915 = vmatpush.msra.mxu0 %v884
      %916 = vmatmul.f32.gmra.mxu0 %v776
      %v917 = vpop.f32.mrf.mxu0
      %v918 = vadd.f32 0.0, %v917
      %919 = vmatmul.f32.gmra.mxu0 %v776
      %v920 = vpop.f32.mrf.mxu0
      %v921 = vadd.f32 0.0, %v920
      %922 = vmatmul.f32.gmra.mxu0 %v779
      %v923 = vpop.f32.mrf.mxu0
      %v924 = vadd.f32 0.0, %v923
      %925 = vmatmul.f32.gmra.mxu0 %v781
      %v926 = vpop.f32.mrf.mxu0
      %v927 = vadd.f32 0.0, %v926
      %928 = vmatmul.f32.gmra.mxu0 %v784
      %v929 = vpop.f32.mrf.mxu0
      %v930 = vadd.f32 0.0, %v929
      %931 = vmatmul.f32.gmra.mxu0 %v786
      %v932 = vpop.f32.mrf.mxu0
      %v933 = vadd.f32 0.0, %v932
      %934 = vmatmul.f32.gmra.mxu0 %v789
      %v935 = vpop.f32.mrf.mxu0
      %v936 = vadd.f32 0.0, %v935
      %937 = vmatmul.f32.gmra.mxu0 %v791
      %v938 = vpop.f32.mrf.mxu0
      %v939 = vadd.f32 0.0, %v938
      %940 = vmatmul.f32.gmra.mxu0 %v794
      %v941 = vpop.f32.mrf.mxu0
      %v942 = vadd.f32 0.0, %v941
      %943 = vmatmul.f32.gmra.mxu0 %v796
      %v944 = vpop.f32.mrf.mxu0
      %v945 = vadd.f32 0.0, %v944
      %946 = vmatmul.f32.gmra.mxu0 %v799
      %v947 = vpop.f32.mrf.mxu0
      %v948 = vadd.f32 0.0, %v947
      %949 = vmatmul.f32.gmra.mxu0 %v801
      %v950 = vpop.f32.mrf.mxu0
      %v951 = vadd.f32 0.0, %v950
      %952 = vmatmul.f32.gmra.mxu0 %v804
      %v953 = vpop.f32.mrf.mxu0
      %v954 = vadd.f32 0.0, %v953
      %955 = vmatmul.f32.gmra.mxu0 %v806
      %v956 = vpop.f32.mrf.mxu0
      %v957 = vadd.f32 0.0, %v956
      %958 = vmatmul.f32.gmra.mxu0 %v809
      %v959 = vpop.f32.mrf.mxu0
      %v960 = vadd.f32 0.0, %v959
      %961 = vmatmul.f32.gmra.mxu0 %v811
      %v962 = vpop.f32.mrf.mxu0
      %v963 = vadd.f32 0.0, %v962
      %964 = vmatmul.f32.gmra.mxu0 %v814
      %v965 = vpop.f32.mrf.mxu0
      %v966 = vadd.f32 0.0, %v965
      %967 = vmatmul.f32.gmra.mxu0 %v816
      %v968 = vpop.f32.mrf.mxu0
      %v969 = vadd.f32 0.0, %v968
      %970 = vmatmul.f32.gmra.mxu0 %v819
      %v971 = vpop.f32.mrf.mxu0
      %v972 = vadd.f32 0.0, %v971
      %973 = vmatmul.f32.gmra.mxu0 %v821
      %v974 = vpop.f32.mrf.mxu0
      %v975 = vadd.f32 0.0, %v974
      %976 = vmatmul.f32.gmra.mxu0 %v824
      %v977 = vpop.f32.mrf.mxu0
      %v978 = vadd.f32 0.0, %v977
      %979 = vmatmul.f32.gmra.mxu0 %v826
      %v980 = vpop.f32.mrf.mxu0
      %v981 = vadd.f32 0.0, %v980
      %982 = vmatmul.f32.gmra.mxu0 %v829
      %v983 = vpop.f32.mrf.mxu0
      %v984 = vadd.f32 0.0, %v983
      %985 = vmatmul.f32.gmra.mxu0 %v831
      %v986 = vpop.f32.mrf.mxu0
      %v987 = vadd.f32 0.0, %v986
      %988 = vmatmul.f32.gmra.mxu0 %v834
      %v989 = vpop.f32.mrf.mxu0
      %v990 = vadd.f32 0.0, %v989
      %991 = vmatmul.f32.gmra.mxu0 %v836
      %v992 = vpop.f32.mrf.mxu0
      %v993 = vadd.f32 0.0, %v992
      %994 = vmatmul.f32.gmra.mxu0 %v839
      %v995 = vpop.f32.mrf.mxu0
      %v996 = vadd.f32 0.0, %v995
      %997 = vmatmul.f32.gmra.mxu0 %v841
      %v998 = vpop.f32.mrf.mxu0
      %v999 = vadd.f32 0.0, %v998
      %1000 = vmatmul.f32.gmra.mxu0 %v844
      %v1001 = vpop.f32.mrf.mxu0
      %v1002 = vadd.f32 0.0, %v1001
      %1003 = vmatmul.f32.gmra.mxu0 %v846
      %v1004 = vpop.f32.mrf.mxu0
      %v1005 = vadd.f32 0.0, %v1004
      %1006 = vmatmul.f32.gmra.mxu0 %v849
      %v1007 = vpop.f32.mrf.mxu0
      %v1008 = vadd.f32 0.0, %v1007
      %1009 = vmatmul.f32.gmra.mxu0 %v851
      %v1010 = vpop.f32.mrf.mxu0
      %v1011 = vadd.f32 0.0, %v1010
      %1012 = vdwg.mxu0
      %v1013 = vadd.f32 %v679, %v918
      %v1014 = vadd.f32 %v682, %v921
      %v1015 = vadd.f32 %v685, %v924
      %v1016 = vadd.f32 %v688, %v927
      %v1017 = vadd.f32 %v691, %v930
      %v1018 = vadd.f32 %v694, %v933
      %v1019 = vadd.f32 %v697, %v936
      %v1020 = vadd.f32 %v700, %v939
      %v1021 = vadd.f32 %v703, %v942
      %v1022 = vadd.f32 %v706, %v945
      %v1023 = vadd.f32 %v709, %v948
      %v1024 = vadd.f32 %v712, %v951
      %v1025 = vadd.f32 %v715, %v954
      %v1026 = vadd.f32 %v718, %v957
      %v1027 = vadd.f32 %v721, %v960
      %v1028 = vadd.f32 %v724, %v963
      %v1029 = vadd.f32 %v727, %v966
      %v1030 = vadd.f32 %v730, %v969
      %v1031 = vadd.f32 %v733, %v972
      %v1032 = vadd.f32 %v736, %v975
      %v1033 = vadd.f32 %v739, %v978
      %v1034 = vadd.f32 %v742, %v981
      %v1035 = vadd.f32 %v745, %v984
      %v1036 = vadd.f32 %v748, %v987
      %v1037 = vadd.f32 %v751, %v990
      %v1038 = vadd.f32 %v754, %v993
      %v1039 = vadd.f32 %v757, %v996
      %v1040 = vadd.f32 %v760, %v999
      %v1041 = vadd.f32 %v763, %v1002
      %v1042 = vadd.f32 %v766, %v1005
      %v1043 = vadd.f32 %v769, %v1008
      %v1044 = vadd.f32 %v772, %v1011
      %s1045 = scalar_lea.vmem %s1, 384
      %v1046 = vld [vmem:[%s1045] sm:$0xff]
      %v1047 = vld [vmem:[%s1045 + $0x8] sm:$0xff]
      %v1048 = vld [vmem:[%s1045 + $0x10] sm:$0xff]
      %v1049 = vld [vmem:[%s1045 + $0x18] sm:$0xff]
      %v1050 = vld [vmem:[%s1045 + $0x20] sm:$0xff]
      %v1051 = vld [vmem:[%s1045 + $0x28] sm:$0xff]
      %v1052 = vld [vmem:[%s1045 + $0x30] sm:$0xff]
      %v1053 = vld [vmem:[%s1045 + $0x38] sm:$0xff]
      %v1054 = vld [vmem:[%s1045 + $0x40] sm:$0xff]
      %v1055 = vld [vmem:[%s1045 + $0x48] sm:$0xff]
      %v1056 = vld [vmem:[%s1045 + $0x50] sm:$0xff]
      %v1057 = vld [vmem:[%s1045 + $0x58] sm:$0xff]
      %v1058 = vld [vmem:[%s1045 + $0x60] sm:$0xff]
      %v1059 = vld [vmem:[%s1045 + $0x68] sm:$0xff]
      %v1060 = vld [vmem:[%s1045 + $0x70] sm:$0xff]
      %v1061 = vld [vmem:[%s1045 + $0x78] sm:$0xff]
      %1062 = vmatpush.msra.mxu0 %v1061
      %1063 = vmatpush.msra.mxu0 %v1060
      %1064 = vmatpush.msra.mxu0 %v1059
      %1065 = vmatpush.msra.mxu0 %v1058
      %1066 = vmatpush.msra.mxu0 %v1057
      %1067 = vmatpush.msra.mxu0 %v1056
      %1068 = vmatpush.msra.mxu0 %v1055
      %1069 = vmatpush.msra.mxu0 %v1054
      %1070 = vmatpush.msra.mxu0 %v1053
      %1071 = vmatpush.msra.mxu0 %v1052
      %1072 = vmatpush.msra.mxu0 %v1051
      %1073 = vmatpush.msra.mxu0 %v1050
      %1074 = vmatpush.msra.mxu0 %v1049
      %1075 = vmatpush.msra.mxu0 %v1048
      %1076 = vmatpush.msra.mxu0 %v1047
      %1077 = vmatpush.msra.mxu0 %v1046
      %1078 = vmatmul.f32.gmra.mxu0 %v343
      %v1079 = vpop.f32.mrf.mxu0
      %v1080 = vadd.f32 0.0, %v1079
      %1081 = vmatmul.f32.gmra.mxu0 %v249
      %v1082 = vpop.f32.mrf.mxu0
      %v1083 = vadd.f32 0.0, %v1082
      %1084 = vmatmul.f32.gmra.mxu0 %v344
      %v1085 = vpop.f32.mrf.mxu0
      %v1086 = vadd.f32 0.0, %v1085
      %1087 = vmatmul.f32.gmra.mxu0 %v252
      %v1088 = vpop.f32.mrf.mxu0
      %v1089 = vadd.f32 0.0, %v1088
      %1090 = vmatmul.f32.gmra.mxu0 %v345
      %v1091 = vpop.f32.mrf.mxu0
      %v1092 = vadd.f32 0.0, %v1091
      %1093 = vmatmul.f32.gmra.mxu0 %v255
      %v1094 = vpop.f32.mrf.mxu0
      %v1095 = vadd.f32 0.0, %v1094
      %1096 = vmatmul.f32.gmra.mxu0 %v346
      %v1097 = vpop.f32.mrf.mxu0
      %v1098 = vadd.f32 0.0, %v1097
      %1099 = vmatmul.f32.gmra.mxu0 %v258
      %v1100 = vpop.f32.mrf.mxu0
      %v1101 = vadd.f32 0.0, %v1100
      %1102 = vmatmul.f32.gmra.mxu0 %v347
      %v1103 = vpop.f32.mrf.mxu0
      %v1104 = vadd.f32 0.0, %v1103
      %1105 = vmatmul.f32.gmra.mxu0 %v261
      %v1106 = vpop.f32.mrf.mxu0
      %v1107 = vadd.f32 0.0, %v1106
      %1108 = vmatmul.f32.gmra.mxu0 %v348
      %v1109 = vpop.f32.mrf.mxu0
      %v1110 = vadd.f32 0.0, %v1109
      %1111 = vmatmul.f32.gmra.mxu0 %v264
      %v1112 = vpop.f32.mrf.mxu0
      %v1113 = vadd.f32 0.0, %v1112
      %1114 = vmatmul.f32.gmra.mxu0 %v349
      %v1115 = vpop.f32.mrf.mxu0
      %v1116 = vadd.f32 0.0, %v1115
      %1117 = vmatmul.f32.gmra.mxu0 %v267
      %v1118 = vpop.f32.mrf.mxu0
      %v1119 = vadd.f32 0.0, %v1118
      %1120 = vmatmul.f32.gmra.mxu0 %v350
      %v1121 = vpop.f32.mrf.mxu0
      %v1122 = vadd.f32 0.0, %v1121
      %1123 = vmatmul.f32.gmra.mxu0 %v270
      %v1124 = vpop.f32.mrf.mxu0
      %v1125 = vadd.f32 0.0, %v1124
      %1126 = vmatmul.f32.gmra.mxu0 %v351
      %v1127 = vpop.f32.mrf.mxu0
      %v1128 = vadd.f32 0.0, %v1127
      %1129 = vmatmul.f32.gmra.mxu0 %v273
      %v1130 = vpop.f32.mrf.mxu0
      %v1131 = vadd.f32 0.0, %v1130
      %1132 = vmatmul.f32.gmra.mxu0 %v352
      %v1133 = vpop.f32.mrf.mxu0
      %v1134 = vadd.f32 0.0, %v1133
      %1135 = vmatmul.f32.gmra.mxu0 %v276
      %v1136 = vpop.f32.mrf.mxu0
      %v1137 = vadd.f32 0.0, %v1136
      %1138 = vmatmul.f32.gmra.mxu0 %v353
      %v1139 = vpop.f32.mrf.mxu0
      %v1140 = vadd.f32 0.0, %v1139
      %1141 = vmatmul.f32.gmra.mxu0 %v279
      %v1142 = vpop.f32.mrf.mxu0
      %v1143 = vadd.f32 0.0, %v1142
      %1144 = vmatmul.f32.gmra.mxu0 %v354
      %v1145 = vpop.f32.mrf.mxu0
      %v1146 = vadd.f32 0.0, %v1145
      %1147 = vmatmul.f32.gmra.mxu0 %v282
      %v1148 = vpop.f32.mrf.mxu0
      %v1149 = vadd.f32 0.0, %v1148
      %1150 = vmatmul.f32.gmra.mxu0 %v355
      %v1151 = vpop.f32.mrf.mxu0
      %v1152 = vadd.f32 0.0, %v1151
      %1153 = vmatmul.f32.gmra.mxu0 %v285
      %v1154 = vpop.f32.mrf.mxu0
      %v1155 = vadd.f32 0.0, %v1154
      %1156 = vmatmul.f32.gmra.mxu0 %v356
      %v1157 = vpop.f32.mrf.mxu0
      %v1158 = vadd.f32 0.0, %v1157
      %1159 = vmatmul.f32.gmra.mxu0 %v288
      %v1160 = vpop.f32.mrf.mxu0
      %v1161 = vadd.f32 0.0, %v1160
      %1162 = vmatmul.f32.gmra.mxu0 %v357
      %v1163 = vpop.f32.mrf.mxu0
      %v1164 = vadd.f32 0.0, %v1163
      %1165 = vmatmul.f32.gmra.mxu0 %v291
      %v1166 = vpop.f32.mrf.mxu0
      %v1167 = vadd.f32 0.0, %v1166
      %1168 = vmatmul.f32.gmra.mxu0 %v358
      %v1169 = vpop.f32.mrf.mxu0
      %v1170 = vadd.f32 0.0, %v1169
      %1171 = vmatmul.f32.gmra.mxu0 %v294
      %v1172 = vpop.f32.mrf.mxu0
      %v1173 = vadd.f32 0.0, %v1172
      %1174 = vdwg.mxu0
      %v1175 = vadd.f32 %v1013, %v1080
      %v1176 = vadd.f32 %v1014, %v1083
      %v1177 = vadd.f32 %v1015, %v1086
      %v1178 = vadd.f32 %v1016, %v1089
      %v1179 = vadd.f32 %v1017, %v1092
      %v1180 = vadd.f32 %v1018, %v1095
      %v1181 = vadd.f32 %v1019, %v1098
      %v1182 = vadd.f32 %v1020, %v1101
      %v1183 = vadd.f32 %v1021, %v1104
      %v1184 = vadd.f32 %v1022, %v1107
      %v1185 = vadd.f32 %v1023, %v1110
      %v1186 = vadd.f32 %v1024, %v1113
      %v1187 = vadd.f32 %v1025, %v1116
      %v1188 = vadd.f32 %v1026, %v1119
      %v1189 = vadd.f32 %v1027, %v1122
      %v1190 = vadd.f32 %v1028, %v1125
      %v1191 = vadd.f32 %v1029, %v1128
      %v1192 = vadd.f32 %v1030, %v1131
      %v1193 = vadd.f32 %v1031, %v1134
      %v1194 = vadd.f32 %v1032, %v1137
      %v1195 = vadd.f32 %v1033, %v1140
      %v1196 = vadd.f32 %v1034, %v1143
      %v1197 = vadd.f32 %v1035, %v1146
      %v1198 = vadd.f32 %v1036, %v1149
      %v1199 = vadd.f32 %v1037, %v1152
      %v1200 = vadd.f32 %v1038, %v1155
      %v1201 = vadd.f32 %v1039, %v1158
      %v1202 = vadd.f32 %v1040, %v1161
      %v1203 = vadd.f32 %v1041, %v1164
      %v1204 = vadd.f32 %v1042, %v1167
      %v1205 = vadd.f32 %v1043, %v1170
      %v1206 = vadd.f32 %v1044, %v1173
      %v1209 = vrot.slane %v358, 1
      %v1210 = vrot.slane %v294, 1
      %v1211 = vsel %vm422, %v1209, %v1210
      %v1212 = vrot.slane %v374, 1
      %v1213 = vsel %vm422, %v1210, %v1212
      %s1216 = scalar_lea.vmem %s1, 512
      %v1217 = vld [vmem:[%s1216] sm:$0xff]
      %v1218 = vld [vmem:[%s1216 + $0x8] sm:$0xff]
      %v1219 = vld [vmem:[%s1216 + $0x10] sm:$0xff]
      %v1220 = vld [vmem:[%s1216 + $0x18] sm:$0xff]
      %v1221 = vld [vmem:[%s1216 + $0x20] sm:$0xff]
      %v1222 = vld [vmem:[%s1216 + $0x28] sm:$0xff]
      %v1223 = vld [vmem:[%s1216 + $0x30] sm:$0xff]
      %v1224 = vld [vmem:[%s1216 + $0x38] sm:$0xff]
      %v1225 = vld [vmem:[%s1216 + $0x40] sm:$0xff]
      %v1226 = vld [vmem:[%s1216 + $0x48] sm:$0xff]
      %v1227 = vld [vmem:[%s1216 + $0x50] sm:$0xff]
      %v1228 = vld [vmem:[%s1216 + $0x58] sm:$0xff]
      %v1229 = vld [vmem:[%s1216 + $0x60] sm:$0xff]
      %v1230 = vld [vmem:[%s1216 + $0x68] sm:$0xff]
      %v1231 = vld [vmem:[%s1216 + $0x70] sm:$0xff]
      %v1232 = vld [vmem:[%s1216 + $0x78] sm:$0xff]
      %1233 = vmatpush.msra.mxu0 %v1232
      %1234 = vmatpush.msra.mxu0 %v1231
      %1235 = vmatpush.msra.mxu0 %v1230
      %1236 = vmatpush.msra.mxu0 %v1229
      %1237 = vmatpush.msra.mxu0 %v1228
      %1238 = vmatpush.msra.mxu0 %v1227
      %1239 = vmatpush.msra.mxu0 %v1226
      %1240 = vmatpush.msra.mxu0 %v1225
      %1241 = vmatpush.msra.mxu0 %v1224
      %1242 = vmatpush.msra.mxu0 %v1223
      %1243 = vmatpush.msra.mxu0 %v1222
      %1244 = vmatpush.msra.mxu0 %v1221
      %1245 = vmatpush.msra.mxu0 %v1220
      %1246 = vmatpush.msra.mxu0 %v1219
      %1247 = vmatpush.msra.mxu0 %v1218
      %1248 = vmatpush.msra.mxu0 %v1217
      %1249 = vmatmul.f32.gmra.mxu0 %v427
      %v1250 = vpop.f32.mrf.mxu0
      %v1251 = vadd.f32 0.0, %v1250
      %1252 = vmatmul.f32.gmra.mxu0 %v429
      %v1253 = vpop.f32.mrf.mxu0
      %v1254 = vadd.f32 0.0, %v1253
      %1255 = vmatmul.f32.gmra.mxu0 %v432
      %v1256 = vpop.f32.mrf.mxu0
      %v1257 = vadd.f32 0.0, %v1256
      %1258 = vmatmul.f32.gmra.mxu0 %v434
      %v1259 = vpop.f32.mrf.mxu0
      %v1260 = vadd.f32 0.0, %v1259
      %1261 = vmatmul.f32.gmra.mxu0 %v437
      %v1262 = vpop.f32.mrf.mxu0
      %v1263 = vadd.f32 0.0, %v1262
      %1264 = vmatmul.f32.gmra.mxu0 %v439
      %v1265 = vpop.f32.mrf.mxu0
      %v1266 = vadd.f32 0.0, %v1265
      %1267 = vmatmul.f32.gmra.mxu0 %v442
      %v1268 = vpop.f32.mrf.mxu0
      %v1269 = vadd.f32 0.0, %v1268
      %1270 = vmatmul.f32.gmra.mxu0 %v444
      %v1271 = vpop.f32.mrf.mxu0
      %v1272 = vadd.f32 0.0, %v1271
      %1273 = vmatmul.f32.gmra.mxu0 %v447
      %v1274 = vpop.f32.mrf.mxu0
      %v1275 = vadd.f32 0.0, %v1274
      %1276 = vmatmul.f32.gmra.mxu0 %v449
      %v1277 = vpop.f32.mrf.mxu0
      %v1278 = vadd.f32 0.0, %v1277
      %1279 = vmatmul.f32.gmra.mxu0 %v452
      %v1280 = vpop.f32.mrf.mxu0
      %v1281 = vadd.f32 0.0, %v1280
      %1282 = vmatmul.f32.gmra.mxu0 %v454
      %v1283 = vpop.f32.mrf.mxu0
      %v1284 = vadd.f32 0.0, %v1283
      %1285 = vmatmul.f32.gmra.mxu0 %v457
      %v1286 = vpop.f32.mrf.mxu0
      %v1287 = vadd.f32 0.0, %v1286
      %1288 = vmatmul.f32.gmra.mxu0 %v459
      %v1289 = vpop.f32.mrf.mxu0
      %v1290 = vadd.f32 0.0, %v1289
      %1291 = vmatmul.f32.gmra.mxu0 %v462
      %v1292 = vpop.f32.mrf.mxu0
      %v1293 = vadd.f32 0.0, %v1292
      %1294 = vmatmul.f32.gmra.mxu0 %v464
      %v1295 = vpop.f32.mrf.mxu0
      %v1296 = vadd.f32 0.0, %v1295
      %1297 = vmatmul.f32.gmra.mxu0 %v467
      %v1298 = vpop.f32.mrf.mxu0
      %v1299 = vadd.f32 0.0, %v1298
      %1300 = vmatmul.f32.gmra.mxu0 %v469
      %v1301 = vpop.f32.mrf.mxu0
      %v1302 = vadd.f32 0.0, %v1301
      %1303 = vmatmul.f32.gmra.mxu0 %v472
      %v1304 = vpop.f32.mrf.mxu0
      %v1305 = vadd.f32 0.0, %v1304
      %1306 = vmatmul.f32.gmra.mxu0 %v474
      %v1307 = vpop.f32.mrf.mxu0
      %v1308 = vadd.f32 0.0, %v1307
      %1309 = vmatmul.f32.gmra.mxu0 %v477
      %v1310 = vpop.f32.mrf.mxu0
      %v1311 = vadd.f32 0.0, %v1310
      %1312 = vmatmul.f32.gmra.mxu0 %v479
      %v1313 = vpop.f32.mrf.mxu0
      %v1314 = vadd.f32 0.0, %v1313
      %1315 = vmatmul.f32.gmra.mxu0 %v482
      %v1316 = vpop.f32.mrf.mxu0
      %v1317 = vadd.f32 0.0, %v1316
      %1318 = vmatmul.f32.gmra.mxu0 %v484
      %v1319 = vpop.f32.mrf.mxu0
      %v1320 = vadd.f32 0.0, %v1319
      %1321 = vmatmul.f32.gmra.mxu0 %v487
      %v1322 = vpop.f32.mrf.mxu0
      %v1323 = vadd.f32 0.0, %v1322
      %1324 = vmatmul.f32.gmra.mxu0 %v489
      %v1325 = vpop.f32.mrf.mxu0
      %v1326 = vadd.f32 0.0, %v1325
      %1327 = vmatmul.f32.gmra.mxu0 %v492
      %v1328 = vpop.f32.mrf.mxu0
      %v1329 = vadd.f32 0.0, %v1328
      %1330 = vmatmul.f32.gmra.mxu0 %v494
      %v1331 = vpop.f32.mrf.mxu0
      %v1332 = vadd.f32 0.0, %v1331
      %1333 = vmatmul.f32.gmra.mxu0 %v497
      %v1334 = vpop.f32.mrf.mxu0
      %v1335 = vadd.f32 0.0, %v1334
      %1336 = vmatmul.f32.gmra.mxu0 %v499
      %v1337 = vpop.f32.mrf.mxu0
      %v1338 = vadd.f32 0.0, %v1337
      %1339 = vmatmul.f32.gmra.mxu0 %v1211
      %v1340 = vpop.f32.mrf.mxu0
      %v1341 = vadd.f32 0.0, %v1340
      %1342 = vmatmul.f32.gmra.mxu0 %v1213
      %v1343 = vpop.f32.mrf.mxu0
      %v1344 = vadd.f32 0.0, %v1343
      %1345 = vdwg.mxu0
      %v1346 = vadd.f32 %v1175, %v1251
      %v1347 = vadd.f32 %v1176, %v1254
      %v1348 = vadd.f32 %v1177, %v1257
      %v1349 = vadd.f32 %v1178, %v1260
      %v1350 = vadd.f32 %v1179, %v1263
      %v1351 = vadd.f32 %v1180, %v1266
      %v1352 = vadd.f32 %v1181, %v1269
      %v1353 = vadd.f32 %v1182, %v1272
      %v1354 = vadd.f32 %v1183, %v1275
      %v1355 = vadd.f32 %v1184, %v1278
      %v1356 = vadd.f32 %v1185, %v1281
      %v1357 = vadd.f32 %v1186, %v1284
      %v1358 = vadd.f32 %v1187, %v1287
      %v1359 = vadd.f32 %v1188, %v1290
      %v1360 = vadd.f32 %v1189, %v1293
      %v1361 = vadd.f32 %v1190, %v1296
      %v1362 = vadd.f32 %v1191, %v1299
      %v1363 = vadd.f32 %v1192, %v1302
      %v1364 = vadd.f32 %v1193, %v1305
      %v1365 = vadd.f32 %v1194, %v1308
      %v1366 = vadd.f32 %v1195, %v1311
      %v1367 = vadd.f32 %v1196, %v1314
      %v1368 = vadd.f32 %v1197, %v1317
      %v1369 = vadd.f32 %v1198, %v1320
      %v1370 = vadd.f32 %v1199, %v1323
      %v1371 = vadd.f32 %v1200, %v1326
      %v1372 = vadd.f32 %v1201, %v1329
      %v1373 = vadd.f32 %v1202, %v1332
      %v1374 = vadd.f32 %v1203, %v1335
      %v1375 = vadd.f32 %v1204, %v1338
      %v1376 = vadd.f32 %v1205, %v1341
      %v1377 = vadd.f32 %v1206, %v1344
      %v1378 = vrot.slane %v358, 2
      %v1379 = vrot.slane %v294, 2
      %v1380 = vsel %vm774, %v1378, %v1379
      %v1381 = vrot.slane %v374, 2
      %v1382 = vsel %vm774, %v1379, %v1381
      %s1385 = scalar_lea.vmem %s1, 640
      %v1386 = vld [vmem:[%s1385] sm:$0xff]
      %v1387 = vld [vmem:[%s1385 + $0x8] sm:$0xff]
      %v1388 = vld [vmem:[%s1385 + $0x10] sm:$0xff]
      %v1389 = vld [vmem:[%s1385 + $0x18] sm:$0xff]
      %v1390 = vld [vmem:[%s1385 + $0x20] sm:$0xff]
      %v1391 = vld [vmem:[%s1385 + $0x28] sm:$0xff]
      %v1392 = vld [vmem:[%s1385 + $0x30] sm:$0xff]
      %v1393 = vld [vmem:[%s1385 + $0x38] sm:$0xff]
      %v1394 = vld [vmem:[%s1385 + $0x40] sm:$0xff]
      %v1395 = vld [vmem:[%s1385 + $0x48] sm:$0xff]
      %v1396 = vld [vmem:[%s1385 + $0x50] sm:$0xff]
      %v1397 = vld [vmem:[%s1385 + $0x58] sm:$0xff]
      %v1398 = vld [vmem:[%s1385 + $0x60] sm:$0xff]
      %v1399 = vld [vmem:[%s1385 + $0x68] sm:$0xff]
      %v1400 = vld [vmem:[%s1385 + $0x70] sm:$0xff]
      %v1401 = vld [vmem:[%s1385 + $0x78] sm:$0xff]
      %1402 = vmatpush.msra.mxu0 %v1401
      %1403 = vmatpush.msra.mxu0 %v1400
      %1404 = vmatpush.msra.mxu0 %v1399
      %1405 = vmatpush.msra.mxu0 %v1398
      %1406 = vmatpush.msra.mxu0 %v1397
      %1407 = vmatpush.msra.mxu0 %v1396
      %1408 = vmatpush.msra.mxu0 %v1395
      %1409 = vmatpush.msra.mxu0 %v1394
      %1410 = vmatpush.msra.mxu0 %v1393
      %1411 = vmatpush.msra.mxu0 %v1392
      %1412 = vmatpush.msra.mxu0 %v1391
      %1413 = vmatpush.msra.mxu0 %v1390
      %1414 = vmatpush.msra.mxu0 %v1389
      %1415 = vmatpush.msra.mxu0 %v1388
      %1416 = vmatpush.msra.mxu0 %v1387
      %1417 = vmatpush.msra.mxu0 %v1386
      %1418 = vmatmul.f32.gmra.mxu0 %v779
      %v1419 = vpop.f32.mrf.mxu0
      %v1420 = vadd.f32 0.0, %v1419
      %1421 = vmatmul.f32.gmra.mxu0 %v781
      %v1422 = vpop.f32.mrf.mxu0
      %v1423 = vadd.f32 0.0, %v1422
      %1424 = vmatmul.f32.gmra.mxu0 %v784
      %v1425 = vpop.f32.mrf.mxu0
      %v1426 = vadd.f32 0.0, %v1425
      %1427 = vmatmul.f32.gmra.mxu0 %v786
      %v1428 = vpop.f32.mrf.mxu0
      %v1429 = vadd.f32 0.0, %v1428
      %1430 = vmatmul.f32.gmra.mxu0 %v789
      %v1431 = vpop.f32.mrf.mxu0
      %v1432 = vadd.f32 0.0, %v1431
      %1433 = vmatmul.f32.gmra.mxu0 %v791
      %v1434 = vpop.f32.mrf.mxu0
      %v1435 = vadd.f32 0.0, %v1434
      %1436 = vmatmul.f32.gmra.mxu0 %v794
      %v1437 = vpop.f32.mrf.mxu0
      %v1438 = vadd.f32 0.0, %v1437
      %1439 = vmatmul.f32.gmra.mxu0 %v796
      %v1440 = vpop.f32.mrf.mxu0
      %v1441 = vadd.f32 0.0, %v1440
      %1442 = vmatmul.f32.gmra.mxu0 %v799
      %v1443 = vpop.f32.mrf.mxu0
      %v1444 = vadd.f32 0.0, %v1443
      %1445 = vmatmul.f32.gmra.mxu0 %v801
      %v1446 = vpop.f32.mrf.mxu0
      %v1447 = vadd.f32 0.0, %v1446
      %1448 = vmatmul.f32.gmra.mxu0 %v804
      %v1449 = vpop.f32.mrf.mxu0
      %v1450 = vadd.f32 0.0, %v1449
      %1451 = vmatmul.f32.gmra.mxu0 %v806
      %v1452 = vpop.f32.mrf.mxu0
      %v1453 = vadd.f32 0.0, %v1452
      %1454 = vmatmul.f32.gmra.mxu0 %v809
      %v1455 = vpop.f32.mrf.mxu0
      %v1456 = vadd.f32 0.0, %v1455
      %1457 = vmatmul.f32.gmra.mxu0 %v811
      %v1458 = vpop.f32.mrf.mxu0
      %v1459 = vadd.f32 0.0, %v1458
      %1460 = vmatmul.f32.gmra.mxu0 %v814
      %v1461 = vpop.f32.mrf.mxu0
      %v1462 = vadd.f32 0.0, %v1461
      %1463 = vmatmul.f32.gmra.mxu0 %v816
      %v1464 = vpop.f32.mrf.mxu0
      %v1465 = vadd.f32 0.0, %v1464
      %1466 = vmatmul.f32.gmra.mxu0 %v819
      %v1467 = vpop.f32.mrf.mxu0
      %v1468 = vadd.f32 0.0, %v1467
      %1469 = vmatmul.f32.gmra.mxu0 %v821
      %v1470 = vpop.f32.mrf.mxu0
      %v1471 = vadd.f32 0.0, %v1470
      %1472 = vmatmul.f32.gmra.mxu0 %v824
      %v1473 = vpop.f32.mrf.mxu0
      %v1474 = vadd.f32 0.0, %v1473
      %1475 = vmatmul.f32.gmra.mxu0 %v826
      %v1476 = vpop.f32.mrf.mxu0
      %v1477 = vadd.f32 0.0, %v1476
      %1478 = vmatmul.f32.gmra.mxu0 %v829
      %v1479 = vpop.f32.mrf.mxu0
      %v1480 = vadd.f32 0.0, %v1479
      %1481 = vmatmul.f32.gmra.mxu0 %v831
      %v1482 = vpop.f32.mrf.mxu0
      %v1483 = vadd.f32 0.0, %v1482
      %1484 = vmatmul.f32.gmra.mxu0 %v834
      %v1485 = vpop.f32.mrf.mxu0
      %v1486 = vadd.f32 0.0, %v1485
      %1487 = vmatmul.f32.gmra.mxu0 %v836
      %v1488 = vpop.f32.mrf.mxu0
      %v1489 = vadd.f32 0.0, %v1488
      %1490 = vmatmul.f32.gmra.mxu0 %v839
      %v1491 = vpop.f32.mrf.mxu0
      %v1492 = vadd.f32 0.0, %v1491
      %1493 = vmatmul.f32.gmra.mxu0 %v841
      %v1494 = vpop.f32.mrf.mxu0
      %v1495 = vadd.f32 0.0, %v1494
      %1496 = vmatmul.f32.gmra.mxu0 %v844
      %v1497 = vpop.f32.mrf.mxu0
      %v1498 = vadd.f32 0.0, %v1497
      %1499 = vmatmul.f32.gmra.mxu0 %v846
      %v1500 = vpop.f32.mrf.mxu0
      %v1501 = vadd.f32 0.0, %v1500
      %1502 = vmatmul.f32.gmra.mxu0 %v849
      %v1503 = vpop.f32.mrf.mxu0
      %v1504 = vadd.f32 0.0, %v1503
      %1505 = vmatmul.f32.gmra.mxu0 %v851
      %v1506 = vpop.f32.mrf.mxu0
      %v1507 = vadd.f32 0.0, %v1506
      %1508 = vmatmul.f32.gmra.mxu0 %v1380
      %v1509 = vpop.f32.mrf.mxu0
      %v1510 = vadd.f32 0.0, %v1509
      %1511 = vmatmul.f32.gmra.mxu0 %v1382
      %v1512 = vpop.f32.mrf.mxu0
      %v1513 = vadd.f32 0.0, %v1512
      %1514 = vdwg.mxu0
      %v1515 = vadd.f32 %v1346, %v1420
      %v1516 = vadd.f32 %v1347, %v1423
      %v1517 = vadd.f32 %v1348, %v1426
      %v1518 = vadd.f32 %v1349, %v1429
      %v1519 = vadd.f32 %v1350, %v1432
      %v1520 = vadd.f32 %v1351, %v1435
      %v1521 = vadd.f32 %v1352, %v1438
      %v1522 = vadd.f32 %v1353, %v1441
      %v1523 = vadd.f32 %v1354, %v1444
      %v1524 = vadd.f32 %v1355, %v1447
      %v1525 = vadd.f32 %v1356, %v1450
      %v1526 = vadd.f32 %v1357, %v1453
      %v1527 = vadd.f32 %v1358, %v1456
      %v1528 = vadd.f32 %v1359, %v1459
      %v1529 = vadd.f32 %v1360, %v1462
      %v1530 = vadd.f32 %v1361, %v1465
      %v1531 = vadd.f32 %v1362, %v1468
      %v1532 = vadd.f32 %v1363, %v1471
      %v1533 = vadd.f32 %v1364, %v1474
      %v1534 = vadd.f32 %v1365, %v1477
      %v1535 = vadd.f32 %v1366, %v1480
      %v1536 = vadd.f32 %v1367, %v1483
      %v1537 = vadd.f32 %v1368, %v1486
      %v1538 = vadd.f32 %v1369, %v1489
      %v1539 = vadd.f32 %v1370, %v1492
      %v1540 = vadd.f32 %v1371, %v1495
      %v1541 = vadd.f32 %v1372, %v1498
      %v1542 = vadd.f32 %v1373, %v1501
      %v1543 = vadd.f32 %v1374, %v1504
      %v1544 = vadd.f32 %v1375, %v1507
      %v1545 = vadd.f32 %v1376, %v1510
      %v1546 = vadd.f32 %v1377, %v1513
      %s1547 = scalar_lea.vmem %s1, 768
      %v1548 = vld [vmem:[%s1547] sm:$0xff]
      %v1549 = vld [vmem:[%s1547 + $0x8] sm:$0xff]
      %v1550 = vld [vmem:[%s1547 + $0x10] sm:$0xff]
      %v1551 = vld [vmem:[%s1547 + $0x18] sm:$0xff]
      %v1552 = vld [vmem:[%s1547 + $0x20] sm:$0xff]
      %v1553 = vld [vmem:[%s1547 + $0x28] sm:$0xff]
      %v1554 = vld [vmem:[%s1547 + $0x30] sm:$0xff]
      %v1555 = vld [vmem:[%s1547 + $0x38] sm:$0xff]
      %v1556 = vld [vmem:[%s1547 + $0x40] sm:$0xff]
      %v1557 = vld [vmem:[%s1547 + $0x48] sm:$0xff]
      %v1558 = vld [vmem:[%s1547 + $0x50] sm:$0xff]
      %v1559 = vld [vmem:[%s1547 + $0x58] sm:$0xff]
      %v1560 = vld [vmem:[%s1547 + $0x60] sm:$0xff]
      %v1561 = vld [vmem:[%s1547 + $0x68] sm:$0xff]
      %v1562 = vld [vmem:[%s1547 + $0x70] sm:$0xff]
      %v1563 = vld [vmem:[%s1547 + $0x78] sm:$0xff]
      %1564 = vmatpush.msra.mxu0 %v1563
      %1565 = vmatpush.msra.mxu0 %v1562
      %1566 = vmatpush.msra.mxu0 %v1561
      %1567 = vmatpush.msra.mxu0 %v1560
      %1568 = vmatpush.msra.mxu0 %v1559
      %1569 = vmatpush.msra.mxu0 %v1558
      %1570 = vmatpush.msra.mxu0 %v1557
      %1571 = vmatpush.msra.mxu0 %v1556
      %1572 = vmatpush.msra.mxu0 %v1555
      %1573 = vmatpush.msra.mxu0 %v1554
      %1574 = vmatpush.msra.mxu0 %v1553
      %1575 = vmatpush.msra.mxu0 %v1552
      %1576 = vmatpush.msra.mxu0 %v1551
      %1577 = vmatpush.msra.mxu0 %v1550
      %1578 = vmatpush.msra.mxu0 %v1549
      %1579 = vmatpush.msra.mxu0 %v1548
      %1580 = vmatmul.f32.gmra.mxu0 %v344
      %v1581 = vpop.f32.mrf.mxu0
      %v1582 = vadd.f32 0.0, %v1581
      %1583 = vmatmul.f32.gmra.mxu0 %v252
      %v1584 = vpop.f32.mrf.mxu0
      %v1585 = vadd.f32 0.0, %v1584
      %1586 = vmatmul.f32.gmra.mxu0 %v345
      %v1587 = vpop.f32.mrf.mxu0
      %v1588 = vadd.f32 0.0, %v1587
      %1589 = vmatmul.f32.gmra.mxu0 %v255
      %v1590 = vpop.f32.mrf.mxu0
      %v1591 = vadd.f32 0.0, %v1590
      %1592 = vmatmul.f32.gmra.mxu0 %v346
      %v1593 = vpop.f32.mrf.mxu0
      %v1594 = vadd.f32 0.0, %v1593
      %1595 = vmatmul.f32.gmra.mxu0 %v258
      %v1596 = vpop.f32.mrf.mxu0
      %v1597 = vadd.f32 0.0, %v1596
      %1598 = vmatmul.f32.gmra.mxu0 %v347
      %v1599 = vpop.f32.mrf.mxu0
      %v1600 = vadd.f32 0.0, %v1599
      %1601 = vmatmul.f32.gmra.mxu0 %v261
      %v1602 = vpop.f32.mrf.mxu0
      %v1603 = vadd.f32 0.0, %v1602
      %1604 = vmatmul.f32.gmra.mxu0 %v348
      %v1605 = vpop.f32.mrf.mxu0
      %v1606 = vadd.f32 0.0, %v1605
      %1607 = vmatmul.f32.gmra.mxu0 %v264
      %v1608 = vpop.f32.mrf.mxu0
      %v1609 = vadd.f32 0.0, %v1608
      %1610 = vmatmul.f32.gmra.mxu0 %v349
      %v1611 = vpop.f32.mrf.mxu0
      %v1612 = vadd.f32 0.0, %v1611
      %1613 = vmatmul.f32.gmra.mxu0 %v267
      %v1614 = vpop.f32.mrf.mxu0
      %v1615 = vadd.f32 0.0, %v1614
      %1616 = vmatmul.f32.gmra.mxu0 %v350
      %v1617 = vpop.f32.mrf.mxu0
      %v1618 = vadd.f32 0.0, %v1617
      %1619 = vmatmul.f32.gmra.mxu0 %v270
      %v1620 = vpop.f32.mrf.mxu0
      %v1621 = vadd.f32 0.0, %v1620
      %1622 = vmatmul.f32.gmra.mxu0 %v351
      %v1623 = vpop.f32.mrf.mxu0
      %v1624 = vadd.f32 0.0, %v1623
      %1625 = vmatmul.f32.gmra.mxu0 %v273
      %v1626 = vpop.f32.mrf.mxu0
      %v1627 = vadd.f32 0.0, %v1626
      %1628 = vmatmul.f32.gmra.mxu0 %v352
      %v1629 = vpop.f32.mrf.mxu0
      %v1630 = vadd.f32 0.0, %v1629
      %1631 = vmatmul.f32.gmra.mxu0 %v276
      %v1632 = vpop.f32.mrf.mxu0
      %v1633 = vadd.f32 0.0, %v1632
      %1634 = vmatmul.f32.gmra.mxu0 %v353
      %v1635 = vpop.f32.mrf.mxu0
      %v1636 = vadd.f32 0.0, %v1635
      %1637 = vmatmul.f32.gmra.mxu0 %v279
      %v1638 = vpop.f32.mrf.mxu0
      %v1639 = vadd.f32 0.0, %v1638
      %1640 = vmatmul.f32.gmra.mxu0 %v354
      %v1641 = vpop.f32.mrf.mxu0
      %v1642 = vadd.f32 0.0, %v1641
      %1643 = vmatmul.f32.gmra.mxu0 %v282
      %v1644 = vpop.f32.mrf.mxu0
      %v1645 = vadd.f32 0.0, %v1644
      %1646 = vmatmul.f32.gmra.mxu0 %v355
      %v1647 = vpop.f32.mrf.mxu0
      %v1648 = vadd.f32 0.0, %v1647
      %1649 = vmatmul.f32.gmra.mxu0 %v285
      %v1650 = vpop.f32.mrf.mxu0
      %v1651 = vadd.f32 0.0, %v1650
      %1652 = vmatmul.f32.gmra.mxu0 %v356
      %v1653 = vpop.f32.mrf.mxu0
      %v1654 = vadd.f32 0.0, %v1653
      %1655 = vmatmul.f32.gmra.mxu0 %v288
      %v1656 = vpop.f32.mrf.mxu0
      %v1657 = vadd.f32 0.0, %v1656
      %1658 = vmatmul.f32.gmra.mxu0 %v357
      %v1659 = vpop.f32.mrf.mxu0
      %v1660 = vadd.f32 0.0, %v1659
      %1661 = vmatmul.f32.gmra.mxu0 %v291
      %v1662 = vpop.f32.mrf.mxu0
      %v1663 = vadd.f32 0.0, %v1662
      %1664 = vmatmul.f32.gmra.mxu0 %v358
      %v1665 = vpop.f32.mrf.mxu0
      %v1666 = vadd.f32 0.0, %v1665
      %1667 = vmatmul.f32.gmra.mxu0 %v294
      %v1668 = vpop.f32.mrf.mxu0
      %v1669 = vadd.f32 0.0, %v1668
      %1670 = vmatmul.f32.gmra.mxu0 0.0
      %v1671 = vpop.f32.mrf.mxu0
      %v1672 = vadd.f32 0.0, %v1671
      %1673 = vmatmul.f32.gmra.mxu0 0.0
      %v1674 = vpop.f32.mrf.mxu0
      %v1675 = vadd.f32 0.0, %v1674
      %1676 = vdwg.mxu0
      %v1677 = vadd.f32 %v1515, %v1582
      %v1678 = vadd.f32 %v1516, %v1585
      %v1679 = vadd.f32 %v1517, %v1588
      %v1680 = vadd.f32 %v1518, %v1591
      %v1681 = vadd.f32 %v1519, %v1594
      %v1682 = vadd.f32 %v1520, %v1597
      %v1683 = vadd.f32 %v1521, %v1600
      %v1684 = vadd.f32 %v1522, %v1603
      %v1685 = vadd.f32 %v1523, %v1606
      %v1686 = vadd.f32 %v1524, %v1609
      %v1687 = vadd.f32 %v1525, %v1612
      %v1688 = vadd.f32 %v1526, %v1615
      %v1689 = vadd.f32 %v1527, %v1618
      %v1690 = vadd.f32 %v1528, %v1621
      %v1691 = vadd.f32 %v1529, %v1624
      %v1692 = vadd.f32 %v1530, %v1627
      %v1693 = vadd.f32 %v1531, %v1630
      %v1694 = vadd.f32 %v1532, %v1633
      %v1695 = vadd.f32 %v1533, %v1636
      %v1696 = vadd.f32 %v1534, %v1639
      %v1697 = vadd.f32 %v1535, %v1642
      %v1698 = vadd.f32 %v1536, %v1645
      %v1699 = vadd.f32 %v1537, %v1648
      %v1700 = vadd.f32 %v1538, %v1651
      %v1701 = vadd.f32 %v1539, %v1654
      %v1702 = vadd.f32 %v1540, %v1657
      %v1703 = vadd.f32 %v1541, %v1660
      %v1704 = vadd.f32 %v1542, %v1663
      %v1705 = vadd.f32 %v1543, %v1666
      %v1706 = vadd.f32 %v1544, %v1669
      %v1707 = vadd.f32 %v1545, %v1672
      %v1708 = vadd.f32 %v1546, %v1675
      %s1709 = scalar_lea.vmem %s1, 896
      %v1710 = vld [vmem:[%s1709] sm:$0xff]
      %v1711 = vld [vmem:[%s1709 + $0x8] sm:$0xff]
      %v1712 = vld [vmem:[%s1709 + $0x10] sm:$0xff]
      %v1713 = vld [vmem:[%s1709 + $0x18] sm:$0xff]
      %v1714 = vld [vmem:[%s1709 + $0x20] sm:$0xff]
      %v1715 = vld [vmem:[%s1709 + $0x28] sm:$0xff]
      %v1716 = vld [vmem:[%s1709 + $0x30] sm:$0xff]
      %v1717 = vld [vmem:[%s1709 + $0x38] sm:$0xff]
      %v1718 = vld [vmem:[%s1709 + $0x40] sm:$0xff]
      %v1719 = vld [vmem:[%s1709 + $0x48] sm:$0xff]
      %v1720 = vld [vmem:[%s1709 + $0x50] sm:$0xff]
      %v1721 = vld [vmem:[%s1709 + $0x58] sm:$0xff]
      %v1722 = vld [vmem:[%s1709 + $0x60] sm:$0xff]
      %v1723 = vld [vmem:[%s1709 + $0x68] sm:$0xff]
      %v1724 = vld [vmem:[%s1709 + $0x70] sm:$0xff]
      %v1725 = vld [vmem:[%s1709 + $0x78] sm:$0xff]
      %1726 = vmatpush.msra.mxu0 %v1725
      %1727 = vmatpush.msra.mxu0 %v1724
      %1728 = vmatpush.msra.mxu0 %v1723
      %1729 = vmatpush.msra.mxu0 %v1722
      %1730 = vmatpush.msra.mxu0 %v1721
      %1731 = vmatpush.msra.mxu0 %v1720
      %1732 = vmatpush.msra.mxu0 %v1719
      %1733 = vmatpush.msra.mxu0 %v1718
      %1734 = vmatpush.msra.mxu0 %v1717
      %1735 = vmatpush.msra.mxu0 %v1716
      %1736 = vmatpush.msra.mxu0 %v1715
      %1737 = vmatpush.msra.mxu0 %v1714
      %1738 = vmatpush.msra.mxu0 %v1713
      %1739 = vmatpush.msra.mxu0 %v1712
      %1740 = vmatpush.msra.mxu0 %v1711
      %1741 = vmatpush.msra.mxu0 %v1710
      %1742 = vmatmul.f32.gmra.mxu0 %v432
      %v1743 = vpop.f32.mrf.mxu0
      %v1744 = vadd.f32 0.0, %v1743
      %1745 = vmatmul.f32.gmra.mxu0 %v434
      %v1746 = vpop.f32.mrf.mxu0
      %v1747 = vadd.f32 0.0, %v1746
      %1748 = vmatmul.f32.gmra.mxu0 %v437
      %v1749 = vpop.f32.mrf.mxu0
      %v1750 = vadd.f32 0.0, %v1749
      %1751 = vmatmul.f32.gmra.mxu0 %v439
      %v1752 = vpop.f32.mrf.mxu0
      %v1753 = vadd.f32 0.0, %v1752
      %1754 = vmatmul.f32.gmra.mxu0 %v442
      %v1755 = vpop.f32.mrf.mxu0
      %v1756 = vadd.f32 0.0, %v1755
      %1757 = vmatmul.f32.gmra.mxu0 %v444
      %v1758 = vpop.f32.mrf.mxu0
      %v1759 = vadd.f32 0.0, %v1758
      %1760 = vmatmul.f32.gmra.mxu0 %v447
      %v1761 = vpop.f32.mrf.mxu0
      %v1762 = vadd.f32 0.0, %v1761
      %1763 = vmatmul.f32.gmra.mxu0 %v449
      %v1764 = vpop.f32.mrf.mxu0
      %v1765 = vadd.f32 0.0, %v1764
      %1766 = vmatmul.f32.gmra.mxu0 %v452
      %v1767 = vpop.f32.mrf.mxu0
      %v1768 = vadd.f32 0.0, %v1767
      %1769 = vmatmul.f32.gmra.mxu0 %v454
      %v1770 = vpop.f32.mrf.mxu0
      %v1771 = vadd.f32 0.0, %v1770
      %1772 = vmatmul.f32.gmra.mxu0 %v457
      %v1773 = vpop.f32.mrf.mxu0
      %v1774 = vadd.f32 0.0, %v1773
      %1775 = vmatmul.f32.gmra.mxu0 %v459
      %v1776 = vpop.f32.mrf.mxu0
      %v1777 = vadd.f32 0.0, %v1776
      %1778 = vmatmul.f32.gmra.mxu0 %v462
      %v1779 = vpop.f32.mrf.mxu0
      %v1780 = vadd.f32 0.0, %v1779
      %1781 = vmatmul.f32.gmra.mxu0 %v464
      %v1782 = vpop.f32.mrf.mxu0
      %v1783 = vadd.f32 0.0, %v1782
      %1784 = vmatmul.f32.gmra.mxu0 %v467
      %v1785 = vpop.f32.mrf.mxu0
      %v1786 = vadd.f32 0.0, %v1785
      %1787 = vmatmul.f32.gmra.mxu0 %v469
      %v1788 = vpop.f32.mrf.mxu0
      %v1789 = vadd.f32 0.0, %v1788
      %1790 = vmatmul.f32.gmra.mxu0 %v472
      %v1791 = vpop.f32.mrf.mxu0
      %v1792 = vadd.f32 0.0, %v1791
      %1793 = vmatmul.f32.gmra.mxu0 %v474
      %v1794 = vpop.f32.mrf.mxu0
      %v1795 = vadd.f32 0.0, %v1794
      %1796 = vmatmul.f32.gmra.mxu0 %v477
      %v1797 = vpop.f32.mrf.mxu0
      %v1798 = vadd.f32 0.0, %v1797
      %1799 = vmatmul.f32.gmra.mxu0 %v479
      %v1800 = vpop.f32.mrf.mxu0
      %v1801 = vadd.f32 0.0, %v1800
      %1802 = vmatmul.f32.gmra.mxu0 %v482
      %v1803 = vpop.f32.mrf.mxu0
      %v1804 = vadd.f32 0.0, %v1803
      %1805 = vmatmul.f32.gmra.mxu0 %v484
      %v1806 = vpop.f32.mrf.mxu0
      %v1807 = vadd.f32 0.0, %v1806
      %1808 = vmatmul.f32.gmra.mxu0 %v487
      %v1809 = vpop.f32.mrf.mxu0
      %v1810 = vadd.f32 0.0, %v1809
      %1811 = vmatmul.f32.gmra.mxu0 %v489
      %v1812 = vpop.f32.mrf.mxu0
      %v1813 = vadd.f32 0.0, %v1812
      %1814 = vmatmul.f32.gmra.mxu0 %v492
      %v1815 = vpop.f32.mrf.mxu0
      %v1816 = vadd.f32 0.0, %v1815
      %1817 = vmatmul.f32.gmra.mxu0 %v494
      %v1818 = vpop.f32.mrf.mxu0
      %v1819 = vadd.f32 0.0, %v1818
      %1820 = vmatmul.f32.gmra.mxu0 %v497
      %v1821 = vpop.f32.mrf.mxu0
      %v1822 = vadd.f32 0.0, %v1821
      %1823 = vmatmul.f32.gmra.mxu0 %v499
      %v1824 = vpop.f32.mrf.mxu0
      %v1825 = vadd.f32 0.0, %v1824
      %1826 = vmatmul.f32.gmra.mxu0 %v1211
      %v1827 = vpop.f32.mrf.mxu0
      %v1828 = vadd.f32 0.0, %v1827
      %1829 = vmatmul.f32.gmra.mxu0 %v1213
      %v1830 = vpop.f32.mrf.mxu0
      %v1831 = vadd.f32 0.0, %v1830
      %1832 = vmatmul.f32.gmra.mxu0 %v424
      %v1833 = vpop.f32.mrf.mxu0
      %v1834 = vadd.f32 0.0, %v1833
      %1835 = vmatmul.f32.gmra.mxu0 %v424
      %v1836 = vpop.f32.mrf.mxu0
      %v1837 = vadd.f32 0.0, %v1836
      %1838 = vdwg.mxu0
      %v1839 = vadd.f32 %v1677, %v1744
      %v1840 = vadd.f32 %v1678, %v1747
      %v1841 = vadd.f32 %v1679, %v1750
      %v1842 = vadd.f32 %v1680, %v1753
      %v1843 = vadd.f32 %v1681, %v1756
      %v1844 = vadd.f32 %v1682, %v1759
      %v1845 = vadd.f32 %v1683, %v1762
      %v1846 = vadd.f32 %v1684, %v1765
      %v1847 = vadd.f32 %v1685, %v1768
      %v1848 = vadd.f32 %v1686, %v1771
      %v1849 = vadd.f32 %v1687, %v1774
      %v1850 = vadd.f32 %v1688, %v1777
      %v1851 = vadd.f32 %v1689, %v1780
      %v1852 = vadd.f32 %v1690, %v1783
      %v1853 = vadd.f32 %v1691, %v1786
      %v1854 = vadd.f32 %v1692, %v1789
      %v1855 = vadd.f32 %v1693, %v1792
      %v1856 = vadd.f32 %v1694, %v1795
      %v1857 = vadd.f32 %v1695, %v1798
      %v1858 = vadd.f32 %v1696, %v1801
      %v1859 = vadd.f32 %v1697, %v1804
      %v1860 = vadd.f32 %v1698, %v1807
      %v1861 = vadd.f32 %v1699, %v1810
      %v1862 = vadd.f32 %v1700, %v1813
      %v1863 = vadd.f32 %v1701, %v1816
      %v1864 = vadd.f32 %v1702, %v1819
      %v1865 = vadd.f32 %v1703, %v1822
      %v1866 = vadd.f32 %v1704, %v1825
      %v1867 = vadd.f32 %v1705, %v1828
      %v1868 = vadd.f32 %v1706, %v1831
      %v1869 = vadd.f32 %v1707, %v1834
      %v1870 = vadd.f32 %v1708, %v1837
      %s1871 = scalar_lea.vmem %s1, 1024
      %v1872 = vld [vmem:[%s1871] sm:$0xff]
      %v1873 = vld [vmem:[%s1871 + $0x8] sm:$0xff]
      %v1874 = vld [vmem:[%s1871 + $0x10] sm:$0xff]
      %v1875 = vld [vmem:[%s1871 + $0x18] sm:$0xff]
      %v1876 = vld [vmem:[%s1871 + $0x20] sm:$0xff]
      %v1877 = vld [vmem:[%s1871 + $0x28] sm:$0xff]
      %v1878 = vld [vmem:[%s1871 + $0x30] sm:$0xff]
      %v1879 = vld [vmem:[%s1871 + $0x38] sm:$0xff]
      %v1880 = vld [vmem:[%s1871 + $0x40] sm:$0xff]
      %v1881 = vld [vmem:[%s1871 + $0x48] sm:$0xff]
      %v1882 = vld [vmem:[%s1871 + $0x50] sm:$0xff]
      %v1883 = vld [vmem:[%s1871 + $0x58] sm:$0xff]
      %v1884 = vld [vmem:[%s1871 + $0x60] sm:$0xff]
      %v1885 = vld [vmem:[%s1871 + $0x68] sm:$0xff]
      %v1886 = vld [vmem:[%s1871 + $0x70] sm:$0xff]
      %v1887 = vld [vmem:[%s1871 + $0x78] sm:$0xff]
      %1888 = vmatpush.msra.mxu0 %v1887
      %1889 = vmatpush.msra.mxu0 %v1886
      %1890 = vmatpush.msra.mxu0 %v1885
      %1891 = vmatpush.msra.mxu0 %v1884
      %1892 = vmatpush.msra.mxu0 %v1883
      %1893 = vmatpush.msra.mxu0 %v1882
      %1894 = vmatpush.msra.mxu0 %v1881
      %1895 = vmatpush.msra.mxu0 %v1880
      %1896 = vmatpush.msra.mxu0 %v1879
      %1897 = vmatpush.msra.mxu0 %v1878
      %1898 = vmatpush.msra.mxu0 %v1877
      %1899 = vmatpush.msra.mxu0 %v1876
      %1900 = vmatpush.msra.mxu0 %v1875
      %1901 = vmatpush.msra.mxu0 %v1874
      %1902 = vmatpush.msra.mxu0 %v1873
      %1903 = vmatpush.msra.mxu0 %v1872
      %1904 = vmatmul.f32.gmra.mxu0 %v784
      %v1905 = vpop.f32.mrf.mxu0
      %v1906 = vadd.f32 0.0, %v1905
      %1907 = vmatmul.f32.gmra.mxu0 %v786
      %v1908 = vpop.f32.mrf.mxu0
      %v1909 = vadd.f32 0.0, %v1908
      %1910 = vmatmul.f32.gmra.mxu0 %v789
      %v1911 = vpop.f32.mrf.mxu0
      %v1912 = vadd.f32 0.0, %v1911
      %1913 = vmatmul.f32.gmra.mxu0 %v791
      %v1914 = vpop.f32.mrf.mxu0
      %v1915 = vadd.f32 0.0, %v1914
      %1916 = vmatmul.f32.gmra.mxu0 %v794
      %v1917 = vpop.f32.mrf.mxu0
      %v1918 = vadd.f32 0.0, %v1917
      %1919 = vmatmul.f32.gmra.mxu0 %v796
      %v1920 = vpop.f32.mrf.mxu0
      %v1921 = vadd.f32 0.0, %v1920
      %1922 = vmatmul.f32.gmra.mxu0 %v799
      %v1923 = vpop.f32.mrf.mxu0
      %v1924 = vadd.f32 0.0, %v1923
      %1925 = vmatmul.f32.gmra.mxu0 %v801
      %v1926 = vpop.f32.mrf.mxu0
      %v1927 = vadd.f32 0.0, %v1926
      %1928 = vmatmul.f32.gmra.mxu0 %v804
      %v1929 = vpop.f32.mrf.mxu0
      %v1930 = vadd.f32 0.0, %v1929
      %1931 = vmatmul.f32.gmra.mxu0 %v806
      %v1932 = vpop.f32.mrf.mxu0
      %v1933 = vadd.f32 0.0, %v1932
      %1934 = vmatmul.f32.gmra.mxu0 %v809
      %v1935 = vpop.f32.mrf.mxu0
      %v1936 = vadd.f32 0.0, %v1935
      %1937 = vmatmul.f32.gmra.mxu0 %v811
      %v1938 = vpop.f32.mrf.mxu0
      %v1939 = vadd.f32 0.0, %v1938
      %1940 = vmatmul.f32.gmra.mxu0 %v814
      %v1941 = vpop.f32.mrf.mxu0
      %v1942 = vadd.f32 0.0, %v1941
      %1943 = vmatmul.f32.gmra.mxu0 %v816
      %v1944 = vpop.f32.mrf.mxu0
      %v1945 = vadd.f32 0.0, %v1944
      %1946 = vmatmul.f32.gmra.mxu0 %v819
      %v1947 = vpop.f32.mrf.mxu0
      %v1948 = vadd.f32 0.0, %v1947
      %1949 = vmatmul.f32.gmra.mxu0 %v821
      %v1950 = vpop.f32.mrf.mxu0
      %v1951 = vadd.f32 0.0, %v1950
      %1952 = vmatmul.f32.gmra.mxu0 %v824
      %v1953 = vpop.f32.mrf.mxu0
      %v1954 = vadd.f32 0.0, %v1953
      %1955 = vmatmul.f32.gmra.mxu0 %v826
      %v1956 = vpop.f32.mrf.mxu0
      %v1957 = vadd.f32 0.0, %v1956
      %1958 = vmatmul.f32.gmra.mxu0 %v829
      %v1959 = vpop.f32.mrf.mxu0
      %v1960 = vadd.f32 0.0, %v1959
      %1961 = vmatmul.f32.gmra.mxu0 %v831
      %v1962 = vpop.f32.mrf.mxu0
      %v1963 = vadd.f32 0.0, %v1962
      %1964 = vmatmul.f32.gmra.mxu0 %v834
      %v1965 = vpop.f32.mrf.mxu0
      %v1966 = vadd.f32 0.0, %v1965
      %1967 = vmatmul.f32.gmra.mxu0 %v836
      %v1968 = vpop.f32.mrf.mxu0
      %v1969 = vadd.f32 0.0, %v1968
      %1970 = vmatmul.f32.gmra.mxu0 %v839
      %v1971 = vpop.f32.mrf.mxu0
      %v1972 = vadd.f32 0.0, %v1971
      %1973 = vmatmul.f32.gmra.mxu0 %v841
      %v1974 = vpop.f32.mrf.mxu0
      %v1975 = vadd.f32 0.0, %v1974
      %1976 = vmatmul.f32.gmra.mxu0 %v844
      %v1977 = vpop.f32.mrf.mxu0
      %v1978 = vadd.f32 0.0, %v1977
      %1979 = vmatmul.f32.gmra.mxu0 %v846
      %v1980 = vpop.f32.mrf.mxu0
      %v1981 = vadd.f32 0.0, %v1980
      %1982 = vmatmul.f32.gmra.mxu0 %v849
      %v1983 = vpop.f32.mrf.mxu0
      %v1984 = vadd.f32 0.0, %v1983
      %1985 = vmatmul.f32.gmra.mxu0 %v851
      %v1986 = vpop.f32.mrf.mxu0
      %v1987 = vadd.f32 0.0, %v1986
      %1988 = vmatmul.f32.gmra.mxu0 %v1380
      %v1989 = vpop.f32.mrf.mxu0
      %v1990 = vadd.f32 0.0, %v1989
      %1991 = vmatmul.f32.gmra.mxu0 %v1382
      %v1992 = vpop.f32.mrf.mxu0
      %v1993 = vadd.f32 0.0, %v1992
      %1994 = vmatmul.f32.gmra.mxu0 %v776
      %v1995 = vpop.f32.mrf.mxu0
      %v1996 = vadd.f32 0.0, %v1995
      %1997 = vmatmul.f32.gmra.mxu0 %v776
      %v1998 = vpop.f32.mrf.mxu0
      %v1999 = vadd.f32 0.0, %v1998
      %2000 = vdwg.mxu0
      %v2001 = vadd.f32 %v1839, %v1906
      %v2002 = vadd.f32 %v1840, %v1909
      %v2003 = vadd.f32 %v1841, %v1912
      %v2004 = vadd.f32 %v1842, %v1915
      %v2005 = vadd.f32 %v1843, %v1918
      %v2006 = vadd.f32 %v1844, %v1921
      %v2007 = vadd.f32 %v1845, %v1924
      %v2008 = vadd.f32 %v1846, %v1927
      %v2009 = vadd.f32 %v1847, %v1930
      %v2010 = vadd.f32 %v1848, %v1933
      %v2011 = vadd.f32 %v1849, %v1936
      %v2012 = vadd.f32 %v1850, %v1939
      %v2013 = vadd.f32 %v1851, %v1942
      %v2014 = vadd.f32 %v1852, %v1945
      %v2015 = vadd.f32 %v1853, %v1948
      %v2016 = vadd.f32 %v1854, %v1951
      %v2017 = vadd.f32 %v1855, %v1954
      %v2018 = vadd.f32 %v1856, %v1957
      %v2019 = vadd.f32 %v1857, %v1960
      %v2020 = vadd.f32 %v1858, %v1963
      %v2021 = vadd.f32 %v1859, %v1966
      %v2022 = vadd.f32 %v1860, %v1969
      %v2023 = vadd.f32 %v1861, %v1972
      %v2024 = vadd.f32 %v1862, %v1975
      %v2025 = vadd.f32 %v1863, %v1978
      %v2026 = vadd.f32 %v1864, %v1981
      %v2027 = vadd.f32 %v1865, %v1984
      %v2028 = vadd.f32 %v1866, %v1987
      %v2029 = vadd.f32 %v1867, %v1990
      %v2030 = vadd.f32 %v1868, %v1993
      %v2031 = vadd.f32 %v1869, %v1996
      %v2032 = vadd.f32 %v1870, %v1999
      %2033 = vst [vmem:[%s177] sm:$0xff] %v2001
      %2034 = vst [vmem:[%s177 + $0x8] sm:$0xff] %v2002
      %2035 = vst [vmem:[%s177 + $0x10] sm:$0xff] %v2003
      %2036 = vst [vmem:[%s177 + $0x18] sm:$0xff] %v2004
      %2037 = vst [vmem:[%s177 + $0x20] sm:$0xff] %v2005
      %2038 = vst [vmem:[%s177 + $0x28] sm:$0xff] %v2006
      %2039 = vst [vmem:[%s177 + $0x30] sm:$0xff] %v2007
      %2040 = vst [vmem:[%s177 + $0x38] sm:$0xff] %v2008
      %2041 = vst [vmem:[%s177 + $0x40] sm:$0xff] %v2009
      %2042 = vst [vmem:[%s177 + $0x48] sm:$0xff] %v2010
      %2043 = vst [vmem:[%s177 + $0x50] sm:$0xff] %v2011
      %2044 = vst [vmem:[%s177 + $0x58] sm:$0xff] %v2012
      %2045 = vst [vmem:[%s177 + $0x60] sm:$0xff] %v2013
      %2046 = vst [vmem:[%s177 + $0x68] sm:$0xff] %v2014
      %2047 = vst [vmem:[%s177 + $0x70] sm:$0xff] %v2015
      %2048 = vst [vmem:[%s177 + $0x78] sm:$0xff] %v2016
      %2049 = vst [vmem:[%s177 + $0x80] sm:$0xff] %v2017
      %2050 = vst [vmem:[%s177 + $0x88] sm:$0xff] %v2018
      %2051 = vst [vmem:[%s177 + $0x90] sm:$0xff] %v2019
      %2052 = vst [vmem:[%s177 + $0x98] sm:$0xff] %v2020
      %2053 = vst [vmem:[%s177 + $0xa0] sm:$0xff] %v2021
      %2054 = vst [vmem:[%s177 + $0xa8] sm:$0xff] %v2022
      %2055 = vst [vmem:[%s177 + $0xb0] sm:$0xff] %v2023
      %2056 = vst [vmem:[%s177 + $0xb8] sm:$0xff] %v2024
      %2057 = vst [vmem:[%s177 + $0xc0] sm:$0xff] %v2025
      %2058 = vst [vmem:[%s177 + $0xc8] sm:$0xff] %v2026
      %2059 = vst [vmem:[%s177 + $0xd0] sm:$0xff] %v2027
      %2060 = vst [vmem:[%s177 + $0xd8] sm:$0xff] %v2028
      %2061 = vst [vmem:[%s177 + $0xe0] sm:$0xff] %v2029
      %2062 = vst [vmem:[%s177 + $0xe8] sm:$0xff] %v2030
      %2063 = vst [vmem:[%s177 + $0xf0] sm:$0xff] %v2031
      %2064 = vst [vmem:[%s177 + $0xf8] sm:$0xff] %v2032
      %v2065 = vadd.f32 %v2001, %v2002
      %v2066 = vadd.f32 %v2065, %v2003
      %v2067 = vadd.f32 %v2066, %v2004
      %v2068 = vadd.f32 %v2067, %v2005
      %v2069 = vadd.f32 %v2068, %v2006
      %v2070 = vadd.f32 %v2069, %v2007
      %v2071 = vadd.f32 %v2070, %v2008
      %v2072 = vadd.f32 %v2071, %v2009
      %v2073 = vadd.f32 %v2072, %v2010
      %v2074 = vadd.f32 %v2073, %v2011
      %v2075 = vadd.f32 %v2074, %v2012
      %v2076 = vadd.f32 %v2075, %v2013
      %v2077 = vadd.f32 %v2076, %v2014
      %v2078 = vadd.f32 %v2077, %v2015
      %v2079 = vadd.f32 %v2078, %v2016
      %v2080 = vadd.f32 %v2079, %v2017
      %v2081 = vadd.f32 %v2080, %v2018
      %v2082 = vadd.f32 %v2081, %v2019
      %v2083 = vadd.f32 %v2082, %v2020
      %v2084 = vadd.f32 %v2083, %v2021
      %v2085 = vadd.f32 %v2084, %v2022
      %v2086 = vadd.f32 %v2085, %v2023
      %v2087 = vadd.f32 %v2086, %v2024
      %v2088 = vadd.f32 %v2087, %v2025
      %v2089 = vadd.f32 %v2088, %v2026
      %v2090 = vadd.f32 %v2089, %v2027
      %v2091 = vadd.f32 %v2090, %v2028
      %v2092 = vadd.f32 %v2091, %v2029
      %v2093 = vadd.f32 %v2092, %v2030
      %v2094 = vadd.f32 %v2093, %v2031
      %v2095 = vadd.f32 %v2094, %v2032
      %v2096 = vrot.slane %v2095, 4
      %v2097 = vadd.f32 %v2095, %v2096
      %v2098 = vrot.slane %v2097, 2
      %v2099 = vadd.f32 %v2097, %v2098
      %v2100 = vrot.slane %v2099, 1
      %v2101 = vadd.f32 %v2099, %v2100
      %v2102 = vmul.f32 %v2001, %v2001
      %v2103 = vmul.f32 %v2002, %v2002
      %v2104 = vmul.f32 %v2003, %v2003
      %v2105 = vmul.f32 %v2004, %v2004
      %v2106 = vmul.f32 %v2005, %v2005
      %v2107 = vmul.f32 %v2006, %v2006
      %v2108 = vmul.f32 %v2007, %v2007
      %v2109 = vmul.f32 %v2008, %v2008
      %v2110 = vmul.f32 %v2009, %v2009
      %v2111 = vmul.f32 %v2010, %v2010
      %v2112 = vmul.f32 %v2011, %v2011
      %v2113 = vmul.f32 %v2012, %v2012
      %v2114 = vmul.f32 %v2013, %v2013
      %v2115 = vmul.f32 %v2014, %v2014
      %v2116 = vmul.f32 %v2015, %v2015
      %v2117 = vmul.f32 %v2016, %v2016
      %v2118 = vmul.f32 %v2017, %v2017
      %v2119 = vmul.f32 %v2018, %v2018
      %v2120 = vmul.f32 %v2019, %v2019
      %v2121 = vmul.f32 %v2020, %v2020
      %v2122 = vmul.f32 %v2021, %v2021
      %v2123 = vmul.f32 %v2022, %v2022
      %v2124 = vmul.f32 %v2023, %v2023
      %v2125 = vmul.f32 %v2024, %v2024
      %v2126 = vmul.f32 %v2025, %v2025
      %v2127 = vmul.f32 %v2026, %v2026
      %v2128 = vmul.f32 %v2027, %v2027
      %v2129 = vmul.f32 %v2028, %v2028
      %v2130 = vmul.f32 %v2029, %v2029
      %v2131 = vmul.f32 %v2030, %v2030
      %v2132 = vmul.f32 %v2031, %v2031
      %v2133 = vmul.f32 %v2032, %v2032
      %v2134 = vadd.f32 %v2102, %v2103
      %v2135 = vadd.f32 %v2134, %v2104
      %v2136 = vadd.f32 %v2135, %v2105
      %v2137 = vadd.f32 %v2136, %v2106
      %v2138 = vadd.f32 %v2137, %v2107
      %v2139 = vadd.f32 %v2138, %v2108
      %v2140 = vadd.f32 %v2139, %v2109
      %v2141 = vadd.f32 %v2140, %v2110
      %v2142 = vadd.f32 %v2141, %v2111
      %v2143 = vadd.f32 %v2142, %v2112
      %v2144 = vadd.f32 %v2143, %v2113
      %v2145 = vadd.f32 %v2144, %v2114
      %v2146 = vadd.f32 %v2145, %v2115
      %v2147 = vadd.f32 %v2146, %v2116
      %v2148 = vadd.f32 %v2147, %v2117
      %v2149 = vadd.f32 %v2148, %v2118
      %v2150 = vadd.f32 %v2149, %v2119
      %v2151 = vadd.f32 %v2150, %v2120
      %v2152 = vadd.f32 %v2151, %v2121
      %v2153 = vadd.f32 %v2152, %v2122
      %v2154 = vadd.f32 %v2153, %v2123
      %v2155 = vadd.f32 %v2154, %v2124
      %v2156 = vadd.f32 %v2155, %v2125
      %v2157 = vadd.f32 %v2156, %v2126
      %v2158 = vadd.f32 %v2157, %v2127
      %v2159 = vadd.f32 %v2158, %v2128
      %v2160 = vadd.f32 %v2159, %v2129
      %v2161 = vadd.f32 %v2160, %v2130
      %v2162 = vadd.f32 %v2161, %v2131
      %v2163 = vadd.f32 %v2162, %v2132
      %v2164 = vadd.f32 %v2163, %v2133
      %v2165 = vrot.slane %v2164, 4
      %v2166 = vadd.f32 %v2164, %v2165
      %v2167 = vrot.slane %v2166, 2
      %v2168 = vadd.f32 %v2166, %v2167
      %v2169 = vrot.slane %v2168, 1
      %v2170 = vadd.f32 %v2168, %v2169
      %v2171 = vsel %vm246, %v2101, %v2170
      %2172 = vst [vmem:[%s181] sm:$0x3] %v2171
      %p2173 = scmp.lt.s32.totalorder %s15, 1
      %s2174 = scalar_select %p2173, %s15, 1
      %s2175 = smul.addr %s2174, 32
      %s2176 = smul.addr %s2175, 8
      %s2177 = scalar_lea.vmem %s2, %s2176
      %p2178 = scmp.lt.s32.totalorder %s15, 1
      %s2179 = scalar_select %p2178, %s15, 1
      %s2180 = smul.addr %s2179, 2
      %s2181 = scalar_lea.vmem %s3, %s2180
      // Predicated region
      $region29: #{residual_block_nhwc.3} parent=27 // pred_check
        %p2182 = pneg %p80
      $region30: #{residual_block_nhwc.3} parent=27 // pred_check_branch
        %2184 = sbr.rel (%p2182) target = $region32
      $region31: #{residual_block_nhwc.3} parent=27 // pred_region
        _
      $region32: #{residual_block_nhwc.3} parent=27 // pred_fallthru
        _
      // Predicated region
      $region33: #{residual_block_nhwc.3} parent=27 // pred_check
        %p2185 = pneg %p106
      $region34: #{residual_block_nhwc.3} parent=27 // pred_check_branch
        %2187 = sbr.rel (%p2185) target = $region36
      $region35: #{residual_block_nhwc.3} parent=27 // pred_region
        _
      $region36: #{residual_block_nhwc.3} parent=27 // pred_fallthru
        _
    $region28: #{residual_block_nhwc.3} parent=5 // pred_fallthru
      _
    %p2188 = scmp.le.s32.totalorder 2, %s10
    // Predicated region
    $region37: #{residual_block_nhwc.3} parent=5 // pred_check
      %p2189 = pneg %p2188
    $region38: #{residual_block_nhwc.3} parent=5 // pred_check_branch
      %2191 = sbr.rel (%p2189) target = $region40
    $region39: #{residual_block_nhwc.3} parent=5 // pred_region
      %s2192 = ssub.s32 %s10, 2
      // Predicated region
      $region41: #{residual_block_nhwc.3} parent=39 // pred_check
        %p2193 = pneg %p86
      $region42: #{residual_block_nhwc.3} parent=39 // pred_check_branch
        %2195 = sbr.rel (%p2193) target = $region44
      $region43: #{residual_block_nhwc.3} parent=39 // pred_region
        %p2196 = scmp.lt.s32.totalorder %s16, 1
        %s2197 = scalar_select %p2196, %s16, 1
        %s2198 = smul.addr %s2197, 32
        %s2199 = smul.addr %s2198, 8
        %s2200 = scalar_lea.vmem %s2, %s2199
      $region44: #{residual_block_nhwc.3} parent=39 // pred_fallthru
        _
      // Predicated region
      $region45: #{residual_block_nhwc.3} parent=39 // pred_check
        %p2201 = pneg %p112
      $region46: #{residual_block_nhwc.3} parent=39 // pred_check_branch
        %2203 = sbr.rel (%p2201) target = $region48
      $region47: #{residual_block_nhwc.3} parent=39 // pred_region
        %p2204 = scmp.lt.s32.totalorder %s16, 1
        %s2205 = scalar_select %p2204, %s16, 1
        %s2206 = smul.addr %s2205, 2
        %s2207 = scalar_lea.vmem %s3, %s2206
      $region48: #{residual_block_nhwc.3} parent=39 // pred_fallthru
        _
    $region40: #{residual_block_nhwc.3} parent=5 // pred_fallthru
      _
  $region6: #{residual_block_nhwc.3} parent=0 // loop_footer
    %s14 = sadd.s32 1, %s10
  $region7: #{residual_block_nhwc.3} parent=0 // loop_footer_branch
    %9 = sbr.rel target = $region3
  $region8: #{residual_block_nhwc.3} parent=0 // loop_exit
    _

// kernel: residual_block_nhwc.4
$region0: #{residual_block_nhwc.4}
  #allocation0 [shape = 'u32[]', space=smem, size = 0x4, offset = 0x4, fixed_abs, tag = 'smem constant byte address 0x4 - core index']
  #allocation1 [shape = 'u32[72,128]{1,0:T(1,128)}', space=vmem, size = 0x9000, scoped, tag = 'internal scratch']
  %s0 = inlined_call_operand.vmem [shape: f32[2,16,16,128], index: 0, kind: input, shape index: {}]
  %s1 = inlined_call_operand.vmem [shape: f32[1,128], index: 1, kind: input, shape index: {}]
  %s2 = inlined_call_operand.vmem [shape: f32[1,128], index: 2, kind: input, shape index: {}]
  %s3 = inlined_call_operand.vmem [shape: f32[9,128,128], index: 3, kind: input, shape index: {}]
  %s4 = inlined_call_operand.vmem [shape: f32[2,16,16,128], index: 4, kind: output, shape index: {0}]
  %s5 = inlined_call_operand.vmem [shape: f32[2,2,128], index: 5, kind: output, shape index: {1}]
  %6 = xla_tuple %s4, %s5
  %s7 = sld [smem:[#allocation0]]
  $region57: #{residual_block_nhwc.4} parent=0
    _
  %s9 = ssub.s32 1, %s7
  %s10 = scalar_select 0, %s9, %s7
  loop: start=0, step=1, limit=4
  $region2: #{residual_block_nhwc.4} parent=0 // loop_pre_header
    _
  $region3: #{residual_block_nhwc.4} parent=0 // loop_header
    %s12 = sphi 0, %s16
    %p13 = scmp.ge.s32.totalorder %s12, 4
    %s22 = sphi 0, %s24
    %s25 = sphi 0, %s22
    %s26 = sphi 0, %s25
    %s42 = sphi 0, %s26
    %s46 = sphi 0, %s46
    %s48 = sphi 0, %s46
    %s49 = sphi 0, %s48
    %s63 = sphi 0, %s49
    %s67 = sphi 0, %s67
    %s69 = sphi 0, %s67
    %s70 = sphi 0, %s69
    %s84 = sphi 0, %s70
    %s88 = sphi 0, %s88
    %s90 = sphi 0, %s88
    %s91 = sphi 0, %s90
    %s105 = sphi 0, %s91
    %s111 = sphi 0, %s113
    %s114 = sphi 0, %s111
    %s115 = sphi 0, %s114
    %s131 = sphi 0, %s115
    %s137 = sphi 0, %s139
    %s140 = sphi 0, %s137
    %s141 = sphi 0, %s140
    %s157 = sphi 0, %s141
  $region4: #{residual_block_nhwc.4} parent=0 // loop_header_branch
    %15 = sbr.rel (%p13) target = $region8
  $region5: #{residual_block_nhwc.4} parent=0 // loop_body
    %s17 = ssub.s32 %s12, 1
    %s18 = ssub.s32 %s12, 2
    %s19 = sadd.s32 %s12, 1
    %s20 = ssub.s32 %s12, %s19
    %p21 = scmp.eq.s32.totalorder %s20, 0
    %s23 = sadd.s32 %s22, 1
    %s24 = scalar_select %p21, %s22, %s23
    %p27 = pneg %p21
    %p28 = scmp.eq.s32.totalorder %s12, 1
    %p29 = por %p27, %p28
    %p30 = scmp.ne.s32.totalorder %s22, %s25
    %p31 = scmp.eq.s32.totalorder %s12, 0
    %p32 = por %p30, %p31
    %p33 = scmp.ne.s32.totalorder %s22, %s25
    %p34 = scmp.eq.s32.totalorder %s17, 1
    %p35 = por %p33, %p34
    %p36 = scmp.ne.s32.totalorder %s25, %s26
    %p37 = scmp.eq.s32.totalorder %s17, 0
    %p38 = por %p36, %p37
    %p39 = scmp.ne.s32.totalorder %s25, %s26
    %p40 = scmp.eq.s32.totalorder %s18, 1
    %p41 = por %p39, %p40
    %p43 = scmp.ne.s32.totalorder %s26, %s42
    %p44 = scmp.eq.s32.totalorder %s18, 0
    %p45 = por %p43, %p44
    %s47 = sadd.s32 %s46, 1
    %p50 = scmp.eq.s32.totalorder %s12, 1
    %p51 = scmp.ne.s32.totalorder %s46, %s48
    %p52 = scmp.eq.s32.totalorder %s12, 0
    %p53 = por %p51, %p52
    %p54 = scmp.ne.s32.totalorder %s46, %s48
    %p55 = scmp.eq.s32.totalorder %s17, 1
    %p56 = por %p54, %p55
    %p57 = scmp.ne.s32.totalorder %s48, %s49
    %p58 = scmp.eq.s32.totalorder %s17, 0
    %p59 = por %p57, %p58
    %p60 = scmp.ne.s32.totalorder %s48, %s49
    %p61 = scmp.eq.s32.totalorder %s18, 1
    %p62 = por %p60, %p61
    %p64 = scmp.ne.s32.totalorder %s49, %s63
    %p65 = scmp.eq.s32.totalorder %s18, 0
    %p66 = por %p64, %p65
    %s68 = sadd.s32 %s67, 1
    %p71 = scmp.eq.s32.totalorder %s12, 1
    %p72 = scmp.ne.s32.totalorder %s67, %s69
    %p73 = scmp.eq.s32.totalorder %s12, 0
    %p74 = por %p72, %p73
    %p75 = scmp.ne.s32.totalorder %s67, %s69
    %p76 = scmp.eq.s32.totalorder %s17, 1
    %p77 = por %p75, %p76
    %p78 = scmp.ne.s32.totalorder %s69, %s70
    %p79 = scmp.eq.s32.totalorder %s17, 0
    %p80 = por %p78, %p79
    %p81 = scmp.ne.s32.totalorder %s69, %s70
    %p82 = scmp.eq.s32.totalorder %s18, 1
    %p83 = por %p81, %p82
    %p85 = scmp.ne.s32.totalorder %s70, %s84
    %p86 = scmp.eq.s32.totalorder %s18, 0
    %p87 = por %p85, %p86
    %s89 = sadd.s32 %s88, 1
    %p92 = scmp.eq.s32.totalorder %s12, 1
    %p93 = scmp.ne.s32.totalorder %s88, %s90
    %p94 = scmp.eq.s32.totalorder %s12, 0
    %p95 = por %p93, %p94
    %p96 = scmp.ne.s32.totalorder %s88, %s90
    %p97 = scmp.eq.s32.totalorder %s17, 1
    %p98 = por %p96, %p97
    %p99 = scmp.ne.s32.totalorder %s90, %s91
    %p100 = scmp.eq.s32.totalorder %s17, 0
    %p101 = por %p99, %p100
    %p102 = scmp.ne.s32.totalorder %s90, %s91
    %p103 = scmp.eq.s32.totalorder %s18, 1
    %p104 = por %p102, %p103
    %p106 = scmp.ne.s32.totalorder %s91, %s105
    %p107 = scmp.eq.s32.totalorder %s18, 0
    %p108 = por %p106, %p107
    %s109 = ssub.s32 %s12, %s19
    %p110 = scmp.eq.s32.totalorder %s109, 0
    %s112 = sadd.s32 %s111, 1
    %s113 = scalar_select %p110, %s111, %s112
    %p116 = pneg %p110
    %p117 = scmp.eq.s32.totalorder %s12, 1
    %p118 = por %p116, %p117
    %p119 = scmp.ne.s32.totalorder %s111, %s114
    %p120 = scmp.eq.s32.totalorder %s12, 0
    %p121 = por %p119, %p120
    %p122 = scmp.ne.s32.totalorder %s111, %s114
    %p123 = scmp.eq.s32.totalorder %s17, 1
    %p124 = por %p122, %p123
    %p125 = scmp.ne.s32.totalorder %s114, %s115
    %p126 = scmp.eq.s32.totalorder %s17, 0
    %p127 = por %p125, %p126
    %p128 = scmp.ne.s32.totalorder %s114, %s115
    %p129 = scmp.eq.s32.totalorder %s18, 1
    %p130 = por %p128, %p129
    %p132 = scmp.ne.s32.totalorder %s115, %s131
    %p133 = scmp.eq.s32.totalorder %s18, 0
    %p134 = por %p132, %p133
    %s135 = ssub.s32 %s12, %s19
    %p136 = scmp.eq.s32.totalorder %s135, 0
    %s138 = sadd.s32 %s137, 1
    %s139 = scalar_select %p136, %s137, %s138
    %p142 = pneg %p136
    %p143 = scmp.eq.s32.totalorder %s12, 1
    %p144 = por %p142, %p143
    %p145 = scmp.ne.s32.totalorder %s137, %s140
    %p146 = scmp.eq.s32.totalorder %s12, 0
    %p147 = por %p145, %p146
    %p148 = scmp.ne.s32.totalorder %s137, %s140
    %p149 = scmp.eq.s32.totalorder %s17, 1
    %p150 = por %p148, %p149
    %p151 = scmp.ne.s32.totalorder %s140, %s141
    %p152 = scmp.eq.s32.totalorder %s17, 0
    %p153 = por %p151, %p152
    %p154 = scmp.ne.s32.totalorder %s140, %s141
    %p155 = scmp.eq.s32.totalorder %s18, 1
    %p156 = por %p154, %p155
    %p158 = scmp.ne.s32.totalorder %s141, %s157
    %p159 = scmp.eq.s32.totalorder %s18, 0
    %p160 = por %p158, %p159
    %p161 = scmp.le.s32.totalorder 1, %s12
    %p162 = scmp.lt.s32.totalorder %s12, 3
    %p163 = pnand %p161, %p162
    %p164 = pneg %p163
    // Predicated region
    $region9: #{residual_block_nhwc.4} parent=5 // pred_check
      _
    $region10: #{residual_block_nhwc.4} parent=5 // pred_check_branch
      %166 = sbr.rel (%p163) target = $region12
    $region11: #{residual_block_nhwc.4} parent=5 // pred_region
      %s167 = ssub.s32 %s12, 1
      // Predicated region
      $region13: #{residual_block_nhwc.4} parent=11 // pred_check
        %p168 = pneg %p59
      $region14: #{residual_block_nhwc.4} parent=11 // pred_check_branch
        %170 = sbr.rel (%p168) target = $region16
      $region15: #{residual_block_nhwc.4} parent=11 // pred_region
        _
      $region16: #{residual_block_nhwc.4} parent=11 // pred_fallthru
        _
      // Predicated region
      $region17: #{residual_block_nhwc.4} parent=11 // pred_check
        %p171 = pneg %p80
      $region18: #{residual_block_nhwc.4} parent=11 // pred_check_branch
        %173 = sbr.rel (%p171) target = $region20
      $region19: #{residual_block_nhwc.4} parent=11 // pred_region
        _
      $region20: #{residual_block_nhwc.4} parent=11 // pred_fallthru
        _
      // Predicated region
      $region21: #{residual_block_nhwc.4} parent=11 // pred_check
        %p174 = pneg %p101
      $region22: #{residual_block_nhwc.4} parent=11 // pred_check_branch
        %176 = sbr.rel (%p174) target = $region24
      $region23: #{residual_block_nhwc.4} parent=11 // pred_region
        _
      $region24: #{residual_block_nhwc.4} parent=11 // pred_fallthru
        _
    $region12: #{residual_block_nhwc.4} parent=5 // pred_fallthru
      _
    %p177 = scmp.lt.s32.totalorder %s12, 2
    // Predicated region
    $region25: #{residual_block_nhwc.4} parent=5 // pred_check
      %p178 = pneg %p177
    $region26: #{residual_block_nhwc.4} parent=5 // pred_check_branch
      %180 = sbr.rel (%p178) target = $region28
    $region27: #{residual_block_nhwc.4} parent=5 // pred_region
      // Predicated region
      $region29: #{residual_block_nhwc.4} parent=27 // pred_check
        %p181 = pneg %p32
      $region30: #{residual_block_nhwc.4} parent=27 // pred_check_branch
        %183 = sbr.rel (%p181) target = $region32
      $region31: #{residual_block_nhwc.4} parent=27 // pred_region
        %p184 = scmp.lt.s32.totalorder %s12, 1
        %s185 = scalar_select %p184, %s12, 1
        %s186 = smul.addr %s185, 32
        %s187 = smul.addr %s186, 8
        %s188 = scalar_lea.vmem %s0, %s187
      $region32: #{residual_block_nhwc.4} parent=27 // pred_fallthru
        _
    $region28: #{residual_block_nhwc.4} parent=5 // pred_fallthru
      _
    %p189 = scmp.le.s32.totalorder 1, %s12
    %p190 = scmp.lt.s32.totalorder %s12, 3
    %p191 = pnand %p189, %p190
    %p192 = pneg %p191
    // Predicated region
    $region33: #{residual_block_nhwc.4} parent=5 // pred_check
      _
    $region34: #{residual_block_nhwc.4} parent=5 // pred_check_branch
      %194 = sbr.rel (%p191) target = $region36
    $region35: #{residual_block_nhwc.4} parent=5 // pred_region
      %s195 = ssub.s32 %s12, 1
      %p196 = scmp.lt.s32.totalorder %s17, 1
      %s197 = scalar_select %p196, %s17, 1
      %s198 = smul.addr %s197, 32
      %s199 = smul.addr %s198, 8
      %s200 = scalar_lea.vmem %s0, %s199
      %p201 = pneg %p38
      %p202 = pneg %p35
      %p203 = pneg %p59
      %p204 = pneg %p56
      %p205 = pneg %p80
      %p206 = pneg %p77
      %p207 = pneg %p101
      %p208 = pneg %p98
      %p209 = pneg %p127
      %p210 = pneg %p124
      %p211 = scmp.lt.s32.totalorder %s17, 1
      %s212 = scalar_select %p211, %s17, 1
      %s213 = smul.addr %s212, 32
      %s214 = smul.addr %s213, 8
      %s215 = scalar_lea.vmem %s4, %s214
      %p216 = pneg %p153
      %p217 = pneg %p150
      %p218 = scmp.lt.s32.totalorder %s17, 1
      %s219 = scalar_select %p218, %s17, 1
      %s220 = smul.addr %s219, 2
      %s221 = scalar_lea.vmem %s5, %s220
      %p222 = scmp.lt.s32.totalorder %s17, 1
      %s223 = scalar_select %p222, %s17, 1
      %s224 = smul.addr %s223, 32
      %s225 = smul.addr %s224, 8
      %s226 = scalar_lea.vmem %s0, %s225
      %p227 = scmp.lt.s32.totalorder %s17, 1
      %s228 = scalar_select %p227, %s17, 1
      %s229 = smul.addr %s228, 32
      %s230 = smul.addr %s229, 8
      %s231 = scalar_lea.vmem %s4, %s230
      %p232 = scmp.lt.s32.totalorder %s17, 1
      %s233 = scalar_select %p232, %s17, 1
      %s234 = smul.addr %s233, 2
      %s235 = scalar_lea.vmem %s5, %s234
      %v236 = vld [vmem:[%s1] sm:$0x1]
      %v237 = vld [vmem:[%s2] sm:$0x1]
      %v238 = vld [vmem:[%s226] sm:$0xff]
      %v239 = vld [vmem:[%s226 + $0x8] sm:$0xff]
      %v240 = vld [vmem:[%s226 + $0x10] sm:$0xff]
      %v241 = vld [vmem:[%s226 + $0x18] sm:$0xff]
      %v242 = vld [vmem:[%s226 + $0x20] sm:$0xff]
      %v243 = vld [vmem:[%s226 + $0x28] sm:$0xff]
      %v244 = vld [vmem:[%s226 + $0x30] sm:$0xff]
      %v245 = vld [vmem:[%s226 + $0x38] sm:$0xff]
      %v246 = vld [vmem:[%s226 + $0x40] sm:$0xff]
      %v247 = vld [vmem:[%s226 + $0x48] sm:$0xff]
      %v248 = vld [vmem:[%s226 + $0x50] sm:$0xff]
      %v249 = vld [vmem:[%s226 + $0x58] sm:$0xff]
      %v250 = vld [vmem:[%s226 + $0x60] sm:$0xff]
      %v251 = vld [vmem:[%s226 + $0x68] sm:$0xff]
      %v252 = vld [vmem:[%s226 + $0x70] sm:$0xff]
      %v253 = vld [vmem:[%s226 + $0x78] sm:$0xff]
      %v254 = vld [vmem:[%s226 + $0x80] sm:$0xff]
      %v255 = vld [vmem:[%s226 + $0x88] sm:$0xff]
      %v256 = vld [vmem:[%s226 + $0x90] sm:$0xff]
      %v257 = vld [vmem:[%s226 + $0x98] sm:$0xff]
      %v258 = vld [vmem:[%s226 + $0xa0] sm:$0xff]
      %v259 = vld [vmem:[%s226 + $0xa8] sm:$0xff]
      %v260 = vld [vmem:[%s226 + $0xb0] sm:$0xff]
      %v261 = vld [vmem:[%s226 + $0xb8] sm:$0xff]
      %v262 = vld [vmem:[%s226 + $0xc0] sm:$0xff]
      %v263 = vld [vmem:[%s226 + $0xc8] sm:$0xff]
      %v264 = vld [vmem:[%s226 + $0xd0] sm:$0xff]
      %v265 = vld [vmem:[%s226 + $0xd8] sm:$0xff]
      %v266 = vld [vmem:[%s226 + $0xe0] sm:$0xff]
      %v267 = vld [vmem:[%s226 + $0xe8] sm:$0xff]
      %v268 = vld [vmem:[%s226 + $0xf0] sm:$0xff]
      %v269 = vld [vmem:[%s226 + $0xf8] sm:$0xff]
      %v271 = vperm.slane %v236, 0
      %v273 = vmul.f32 %v238, %v271
      %v274 = vmul.f32 %v239, %v271
      %v275 = vmul.f32 %v240, %v271
      %v276 = vmul.f32 %v241, %v271
      %v277 = vmul.f32 %v242, %v271
      %v278 = vmul.f32 %v243, %v271
      %v279 = vmul.f32 %v244, %v271
      %v280 = vmul.f32 %v245, %v271
      %v281 = vmul.f32 %v246, %v271
      %v282 = vmul.f32 %v247, %v271
      %v283 = vmul.f32 %v248, %v271
      %v284 = vmul.f32 %v249, %v271
      %v285 = vmul.f32 %v250, %v271
      %v286 = vmul.f32 %v251, %v271
      %v287 = vmul.f32 %v252, %v271
      %v288 = vmul.f32 %v253, %v271
      %v289 = vmul.f32 %v254, %v271
      %v290 = vmul.f32 %v255, %v271
      %v291 = vmul.f32 %v256, %v271
      %v292 = vmul.f32 %v257, %v271
      %v293 = vmul.f32 %v258, %v271
      %v294 = vmul.f32 %v259, %v271
      %v295 = vmul.f32 %v260, %v271
      %v296 = vmul.f32 %v261, %v271
      %v297 = vmul.f32 %v262, %v271
      %v298 = vmul.f32 %v263, %v271
      %v299 = vmul.f32 %v264, %v271
      %v300 = vmul.f32 %v265, %v271
      %v301 = vmul.f32 %v266, %v271
      %v302 = vmul.f32 %v267, %v271
      %v303 = vmul.f32 %v268, %v271
      %v304 = vmul.f32 %v269, %v271
      %v306 = vperm.slane %v237, 0
      %v308 = vadd.f32 %v273, %v306
      %v309 = vadd.f32 %v274, %v306
      %v310 = vadd.f32 %v275, %v306
      %v311 = vadd.f32 %v276, %v306
      %v312 = vadd.f32 %v277, %v306
      %v313 = vadd.f32 %v278, %v306
      %v314 = vadd.f32 %v279, %v306
      %v315 = vadd.f32 %v280, %v306
      %v316 = vadd.f32 %v281, %v306
      %v317 = vadd.f32 %v282, %v306
      %v318 = vadd.f32 %v283, %v306
      %v319 = vadd.f32 %v284, %v306
      %v320 = vadd.f32 %v285, %v306
      %v321 = vadd.f32 %v286, %v306
      %v322 = vadd.f32 %v287, %v306
      %v323 = vadd.f32 %v288, %v306
      %v324 = vadd.f32 %v289, %v306
      %v325 = vadd.f32 %v290, %v306
      %v326 = vadd.f32 %v291, %v306
      %v327 = vadd.f32 %v292, %v306
      %v328 = vadd.f32 %v293, %v306
      %v329 = vadd.f32 %v294, %v306
      %v330 = vadd.f32 %v295, %v306
      %v331 = vadd.f32 %v296, %v306
      %v332 = vadd.f32 %v297, %v306
      %v333 = vadd.f32 %v298, %v306
      %v334 = vadd.f32 %v299, %v306
      %v335 = vadd.f32 %v300, %v306
      %v336 = vadd.f32 %v301, %v306
      %v337 = vadd.f32 %v302, %v306
      %v338 = vadd.f32 %v303, %v306
      %v339 = vadd.f32 %v304, %v306
      %v340 = vmax.f32 %v308, 0.0
      %v341 = vmax.f32 %v309, 0.0
      %v342 = vmax.f32 %v310, 0.0
      %v343 = vmax.f32 %v311, 0.0
      %v344 = vmax.f32 %v312, 0.0
      %v345 = vmax.f32 %v313, 0.0
      %v346 = vmax.f32 %v314, 0.0
      %v347 = vmax.f32 %v315, 0.0
      %v348 = vmax.f32 %v316, 0.0
      %v349 = vmax.f32 %v317, 0.0
      %v350 = vmax.f32 %v318, 0.0
      %v351 = vmax.f32 %v319, 0.0
      %v352 = vmax.f32 %v320, 0.0
      %v353 = vmax.f32 %v321, 0.0
      %v354 = vmax.f32 %v322, 0.0
      %v355 = vmax.f32 %v323, 0.0
      %v356 = vmax.f32 %v324, 0.0
      %v357 = vmax.f32 %v325, 0.0
      %v358 = vmax.f32 %v326, 0.0
      %v359 = vmax.f32 %v327, 0.0
      %v360 = vmax.f32 %v328, 0.0
      %v361 = vmax.f32 %v329, 0.0
      %v362 = vmax.f32 %v330, 0.0
      %v363 = vmax.f32 %v331, 0.0
      %v364 = vmax.f32 %v332, 0.0
      %v365 = vmax.f32 %v333, 0.0
      %v366 = vmax.f32 %v334, 0.0
      %v367 = vmax.f32 %v335, 0.0
      %v368 = vmax.f32 %v336, 0.0
      %v369 = vmax.f32 %v337, 0.0
      %v370 = vmax.f32 %v338, 0.0
      %v371 = vmax.f32 %v339, 0.0
      %vm404 = vcmask 1040384
      %v405 = vrot.slane %v340, 7
      %v406 = vrot.slane %v341, 7
      %v407 = vsel %vm404, %v405, %v406
      %v408 = vrot.slane %v342, 7
      %v409 = vrot.slane %v343, 7
      %v410 = vsel %vm404, %v408, %v409
      %v411 = vrot.slane %v344, 7
      %v412 = vrot.slane %v345, 7
      %v413 = vsel %vm404, %v411, %v412
      %v414 = vrot.slane %v346, 7
      %v415 = vrot.slane %v347, 7
      %v416 = vsel %vm404, %v414, %v415
      %v417 = vrot.slane %v348, 7
      %v418 = vrot.slane %v349, 7
      %v419 = vsel %vm404, %v417, %v418
      %v420 = vrot.slane %v350, 7
      %v421 = vrot.slane %v351, 7
      %v422 = vsel %vm404, %v420, %v421
      %v423 = vrot.slane %v352, 7
      %v424 = vrot.slane %v353, 7
      %v425 = vsel %vm404, %v423, %v424
      %v426 = vrot.slane %v354, 7
      %v427 = vrot.slane %v355, 7
      %v428 = vsel %vm404, %v426, %v427
      %v429 = vrot.slane %v356, 7
      %v430 = vrot.slane %v357, 7
      %v431 = vsel %vm404, %v429, %v430
      %v432 = vrot.slane %v358, 7
      %v433 = vrot.slane %v359, 7
      %v434 = vsel %vm404, %v432, %v433
      %v435 = vrot.slane %v360, 7
      %v436 = vrot.slane %v361, 7
      %v437 = vsel %vm404, %v435, %v436
      %v438 = vrot.slane %v362, 7
      %v439 = vrot.slane %v363, 7
      %v440 = vsel %vm404, %v438, %v439
      %v441 = vrot.slane %v364, 7
      %v442 = vrot.slane %v365, 7
      %v443 = vsel %vm404, %v441, %v442
      %v444 = vrot.slane %v366, 7
      %v445 = vrot.slane %v367, 7
      %v446 = vsel %vm404, %v444, %v445
      %v447 = vrot.slane %v368, 7
      %v448 = vrot.slane %v369, 7
      %v449 = vsel %vm404, %v447, %v448
      %v450 = vrot.slane %v370, 7
      %v451 = vrot.slane %v371, 7
      %v452 = vsel %vm404, %v450, %v451
      %v501 = vsel %vm404, 0.0, %v405
      %v502 = vsel %vm404, 0.0, %v408
      %v503 = vsel %vm404, 0.0, %v411
      %v504 = vsel %vm404, 0.0, %v414
      %v505 = vsel %vm404, 0.0, %v417
      %v506 = vsel %vm404, 0.0, %v420
      %v507 = vsel %vm404, 0.0, %v423
      %v508 = vsel %vm404, 0.0, %v426
      %v509 = vsel %vm404, 0.0, %v429
      %v510 = vsel %vm404, 0.0, %v432
      %v511 = vsel %vm404, 0.0, %v435
      %v512 = vsel %vm404, 0.0, %v438
      %v513 = vsel %vm404, 0.0, %v441
      %v514 = vsel %vm404, 0.0, %v444
      %v515 = vsel %vm404, 0.0, %v447
      %v516 = vsel %vm404, 0.0, %v450
      %v517 = vsel %vm404, %v406, 0.0
      %v518 = vsel %vm404, %v409, 0.0
      %v519 = vsel %vm404, %v412, 0.0
      %v520 = vsel %vm404, %v415, 0.0
      %v521 = vsel %vm404, %v418, 0.0
      %v522 = vsel %vm404, %v421, 0.0
      %v523 = vsel %vm404, %v424, 0.0
      %v524 = vsel %vm404, %v427, 0.0
      %v525 = vsel %vm404, %v430, 0.0
      %v526 = vsel %vm404, %v433, 0.0
      %v527 = vsel %vm404, %v436, 0.0
      %v528 = vsel %vm404, %v439, 0.0
      %v529 = vsel %vm404, %v442, 0.0
      %v530 = vsel %vm404, %v445, 0.0
      %v531 = vsel %vm404, %v448, 0.0
      %v532 = vsel %vm404, %v451, 0.0
      %v533 = vld [vmem:[%s3] sm:$0xff]
      %v534 = vld [vmem:[%s3 + $0x8] sm:$0xff]
      %v535 = vld [vmem:[%s3 + $0x10] sm:$0xff]
      %v536 = vld [vmem:[%s3 + $0x18] sm:$0xff]
      %v537 = vld [vmem:[%s3 + $0x20] sm:$0xff]
      %v538 = vld [vmem:[%s3 + $0x28] sm:$0xff]
      %v539 = vld [vmem:[%s3 + $0x30] sm:$0xff]
      %v540 = vld [vmem:[%s3 + $0x38] sm:$0xff]
      %v541 = vld [vmem:[%s3 + $0x40] sm:$0xff]
      %v542 = vld [vmem:[%s3 + $0x48] sm:$0xff]
      %v543 = vld [vmem:[%s3 + $0x50] sm:$0xff]
      %v544 = vld [vmem:[%s3 + $0x58] sm:$0xff]
      %v545 = vld [vmem:[%s3 + $0x60] sm:$0xff]
      %v546 = vld [vmem:[%s3 + $0x68] sm:$0xff]
      %v547 = vld [vmem:[%s3 + $0x70] sm:$0xff]
      %v548 = vld [vmem:[%s3 + $0x78] sm:$0xff]
      %vm580 = vcmask 1046528
      %v581 = vrot.slane 0.0, 1
      %v582 = vsel %vm580, %v581, %v581
      %v583 = vrot.slane %v501, 1
      %v584 = vrot.slane %v407, 1
      %v585 = vsel %vm580, %v583, %v584
      %v586 = vrot.slane %v517, 1
      %v587 = vsel %vm580, %v584, %v586
      %v588 = vrot.slane %v502, 1
      %v589 = vrot.slane %v410, 1
      %v590 = vsel %vm580, %v588, %v589
      %v591 = vrot.slane %v518, 1
      %v592 = vsel %vm580, %v589, %v591
      %v593 = vrot.slane %v503, 1
      %v594 = vrot.slane %v413, 1
      %v595 = vsel %vm580, %v593, %v594
      %v596 = vrot.slane %v519, 1
      %v597 = vsel %vm580, %v594, %v596
      %v598 = vrot.slane %v504, 1
      %v599 = vrot.slane %v416, 1
      %v600 = vsel %vm580, %v598, %v599
      %v601 = vrot.slane %v520, 1
      %v602 = vsel %vm580, %v599, %v601
      %v603 = vrot.slane %v505, 1
      %v604 = vrot.slane %v419, 1
      %v605 = vsel %vm580, %v603, %v604
      %v606 = vrot.slane %v521, 1
      %v607 = vsel %vm580, %v604, %v606
      %v608 = vrot.slane %v506, 1
      %v609 = vrot.slane %v422, 1
      %v610 = vsel %vm580, %v608, %v609
      %v611 = vrot.slane %v522, 1
      %v612 = vsel %vm580, %v609, %v611
      %v613 = vrot.slane %v507, 1
      %v614 = vrot.slane %v425, 1
      %v615 = vsel %vm580, %v613, %v614
      %v616 = vrot.slane %v523, 1
      %v617 = vsel %vm580, %v614, %v616
      %v618 = vrot.slane %v508, 1
      %v619 = vrot.slane %v428, 1
      %v620 = vsel %vm580, %v618, %v619
      %v621 = vrot.slane %v524, 1
      %v622 = vsel %vm580, %v619, %v621
      %v623 = vrot.slane %v509, 1
      %v624 = vrot.slane %v431, 1
      %v625 = vsel %vm580, %v623, %v624
      %v626 = vrot.slane %v525, 1
      %v627 = vsel %vm580, %v624, %v626
      %v628 = vrot.slane %v510, 1
      %v629 = vrot.slane %v434, 1
      %v630 = vsel %vm580, %v628, %v629
      %v631 = vrot.slane %v526, 1
      %v632 = vsel %vm580, %v629, %v631
      %v633 = vrot.slane %v511, 1
      %v634 = vrot.slane %v437, 1
      %v635 = vsel %vm580, %v633, %v634
      %v636 = vrot.slane %v527, 1
      %v637 = vsel %vm580, %v634, %v636
      %v638 = vrot.slane %v512, 1
      %v639 = vrot.slane %v440, 1
      %v640 = vsel %vm580, %v638, %v639
      %v641 = vrot.slane %v528, 1
      %v642 = vsel %vm580, %v639, %v641
      %v643 = vrot.slane %v513, 1
      %v644 = vrot.slane %v443, 1
      %v645 = vsel %vm580, %v643, %v644
      %v646 = vrot.slane %v529, 1
      %v647 = vsel %vm580, %v644, %v646
      %v648 = vrot.slane %v514, 1
      %v649 = vrot.slane %v446, 1
      %v650 = vsel %vm580, %v648, %v649
      %v651 = vrot.slane %v530, 1
      %v652 = vsel %vm580, %v649, %v651
      %v653 = vrot.slane %v515, 1
      %v654 = vrot.slane %v449, 1
      %v655 = vsel %vm580, %v653, %v654
      %v656 = vrot.slane %v531, 1
      %v657 = vsel %vm580, %v654, %v656
      %s689 = scalar_lea.vmem %s3, 128
      %v690 = vld [vmem:[%s689] sm:$0xff]
      %v691 = vld [vmem:[%s689 + $0x8] sm:$0xff]
      %v692 = vld [vmem:[%s689 + $0x10] sm:$0xff]
      %v693 = vld [vmem:[%s689 + $0x18] sm:$0xff]
      %v694 = vld [vmem:[%s689 + $0x20] sm:$0xff]
      %v695 = vld [vmem:[%s689 + $0x28] sm:$0xff]
      %v696 = vld [vmem:[%s689 + $0x30] sm:$0xff]
      %v697 = vld [vmem:[%s689 + $0x38] sm:$0xff]
      %v698 = vld [vmem:[%s689 + $0x40] sm:$0xff]
      %v699 = vld [vmem:[%s689 + $0x48] sm:$0xff]
      %v700 = vld [vmem:[%s689 + $0x50] sm:$0xff]
      %v701 = vld [vmem:[%s689 + $0x58] sm:$0xff]
      %v702 = vld [vmem:[%s689 + $0x60] sm:$0xff]
      %v703 = vld [vmem:[%s689 + $0x68] sm:$0xff]
      %v704 = vld [vmem:[%s689 + $0x70] sm:$0xff]
      %v705 = vld [vmem:[%s689 + $0x78] sm:$0xff]
      %706 = vmatpush.msra.mxu0 %v705
      %707 = vmatpush.msra.mxu0 %v704
      %708 = vmatpush.msra.mxu0 %v703
      %709 = vmatpush.msra.mxu0 %v702
      %710 = vmatpush.msra.mxu0 %v701
      %711 = vmatpush.msra.mxu0 %v700
      %712 = vmatpush.msra.mxu0 %v699
      %713 = vmatpush.msra.mxu0 %v698
      %714 = vmatpush.msra.mxu0 %v697
      %715 = vmatpush.msra.mxu0 %v696
      %716 = vmatpush.msra.mxu0 %v695
      %717 = vmatpush.msra.mxu0 %v694
      %718 = vmatpush.msra.mxu0 %v693
      %719 = vmatpush.msra.mxu0 %v692
      %720 = vmatpush.msra.mxu0 %v691
      %721 = vmatpush.msra.mxu0 %v690
      %722 = vmatmul.f32.gmra.mxu0 %v582
      %v723 = vpop.f32.mrf.mxu0
      %v724 = vadd.f32 0.0, %v723
      %725 = vmatmul.f32.gmra.mxu0 %v582
      %v726 = vpop.f32.mrf.mxu0
      %v727 = vadd.f32 0.0, %v726
      %728 = vmatmul.f32.gmra.mxu0 %v585
      %v729 = vpop.f32.mrf.mxu0
      %v730 = vadd.f32 0.0, %v729
      %731 = vmatmul.f32.gmra.mxu0 %v587
      %v732 = vpop.f32.mrf.mxu0
      %v733 = vadd.f32 0.0, %v732
      %734 = vmatmul.f32.gmra.mxu0 %v590
      %v735 = vpop.f32.mrf.mxu0
      %v736 = vadd.f32 0.0, %v735
      %737 = vmatmul.f32.gmra.mxu0 %v592
      %v738 = vpop.f32.mrf.mxu0
      %v739 = vadd.f32 0.0, %v738
      %740 = vmatmul.f32.gmra.mxu0 %v595
      %v741 = vpop.f32.mrf.mxu0
      %v742 = vadd.f32 0.0, %v741
      %743 = vmatmul.f32.gmra.mxu0 %v597
      %v744 = vpop.f32.mrf.mxu0
      %v745 = vadd.f32 0.0, %v744
      %746 = vmatmul.f32.gmra.mxu0 %v600
      %v747 = vpop.f32.mrf.mxu0
      %v748 = vadd.f32 0.0, %v747
      %749 = vmatmul.f32.gmra.mxu0 %v602
      %v750 = vpop.f32.mrf.mxu0
      %v751 = vadd.f32 0.0, %v750
      %752 = vmatmul.f32.gmra.mxu0 %v605
      %v753 = vpop.f32.mrf.mxu0
      %v754 = vadd.f32 0.0, %v753
      %755 = vmatmul.f32.gmra.mxu0 %v607
      %v756 = vpop.f32.mrf.mxu0
      %v757 = vadd.f32 0.0, %v756
      %758 = vmatmul.f32.gmra.mxu0 %v610
      %v759 = vpop.f32.mrf.mxu0
      %v760 = vadd.f32 0.0, %v759
      %761 = vmatmul.f32.gmra.mxu0 %v612
      %v762 = vpop.f32.mrf.mxu0
      %v763 = vadd.f32 0.0, %v762
      %764 = vmatmul.f32.gmra.mxu0 %v615
      %v765 = vpop.f32.mrf.mxu0
      %v766 = vadd.f32 0.0, %v765
      %767 = vmatmul.f32.gmra.mxu0 %v617
      %v768 = vpop.f32.mrf.mxu0
      %v769 = vadd.f32 0.0, %v768
      %770 = vmatmul.f32.gmra.mxu0 %v620
      %v771 = vpop.f32.mrf.mxu0
      %v772 = vadd.f32 0.0, %v771
      %773 = vmatmul.f32.gmra.mxu0 %v622
      %v774 = vpop.f32.mrf.mxu0
      %v775 = vadd.f32 0.0, %v774
      %776 = vmatmul.f32.gmra.mxu0 %v625
      %v777 = vpop.f32.mrf.mxu0
      %v778 = vadd.f32 0.0, %v777
      %779 = vmatmul.f32.gmra.mxu0 %v627
      %v780 = vpop.f32.mrf.mxu0
      %v781 = vadd.f32 0.0, %v780
      %782 = vmatmul.f32.gmra.mxu0 %v630
      %v783 = vpop.f32.mrf.mxu0
      %v784 = vadd.f32 0.0, %v783
      %785 = vmatmul.f32.gmra.mxu0 %v632
      %v786 = vpop.f32.mrf.mxu0
      %v787 = vadd.f32 0.0, %v786
      %788 = vmatmul.f32.gmra.mxu0 %v635
      %v789 = vpop.f32.mrf.mxu0
      %v790 = vadd.f32 0.0, %v789
      %791 = vmatmul.f32.gmra.mxu0 %v637
      %v792 = vpop.f32.mrf.mxu0
      %v793 = vadd.f32 0.0, %v792
      %794 = vmatmul.f32.gmra.mxu0 %v640
      %v795 = vpop.f32.mrf.mxu0
      %v796 = vadd.f32 0.0, %v795
      %797 = vmatmul.f32.gmra.mxu0 %v642
      %v798 = vpop.f32.mrf.mxu0
      %v799 = vadd.f32 0.0, %v798
      %800 = vmatmul.f32.gmra.mxu0 %v645
      %v801 = vpop.f32.mrf.mxu0
      %v802 = vadd.f32 0.0, %v801
      %803 = vmatmul.f32.gmra.mxu0 %v647
      %v804 = vpop.f32.mrf.mxu0
      %v805 = vadd.f32 0.0, %v804
      %806 = vmatmul.f32.gmra.mxu0 %v650
      %v807 = vpop.f32.mrf.mxu0
      %v808 = vadd.f32 0.0, %v807
      %809 = vmatmul.f32.gmra.mxu0 %v652
      %v810 = vpop.f32.mrf.mxu0
      %v811 = vadd.f32 0.0, %v810
      %812 = vmatmul.f32.gmra.mxu0 %v655
      %v813 = vpop.f32.mrf.mxu0
      %v814 = vadd.f32 0.0, %v813
      %815 = vmatmul.f32.gmra.mxu0 %v657
      %v816 = vpop.f32.mrf.mxu0
      %v817 = vadd.f32 0.0, %v816
      %818 = vdwg.mxu0
      %819 = vmatpush.msra.mxu0 %v548
      %820 = vmatpush.msra.mxu0 %v547
      %821 = vmatpush.msra.mxu0 %v546
      %822 = vmatpush.msra.mxu0 %v545
      %823 = vmatpush.msra.mxu0 %v544
      %824 = vmatpush.msra.mxu0 %v543
      %825 = vmatpush.msra.mxu0 %v542
      %826 = vmatpush.msra.mxu0 %v541
      %827 = vmatpush.msra.mxu0 %v540
      %828 = vmatpush.msra.mxu0 %v539
      %829 = vmatpush.msra.mxu0 %v538
      %830 = vmatpush.msra.mxu0 %v537
      %831 = vmatpush.msra.mxu0 %v536
      %832 = vmatpush.msra.mxu0 %v535
      %833 = vmatpush.msra.mxu0 %v534
      %834 = vmatpush.msra.mxu0 %v533
      %835 = vmatmul.f32.gmra.mxu0 0.0
      %v836 = vpop.f32.mrf.mxu0
      %v837 = vadd.f32 %v724, %v836
      %838 = vmatmul.f32.gmra.mxu0 0.0
      %v839 = vpop.f32.mrf.mxu0
      %v840 = vadd.f32 %v727, %v839
      %841 = vmatmul.f32.gmra.mxu0 %v501
      %v842 = vpop.f32.mrf.mxu0
      %v843 = vadd.f32 %v730, %v842
      %844 = vmatmul.f32.gmra.mxu0 %v407
      %v845 = vpop.f32.mrf.mxu0
      %v846 = vadd.f32 %v733, %v845
      %847 = vmatmul.f32.gmra.mxu0 %v502
      %v848 = vpop.f32.mrf.mxu0
      %v849 = vadd.f32 %v736, %v848
      %850 = vmatmul.f32.gmra.mxu0 %v410
      %v851 = vpop.f32.mrf.mxu0
      %v852 = vadd.f32 %v739, %v851
      %853 = vmatmul.f32.gmra.mxu0 %v503
      %v854 = vpop.f32.mrf.mxu0
      %v855 = vadd.f32 %v742, %v854
      %856 = vmatmul.f32.gmra.mxu0 %v413
      %v857 = vpop.f32.mrf.mxu0
      %v858 = vadd.f32 %v745, %v857
      %859 = vmatmul.f32.gmra.mxu0 %v504
      %v860 = vpop.f32.mrf.mxu0
      %v861 = vadd.f32 %v748, %v860
      %862 = vmatmul.f32.gmra.mxu0 %v416
      %v863 = vpop.f32.mrf.mxu0
      %v864 = vadd.f32 %v751, %v863
      %865 = vmatmul.f32.gmra.mxu0 %v505
      %v866 = vpop.f32.mrf.mxu0
      %v867 = vadd.f32 %v754, %v866
      %868 = vmatmul.f32.gmra.mxu0 %v419
      %v869 = vpop.f32.mrf.mxu0
      %v870 = vadd.f32 %v757, %v869
      %871 = vmatmul.f32.gmra.mxu0 %v506
      %v872 = vpop.f32.mrf.mxu0
      %v873 = vadd.f32 %v760, %v872
      %874 = vmatmul.f32.gmra.mxu0 %v422
      %v875 = vpop.f32.mrf.mxu0
      %v876 = vadd.f32 %v763, %v875
      %877 = vmatmul.f32.gmra.mxu0 %v507
      %v878 = vpop.f32.mrf.mxu0
      %v879 = vadd.f32 %v766, %v878
      %880 = vmatmul.f32.gmra.mxu0 %v425
      %v881 = vpop.f32.mrf.mxu0
      %v882 = vadd.f32 %v769, %v881
      %883 = vmatmul.f32.gmra.mxu0 %v508
      %v884 = vpop.f32.mrf.mxu0
      %v885 = vadd.f32 %v772, %v884
      %886 = vmatmul.f32.gmra.mxu0 %v428
      %v887 = vpop.f32.mrf.mxu0
      %v888 = vadd.f32 %v775, %v887
      %889 = vmatmul.f32.gmra.mxu0 %v509
      %v890 = vpop.f32.mrf.mxu0
      %v891 = vadd.f32 %v778, %v890
      %892 = vmatmul.f32.gmra.mxu0 %v431
      %v893 = vpop.f32.mrf.mxu0
      %v894 = vadd.f32 %v781, %v893
      %895 = vmatmul.f32.gmra.mxu0 %v510
      %v896 = vpop.f32.mrf.mxu0
      %v897 = vadd.f32 %v784, %v896
      %898 = vmatmul.f32.gmra.mxu0 %v434
      %v899 = vpop.f32.mrf.mxu0
      %v900 = vadd.f32 %v787, %v899
      %901 = vmatmul.f32.gmra.mxu0 %v511
      %v902 = vpop.f32.mrf.mxu0
      %v903 = vadd.f32 %v790, %v902
      %904 = vmatmul.f32.gmra.mxu0 %v437
      %v905 = vpop.f32.mrf.mxu0
      %v906 = vadd.f32 %v793, %v905
      %907 = vmatmul.f32.gmra.mxu0 %v512
      %v908 = vpop.f32.mrf.mxu0
      %v909 = vadd.f32 %v796, %v908
      %910 = vmatmul.f32.gmra.mxu0 %v440
      %v911 = vpop.f32.mrf.mxu0
      %v912 = vadd.f32 %v799, %v911
      %913 = vmatmul.f32.gmra.mxu0 %v513
      %v914 = vpop.f32.mrf.mxu0
      %v915 = vadd.f32 %v802, %v914
      %916 = vmatmul.f32.gmra.mxu0 %v443
      %v917 = vpop.f32.mrf.mxu0
      %v918 = vadd.f32 %v805, %v917
      %919 = vmatmul.f32.gmra.mxu0 %v514
      %v920 = vpop.f32.mrf.mxu0
      %v921 = vadd.f32 %v808, %v920
      %922 = vmatmul.f32.gmra.mxu0 %v446
      %v923 = vpop.f32.mrf.mxu0
      %v924 = vadd.f32 %v811, %v923
      %925 = vmatmul.f32.gmra.mxu0 %v515
      %v926 = vpop.f32.mrf.mxu0
      %v927 = vadd.f32 %v814, %v926
      %928 = vmatmul.f32.gmra.mxu0 %v449
      %v929 = vpop.f32.mrf.mxu0
      %v930 = vadd.f32 %v817, %v929
      %931 = vdwg.mxu0
      %vm932 = vcmask 1045504
      %v933 = vrot.slane 0.0, 2
      %v934 = vsel %vm932, %v933, %v933
      %v935 = vrot.slane %v501, 2
      %v936 = vrot.slane %v407, 2
      %v937 = vsel %vm932, %v935, %v936
      %v938 = vrot.slane %v517, 2
      %v939 = vsel %vm932, %v936, %v938
      %v940 = vrot.slane %v502, 2
      %v941 = vrot.slane %v410, 2
      %v942 = vsel %vm932, %v940, %v941
      %v943 = vrot.slane %v518, 2
      %v944 = vsel %vm932, %v941, %v943
      %v945 = vrot.slane %v503, 2
      %v946 = vrot.slane %v413, 2
      %v947 = vsel %vm932, %v945, %v946
      %v948 = vrot.slane %v519, 2
      %v949 = vsel %vm932, %v946, %v948
      %v950 = vrot.slane %v504, 2
      %v951 = vrot.slane %v416, 2
      %v952 = vsel %vm932, %v950, %v951
      %v953 = vrot.slane %v520, 2
      %v954 = vsel %vm932, %v951, %v953
      %v955 = vrot.slane %v505, 2
      %v956 = vrot.slane %v419, 2
      %v957 = vsel %vm932, %v955, %v956
      %v958 = vrot.slane %v521, 2
      %v959 = vsel %vm932, %v956, %v958
      %v960 = vrot.slane %v506, 2
      %v961 = vrot.slane %v422, 2
      %v962 = vsel %vm932, %v960, %v961
      %v963 = vrot.slane %v522, 2
      %v964 = vsel %vm932, %v961, %v963
      %v965 = vrot.slane %v507, 2
      %v966 = vrot.slane %v425, 2
      %v967 = vsel %vm932, %v965, %v966
      %v968 = vrot.slane %v523, 2
      %v969 = vsel %vm932, %v966, %v968
      %v970 = vrot.slane %v508, 2
      %v971 = vrot.slane %v428, 2
      %v972 = vsel %vm932, %v970, %v971
      %v973 = vrot.slane %v524, 2
      %v974 = vsel %vm932, %v971, %v973
      %v975 = vrot.slane %v509, 2
      %v976 = vrot.slane %v431, 2
      %v977 = vsel %vm932, %v975, %v976
      %v978 = vrot.slane %v525, 2
      %v979 = vsel %vm932, %v976, %v978
      %v980 = vrot.slane %v510, 2
      %v981 = vrot.slane %v434, 2
      %v982 = vsel %vm932, %v980, %v981
      %v983 = vrot.slane %v526, 2
      %v984 = vsel %vm932, %v981, %v983
      %v985 = vrot.slane %v511, 2
      %v986 = vrot.slane %v437, 2
      %v987 = vsel %vm932, %v985, %v986
      %v988 = vrot.slane %v527, 2
      %v989 = vsel %vm932, %v986, %v988
      %v990 = vrot.slane %v512, 2
      %v991 = vrot.slane %v440, 2
      %v992 = vsel %vm932, %v990, %v991
      %v993 = vrot.slane %v528, 2
      %v994 = vsel %vm932, %v991, %v993
      %v995 = vrot.slane %v513, 2
      %v996 = vrot.slane %v443, 2
      %v997 = vsel %vm932, %v995, %v996
      %v998 = vrot.slane %v529, 2
      %v999 = vsel %vm932, %v996, %v998
      %v1000 = vrot.slane %v514, 2
      %v1001 = vrot.slane %v446, 2
      %v1002 = vsel %vm932, %v1000, %v1001
      %v1003 = vrot.slane %v530, 2
      %v1004 = vsel %vm932, %v1001, %v1003
      %v1005 = vrot.slane %v515, 2
      %v1006 = vrot.slane %v449, 2
      %v1007 = vsel %vm932, %v1005, %v1006
      %v1008 = vrot.slane %v531, 2
      %v1009 = vsel %vm932, %v1006, %v1008
      %s1041 = scalar_lea.vmem %s3, 256
      %v1042 = vld [vmem:[%s1041] sm:$0xff]
      %v1043 = vld [vmem:[%s1041 + $0x8] sm:$0xff]
      %v1044 = vld [vmem:[%s1041 + $0x10] sm:$0xff]
      %v1045 = vld [vmem:[%s1041 + $0x18] sm:$0xff]
      %v1046 = vld [vmem:[%s1041 + $0x20] sm:$0xff]
      %v1047 = vld [vmem:[%s1041 + $0x28] sm:$0xff]
      %v1048 = vld [vmem:[%s1041 + $0x30] sm:$0xff]
      %v1049 = vld [vmem:[%s1041 + $0x38] sm:$0xff]
      %v1050 = vld [vmem:[%s1041 + $0x40] sm:$0xff]
      %v1051 = vld [vmem:[%s1041 + $0x48] sm:$0xff]
      %v1052 = vld [vmem:[%s1041 + $0x50] sm:$0xff]
      %v1053 = vld [vmem:[%s1041 + $0x58] sm:$0xff]
      %v1054 = vld [vmem:[%s1041 + $0x60] sm:$0xff]
      %v1055 = vld [vmem:[%s1041 + $0x68] sm:$0xff]
      %v1056 = vld [vmem:[%s1041 + $0x70] sm:$0xff]
      %v1057 = vld [vmem:[%s1041 + $0x78] sm:$0xff]
      %1058 = vmatpush.msra.mxu0 %v1057
      %1059 = vmatpush.msra.mxu0 %v1056
      %1060 = vmatpush.msra.mxu0 %v1055
      %1061 = vmatpush.msra.mxu0 %v1054
      %1062 = vmatpush.msra.mxu0 %v1053
      %1063 = vmatpush.msra.mxu0 %v1052
      %1064 = vmatpush.msra.mxu0 %v1051
      %1065 = vmatpush.msra.mxu0 %v1050
      %1066 = vmatpush.msra.mxu0 %v1049
      %1067 = vmatpush.msra.mxu0 %v1048
      %1068 = vmatpush.msra.mxu0 %v1047
      %1069 = vmatpush.msra.mxu0 %v1046
      %1070 = vmatpush.msra.mxu0 %v1045
      %1071 = vmatpush.msra.mxu0 %v1044
      %1072 = vmatpush.msra.mxu0 %v1043
      %1073 = vmatpush.msra.mxu0 %v1042
      %1074 = vmatmul.f32.gmra.mxu0 %v934
      %v1075 = vpop.f32.mrf.mxu0
      %v1076 = vadd.f32 0.0, %v1075
      %1077 = vmatmul.f32.gmra.mxu0 %v934
      %v1078 = vpop.f32.mrf.mxu0
      %v1079 = vadd.f32 0.0, %v1078
      %1080 = vmatmul.f32.gmra.mxu0 %v937
      %v1081 = vpop.f32.mrf.mxu0
      %v1082 = vadd.f32 0.0, %v1081
      %1083 = vmatmul.f32.gmra.mxu0 %v939
      %v1084 = vpop.f32.mrf.mxu0
      %v1085 = vadd.f32 0.0, %v1084
      %1086 = vmatmul.f32.gmra.mxu0 %v942
      %v1087 = vpop.f32.mrf.mxu0
      %v1088 = vadd.f32 0.0, %v1087
      %1089 = vmatmul.f32.gmra.mxu0 %v944
      %v1090 = vpop.f32.mrf.mxu0
      %v1091 = vadd.f32 0.0, %v1090
      %1092 = vmatmul.f32.gmra.mxu0 %v947
      %v1093 = vpop.f32.mrf.mxu0
      %v1094 = vadd.f32 0.0, %v1093
      %1095 = vmatmul.f32.gmra.mxu0 %v949
      %v1096 = vpop.f32.mrf.mxu0
      %v1097 = vadd.f32 0.0, %v1096
      %1098 = vmatmul.f32.gmra.mxu0 %v952
      %v1099 = vpop.f32.mrf.mxu0
      %v1100 = vadd.f32 0.0, %v1099
      %1101 = vmatmul.f32.gmra.mxu0 %v954
      %v1102 = vpop.f32.mrf.mxu0
      %v1103 = vadd.f32 0.0, %v1102
      %1104 = vmatmul.f32.gmra.mxu0 %v957
      %v1105 = vpop.f32.mrf.mxu0
      %v1106 = vadd.f32 0.0, %v1105
      %1107 = vmatmul.f32.gmra.mxu0 %v959
      %v1108 = vpop.f32.mrf.mxu0
      %v1109 = vadd.f32 0.0, %v1108
      %1110 = vmatmul.f32.gmra.mxu0 %v962
      %v1111 = vpop.f32.mrf.mxu0
      %v1112 = vadd.f32 0.0, %v1111
      %1113 = vmatmul.f32.gmra.mxu0 %v964
      %v1114 = vpop.f32.mrf.mxu0
      %v1115 = vadd.f32 0.0, %v1114
      %1116 = vmatmul.f32.gmra.mxu0 %v967
      %v1117 = vpop.f32.mrf.mxu0
      %v1118 = vadd.f32 0.0, %v1117
      %1119 = vmatmul.f32.gmra.mxu0 %v969
      %v1120 = vpop.f32.mrf.mxu0
      %v1121 = vadd.f32 0.0, %v1120
      %1122 = vmatmul.f32.gmra.mxu0 %v972
      %v1123 = vpop.f32.mrf.mxu0
      %v1124 = vadd.f32 0.0, %v1123
      %1125 = vmatmul.f32.gmra.mxu0 %v974
      %v1126 = vpop.f32.mrf.mxu0
      %v1127 = vadd.f32 0.0, %v1126
      %1128 = vmatmul.f32.gmra.mxu0 %v977
      %v1129 = vpop.f32.mrf.mxu0
      %v1130 = vadd.f32 0.0, %v1129
      %1131 = vmatmul.f32.gmra.mxu0 %v979
      %v1132 = vpop.f32.mrf.mxu0
      %v1133 = vadd.f32 0.0, %v1132
      %1134 = vmatmul.f32.gmra.mxu0 %v982
      %v1135 = vpop.f32.mrf.mxu0
      %v1136 = vadd.f32 0.0, %v1135
      %1137 = vmatmul.f32.gmra.mxu0 %v984
      %v1138 = vpop.f32.mrf.mxu0
      %v1139 = vadd.f32 0.0, %v1138
      %1140 = vmatmul.f32.gmra.mxu0 %v987
      %v1141 = vpop.f32.mrf.mxu0
      %v1142 = vadd.f32 0.0, %v1141
      %1143 = vmatmul.f32.gmra.mxu0 %v989
      %v1144 = vpop.f32.mrf.mxu0
      %v1145 = vadd.f32 0.0, %v1144
      %1146 = vmatmul.f32.gmra.mxu0 %v992
      %v1147 = vpop.f32.mrf.mxu0
      %v1148 = vadd.f32 0.0, %v1147
      %1149 = vmatmul.f32.gmra.mxu0 %v994
      %v1150 = vpop.f32.mrf.mxu0
      %v1151 = vadd.f32 0.0, %v1150
      %1152 = vmatmul.f32.gmra.mxu0 %v997
      %v1153 = vpop.f32.mrf.mxu0
      %v1154 = vadd.f32 0.0, %v1153
      %1155 = vmatmul.f32.gmra.mxu0 %v999
      %v1156 = vpop.f32.mrf.mxu0
      %v1157 = vadd.f32 0.0, %v1156
      %1158 = vmatmul.f32.gmra.mxu0 %v1002
      %v1159 = vpop.f32.mrf.mxu0
      %v1160 = vadd.f32 0.0, %v1159
      %1161 = vmatmul.f32.gmra.mxu0 %v1004
      %v1162 = vpop.f32.mrf.mxu0
      %v1163 = vadd.f32 0.0, %v1162
      %1164 = vmatmul.f32.gmra.mxu0 %v1007
      %v1165 = vpop.f32.mrf.mxu0
      %v1166 = vadd.f32 0.0, %v1165
      %1167 = vmatmul.f32.gmra.mxu0 %v1009
      %v1168 = vpop.f32.mrf.mxu0
      %v1169 = vadd.f32 0.0, %v1168
      %1170 = vdwg.mxu0
      %v1171 = vadd.f32 %v837, %v1076
      %v1172 = vadd.f32 %v840, %v1079
      %v1173 = vadd.f32 %v843, %v1082
      %v1174 = vadd.f32 %v846, %v1085
      %v1175 = vadd.f32 %v849, %v1088
      %v1176 = vadd.f32 %v852, %v1091
      %v1177 = vadd.f32 %v855, %v1094
      %v1178 = vadd.f32 %v858, %v1097
      %v1179 = vadd.f32 %v861, %v1100
      %v1180 = vadd.f32 %v864, %v1103
      %v1181 = vadd.f32 %v867, %v1106
      %v1182 = vadd.f32 %v870, %v1109
      %v1183 = vadd.f32 %v873, %v1112
      %v1184 = vadd.f32 %v876, %v1115
      %v1185 = vadd.f32 %v879, %v1118
      %v1186 = vadd.f32 %v882, %v1121
      %v1187 = vadd.f32 %v885, %v1124
      %v1188 = vadd.f32 %v888, %v1127
      %v1189 = vadd.f32 %v891, %v1130
      %v1190 = vadd.f32 %v894, %v1133
      %v1191 = vadd.f32 %v897, %v1136
      %v1192 = vadd.f32 %v900, %v1139
      %v1193 = vadd.f32 %v903, %v1142
      %v1194 = vadd.f32 %v906, %v1145
      %v1195 = vadd.f32 %v909, %v1148
      %v1196 = vadd.f32 %v912, %v1151
      %v1197 = vadd.f32 %v915, %v1154
      %v1198 = vadd.f32 %v918, %v1157
      %v1199 = vadd.f32 %v921, %v1160
      %v1200 = vadd.f32 %v924, %v1163
      %v1201 = vadd.f32 %v927, %v1166
      %v1202 = vadd.f32 %v930, %v1169
      %s1203 = scalar_lea.vmem %s3, 384
      %v1204 = vld [vmem:[%s1203] sm:$0xff]
      %v1205 = vld [vmem:[%s1203 + $0x8] sm:$0xff]
      %v1206 = vld [vmem:[%s1203 + $0x10] sm:$0xff]
      %v1207 = vld [vmem:[%s1203 + $0x18] sm:$0xff]
      %v1208 = vld [vmem:[%s1203 + $0x20] sm:$0xff]
      %v1209 = vld [vmem:[%s1203 + $0x28] sm:$0xff]
      %v1210 = vld [vmem:[%s1203 + $0x30] sm:$0xff]
      %v1211 = vld [vmem:[%s1203 + $0x38] sm:$0xff]
      %v1212 = vld [vmem:[%s1203 + $0x40] sm:$0xff]
      %v1213 = vld [vmem:[%s1203 + $0x48] sm:$0xff]
      %v1214 = vld [vmem:[%s1203 + $0x50] sm:$0xff]
      %v1215 = vld [vmem:[%s1203 + $0x58] sm:$0xff]
      %v1216 = vld [vmem:[%s1203 + $0x60] sm:$0xff]
      %v1217 = vld [vmem:[%s1203 + $0x68] sm:$0xff]
      %v1218 = vld [vmem:[%s1203 + $0x70] sm:$0xff]
      %v1219 = vld [vmem:[%s1203 + $0x78] sm:$0xff]
      %1220 = vmatpush.msra.mxu0 %v1219
      %1221 = vmatpush.msra.mxu0 %v1218
      %1222 = vmatpush.msra.mxu0 %v1217
      %1223 = vmatpush.msra.mxu0 %v1216
      %1224 = vmatpush.msra.mxu0 %v1215
      %1225 = vmatpush.msra.mxu0 %v1214
      %1226 = vmatpush.msra.mxu0 %v1213
      %1227 = vmatpush.msra.mxu0 %v1212
      %1228 = vmatpush.msra.mxu0 %v1211
      %1229 = vmatpush.msra.mxu0 %v1210
      %1230 = vmatpush.msra.mxu0 %v1209
      %1231 = vmatpush.msra.mxu0 %v1208
      %1232 = vmatpush.msra.mxu0 %v1207
      %1233 = vmatpush.msra.mxu0 %v1206
      %1234 = vmatpush.msra.mxu0 %v1205
      %1235 = vmatpush.msra.mxu0 %v1204
      %1236 = vmatmul.f32.gmra.mxu0 %v501
      %v1237 = vpop.f32.mrf.mxu0
      %v1238 = vadd.f32 0.0, %v1237
      %1239 = vmatmul.f32.gmra.mxu0 %v407
      %v1240 = vpop.f32.mrf.mxu0
      %v1241 = vadd.f32 0.0, %v1240
      %1242 = vmatmul.f32.gmra.mxu0 %v502
      %v1243 = vpop.f32.mrf.mxu0
      %v1244 = vadd.f32 0.0, %v1243
      %1245 = vmatmul.f32.gmra.mxu0 %v410
      %v1246 = vpop.f32.mrf.mxu0
      %v1247 = vadd.f32 0.0, %v1246
      %1248 = vmatmul.f32.gmra.mxu0 %v503
      %v1249 = vpop.f32.mrf.mxu0
      %v1250 = vadd.f32 0.0, %v1249
      %1251 = vmatmul.f32.gmra.mxu0 %v413
      %v1252 = vpop.f32.mrf.mxu0
      %v1253 = vadd.f32 0.0, %v1252
      %1254 = vmatmul.f32.gmra.mxu0 %v504
      %v1255 = vpop.f32.mrf.mxu0
      %v1256 = vadd.f32 0.0, %v1255
      %1257 = vmatmul.f32.gmra.mxu0 %v416
      %v1258 = vpop.f32.mrf.mxu0
      %v1259 = vadd.f32 0.0, %v1258
      %1260 = vmatmul.f32.gmra.mxu0 %v505
      %v1261 = vpop.f32.mrf.mxu0
      %v1262 = vadd.f32 0.0, %v1261
      %1263 = vmatmul.f32.gmra.mxu0 %v419
      %v1264 = vpop.f32.mrf.mxu0
      %v1265 = vadd.f32 0.0, %v1264
      %1266 = vmatmul.f32.gmra.mxu0 %v506
      %v1267 = vpop.f32.mrf.mxu0
      %v1268 = vadd.f32 0.0, %v1267
      %1269 = vmatmul.f32.gmra.mxu0 %v422
      %v1270 = vpop.f32.mrf.mxu0
      %v1271 = vadd.f32 0.0, %v1270
      %1272 = vmatmul.f32.gmra.mxu0 %v507
      %v1273 = vpop.f32.mrf.mxu0
      %v1274 = vadd.f32 0.0, %v1273
      %1275 = vmatmul.f32.gmra.mxu0 %v425
      %v1276 = vpop.f32.mrf.mxu0
      %v1277 = vadd.f32 0.0, %v1276
      %1278 = vmatmul.f32.gmra.mxu0 %v508
      %v1279 = vpop.f32.mrf.mxu0
      %v1280 = vadd.f32 0.0, %v1279
      %1281 = vmatmul.f32.gmra.mxu0 %v428
      %v1282 = vpop.f32.mrf.mxu0
      %v1283 = vadd.f32 0.0, %v1282
      %1284 = vmatmul.f32.gmra.mxu0 %v509
      %v1285 = vpop.f32.mrf.mxu0
      %v1286 = vadd.f32 0.0, %v1285
      %1287 = vmatmul.f32.gmra.mxu0 %v431
      %v1288 = vpop.f32.mrf.mxu0
      %v1289 = vadd.f32 0.0, %v1288
      %1290 = vmatmul.f32.gmra.mxu0 %v510
      %v1291 = vpop.f32.mrf.mxu0
      %v1292 = vadd.f32 0.0, %v1291
      %1293 = vmatmul.f32.gmra.mxu0 %v434
      %v1294 = vpop.f32.mrf.mxu0
      %v1295 = vadd.f32 0.0, %v1294
      %1296 = vmatmul.f32.gmra.mxu0 %v511
      %v1297 = vpop.f32.mrf.mxu0
      %v1298 = vadd.f32 0.0, %v1297
      %1299 = vmatmul.f32.gmra.mxu0 %v437
      %v1300 = vpop.f32.mrf.mxu0
      %v1301 = vadd.f32 0.0, %v1300
      %1302 = vmatmul.f32.gmra.mxu0 %v512
      %v1303 = vpop.f32.mrf.mxu0
      %v1304 = vadd.f32 0.0, %v1303
      %1305 = vmatmul.f32.gmra.mxu0 %v440
      %v1306 = vpop.f32.mrf.mxu0
      %v1307 = vadd.f32 0.0, %v1306
      %1308 = vmatmul.f32.gmra.mxu0 %v513
      %v1309 = vpop.f32.mrf.mxu0
      %v1310 = vadd.f32 0.0, %v1309
      %1311 = vmatmul.f32.gmra.mxu0 %v443
      %v1312 = vpop.f32.mrf.mxu0
      %v1313 = vadd.f32 0.0, %v1312
      %1314 = vmatmul.f32.gmra.mxu0 %v514
      %v1315 = vpop.f32.mrf.mxu0
      %v1316 = vadd.f32 0.0, %v1315
      %1317 = vmatmul.f32.gmra.mxu0 %v446
      %v1318 = vpop.f32.mrf.mxu0
      %v1319 = vadd.f32 0.0, %v1318
      %1320 = vmatmul.f32.gmra.mxu0 %v515
      %v1321 = vpop.f32.mrf.mxu0
      %v1322 = vadd.f32 0.0, %v1321
      %1323 = vmatmul.f32.gmra.mxu0 %v449
      %v1324 = vpop.f32.mrf.mxu0
      %v1325 = vadd.f32 0.0, %v1324
      %1326 = vmatmul.f32.gmra.mxu0 %v516
      %v1327 = vpop.f32.mrf.mxu0
      %v1328 = vadd.f32 0.0, %v1327
      %1329 = vmatmul.f32.gmra.mxu0 %v452
      %v1330 = vpop.f32.mrf.mxu0
      %v1331 = vadd.f32 0.0, %v1330
      %1332 = vdwg.mxu0
      %v1333 = vadd.f32 %v1171, %v1238
      %v1334 = vadd.f32 %v1172, %v1241
      %v1335 = vadd.f32 %v1173, %v1244
      %v1336 = vadd.f32 %v1174, %v1247
      %v1337 = vadd.f32 %v1175, %v1250
      %v1338 = vadd.f32 %v1176, %v1253
      %v1339 = vadd.f32 %v1177, %v1256
      %v1340 = vadd.f32 %v1178, %v1259
      %v1341 = vadd.f32 %v1179, %v1262
      %v1342 = vadd.f32 %v1180, %v1265
      %v1343 = vadd.f32 %v1181, %v1268
      %v1344 = vadd.f32 %v1182, %v1271
      %v1345 = vadd.f32 %v1183, %v1274
      %v1346 = vadd.f32 %v1184, %v1277
      %v1347 = vadd.f32 %v1185, %v1280
      %v1348 = vadd.f32 %v1186, %v1283
      %v1349 = vadd.f32 %v1187, %v1286
      %v1350 = vadd.f32 %v1188, %v1289
      %v1351 = vadd.f32 %v1189, %v1292
      %v1352 = vadd.f32 %v1190, %v1295
      %v1353 = vadd.f32 %v1191, %v1298
      %v1354 = vadd.f32 %v1192, %v1301
      %v1355 = vadd.f32 %v1193, %v1304
      %v1356 = vadd.f32 %v1194, %v1307
      %v1357 = vadd.f32 %v1195, %v1310
      %v1358 = vadd.f32 %v1196, %v1313
      %v1359 = vadd.f32 %v1197, %v1316
      %v1360 = vadd.f32 %v1198, %v1319
      %v1361 = vadd.f32 %v1199, %v1322
      %v1362 = vadd.f32 %v1200, %v1325
      %v1363 = vadd.f32 %v1201, %v1328
      %v1364 = vadd.f32 %v1202, %v1331
      %v1367 = vrot.slane %v516, 1
      %v1368 = vrot.slane %v452, 1
      %v1369 = vsel %vm580, %v1367, %v1368
      %v1370 = vrot.slane %v532, 1
      %v1371 = vsel %vm580, %v1368, %v1370
      %s1374 = scalar_lea.vmem %s3, 512
      %v1375 = vld [vmem:[%s1374] sm:$0xff]
      %v1376 = vld [vmem:[%s1374 + $0x8] sm:$0xff]
      %v1377 = vld [vmem:[%s1374 + $0x10] sm:$0xff]
      %v1378 = vld [vmem:[%s1374 + $0x18] sm:$0xff]
      %v1379 = vld [vmem:[%s1374 + $0x20] sm:$0xff]
      %v1380 = vld [vmem:[%s1374 + $0x28] sm:$0xff]
      %v1381 = vld [vmem:[%s1374 + $0x30] sm:$0xff]
      %v1382 = vld [vmem:[%s1374 + $0x38] sm:$0xff]
      %v1383 = vld [vmem:[%s1374 + $0x40] sm:$0xff]
      %v1384 = vld [vmem:[%s1374 + $0x48] sm:$0xff]
      %v1385 = vld [vmem:[%s1374 + $0x50] sm:$0xff]
      %v1386 = vld [vmem:[%s1374 + $0x58] sm:$0xff]
      %v1387 = vld [vmem:[%s1374 + $0x60] sm:$0xff]
      %v1388 = vld [vmem:[%s1374 + $0x68] sm:$0xff]
      %v1389 = vld [vmem:[%s1374 + $0x70] sm:$0xff]
      %v1390 = vld [vmem:[%s1374 + $0x78] sm:$0xff]
      %1391 = vmatpush.msra.mxu0 %v1390
      %1392 = vmatpush.msra.mxu0 %v1389
      %1393 = vmatpush.msra.mxu0 %v1388
      %1394 = vmatpush.msra.mxu0 %v1387
      %1395 = vmatpush.msra.mxu0 %v1386
      %1396 = vmatpush.msra.mxu0 %v1385
      %1397 = vmatpush.msra.mxu0 %v1384
      %1398 = vmatpush.msra.mxu0 %v1383
      %1399 = vmatpush.msra.mxu0 %v1382
      %1400 = vmatpush.msra.mxu0 %v1381
      %1401 = vmatpush.msra.mxu0 %v1380
      %1402 = vmatpush.msra.mxu0 %v1379
      %1403 = vmatpush.msra.mxu0 %v1378
      %1404 = vmatpush.msra.mxu0 %v1377
      %1405 = vmatpush.msra.mxu0 %v1376
      %1406 = vmatpush.msra.mxu0 %v1375
      %1407 = vmatmul.f32.gmra.mxu0 %v585
      %v1408 = vpop.f32.mrf.mxu0
      %v1409 = vadd.f32 0.0, %v1408
      %1410 = vmatmul.f32.gmra.mxu0 %v587
      %v1411 = vpop.f32.mrf.mxu0
      %v1412 = vadd.f32 0.0, %v1411
      %1413 = vmatmul.f32.gmra.mxu0 %v590
      %v1414 = vpop.f32.mrf.mxu0
      %v1415 = vadd.f32 0.0, %v1414
      %1416 = vmatmul.f32.gmra.mxu0 %v592
      %v1417 = vpop.f32.mrf.mxu0
      %v1418 = vadd.f32 0.0, %v1417
      %1419 = vmatmul.f32.gmra.mxu0 %v595
      %v1420 = vpop.f32.mrf.mxu0
      %v1421 = vadd.f32 0.0, %v1420
      %1422 = vmatmul.f32.gmra.mxu0 %v597
      %v1423 = vpop.f32.mrf.mxu0
      %v1424 = vadd.f32 0.0, %v1423
      %1425 = vmatmul.f32.gmra.mxu0 %v600
      %v1426 = vpop.f32.mrf.mxu0
      %v1427 = vadd.f32 0.0, %v1426
      %1428 = vmatmul.f32.gmra.mxu0 %v602
      %v1429 = vpop.f32.mrf.mxu0
      %v1430 = vadd.f32 0.0, %v1429
      %1431 = vmatmul.f32.gmra.mxu0 %v605
      %v1432 = vpop.f32.mrf.mxu0
      %v1433 = vadd.f32 0.0, %v1432
      %1434 = vmatmul.f32.gmra.mxu0 %v607
      %v1435 = vpop.f32.mrf.mxu0
      %v1436 = vadd.f32 0.0, %v1435
      %1437 = vmatmul.f32.gmra.mxu0 %v610
      %v1438 = vpop.f32.mrf.mxu0
      %v1439 = vadd.f32 0.0, %v1438
      %1440 = vmatmul.f32.gmra.mxu0 %v612
      %v1441 = vpop.f32.mrf.mxu0
      %v1442 = vadd.f32 0.0, %v1441
      %1443 = vmatmul.f32.gmra.mxu0 %v615
      %v1444 = vpop.f32.mrf.mxu0
      %v1445 = vadd.f32 0.0, %v1444
      %1446 = vmatmul.f32.gmra.mxu0 %v617
      %v1447 = vpop.f32.mrf.mxu0
      %v1448 = vadd.f32 0.0, %v1447
      %1449 = vmatmul.f32.gmra.mxu0 %v620
      %v1450 = vpop.f32.mrf.mxu0
      %v1451 = vadd.f32 0.0, %v1450
      %1452 = vmatmul.f32.gmra.mxu0 %v622
      %v1453 = vpop.f32.mrf.mxu0
      %v1454 = vadd.f32 0.0, %v1453
      %1455 = vmatmul.f32.gmra.mxu0 %v625
      %v1456 = vpop.f32.mrf.mxu0
      %v1457 = vadd.f32 0.0, %v1456
      %1458 = vmatmul.f32.gmra.mxu0 %v627
      %v1459 = vpop.f32.mrf.mxu0
      %v1460 = vadd.f32 0.0, %v1459
      %1461 = vmatmul.f32.gmra.mxu0 %v630
      %v1462 = vpop.f32.mrf.mxu0
      %v1463 = vadd.f32 0.0, %v1462
      %1464 = vmatmul.f32.gmra.mxu0 %v632
      %v1465 = vpop.f32.mrf.mxu0
      %v1466 = vadd.f32 0.0, %v1465
      %1467 = vmatmul.f32.gmra.mxu0 %v635
      %v1468 = vpop.f32.mrf.mxu0
      %v1469 = vadd.f32 0.0, %v1468
      %1470 = vmatmul.f32.gmra.mxu0 %v637
      %v1471 = vpop.f32.mrf.mxu0
      %v1472 = vadd.f32 0.0, %v1471
      %1473 = vmatmul.f32.gmra.mxu0 %v640
      %v1474 = vpop.f32.mrf.mxu0
      %v1475 = vadd.f32 0.0, %v1474
      %1476 = vmatmul.f32.gmra.mxu0 %v642
      %v1477 = vpop.f32.mrf.mxu0
      %v1478 = vadd.f32 0.0, %v1477
      %1479 = vmatmul.f32.gmra.mxu0 %v645
      %v1480 = vpop.f32.mrf.mxu0
      %v1481 = vadd.f32 0.0, %v1480
      %1482 = vmatmul.f32.gmra.mxu0 %v647
      %v1483 = vpop.f32.mrf.mxu0
      %v1484 = vadd.f32 0.0, %v1483
      %1485 = vmatmul.f32.gmra.mxu0 %v650
      %v1486 = vpop.f32.mrf.mxu0
      %v1487 = vadd.f32 0.0, %v1486
      %1488 = vmatmul.f32.gmra.mxu0 %v652
      %v1489 = vpop.f32.mrf.mxu0
      %v1490 = vadd.f32 0.0, %v1489
      %1491 = vmatmul.f32.gmra.mxu0 %v655
      %v1492 = vpop.f32.mrf.mxu0
      %v1493 = vadd.f32 0.0, %v1492
      %1494 = vmatmul.f32.gmra.mxu0 %v657
      %v1495 = vpop.f32.mrf.mxu0
      %v1496 = vadd.f32 0.0, %v1495
      %1497 = vmatmul.f32.gmra.mxu0 %v1369
      %v1498 = vpop.f32.mrf.mxu0
      %v1499 = vadd.f32 0.0, %v1498
      %1500 = vmatmul.f32.gmra.mxu0 %v1371
      %v1501 = vpop.f32.mrf.mxu0
      %v1502 = vadd.f32 0.0, %v1501
      %1503 = vdwg.mxu0
      %v1504 = vadd.f32 %v1333, %v1409
      %v1505 = vadd.f32 %v1334, %v1412
      %v1506 = vadd.f32 %v1335, %v1415
      %v1507 = vadd.f32 %v1336, %v1418
      %v1508 = vadd.f32 %v1337, %v1421
      %v1509 = vadd.f32 %v1338, %v1424
      %v1510 = vadd.f32 %v1339, %v1427
      %v1511 = vadd.f32 %v1340, %v1430
      %v1512 = vadd.f32 %v1341, %v1433
      %v1513 = vadd.f32 %v1342, %v1436
      %v1514 = vadd.f32 %v1343, %v1439
      %v1515 = vadd.f32 %v1344, %v1442
      %v1516 = vadd.f32 %v1345, %v1445
      %v1517 = vadd.f32 %v1346, %v1448
      %v1518 = vadd.f32 %v1347, %v1451
      %v1519 = vadd.f32 %v1348, %v1454
      %v1520 = vadd.f32 %v1349, %v1457
      %v1521 = vadd.f32 %v1350, %v1460
      %v1522 = vadd.f32 %v1351, %v1463
      %v1523 = vadd.f32 %v1352, %v1466
      %v1524 = vadd.f32 %v1353, %v1469
      %v1525 = vadd.f32 %v1354, %v1472
      %v1526 = vadd.f32 %v1355, %v1475
      %v1527 = vadd.f32 %v1356, %v1478
      %v1528 = vadd.f32 %v1357, %v1481
      %v1529 = vadd.f32 %v1358, %v1484
      %v1530 = vadd.f32 %v1359, %v1487
      %v1531 = vadd.f32 %v1360, %v1490
      %v1532 = vadd.f32 %v1361, %v1493
      %v1533 = vadd.f32 %v1362, %v1496
      %v1534 = vadd.f32 %v1363, %v1499
      %v1535 = vadd.f32 %v1364, %v1502
      %v1536 = vrot.slane %v516, 2
      %v1537 = vrot.slane %v452, 2
      %v1538 = vsel %vm932, %v1536, %v1537
      %v1539 = vrot.slane %v532, 2
      %v1540 = vsel %vm932, %v1537, %v1539
      %s1543 = scalar_lea.vmem %s3, 640
      %v1544 = vld [vmem:[%s1543] sm:$0xff]
      %v1545 = vld [vmem:[%s1543 + $0x8] sm:$0xff]
      %v1546 = vld [vmem:[%s1543 + $0x10] sm:$0xff]
      %v1547 = vld [vmem:[%s1543 + $0x18] sm:$0xff]
      %v1548 = vld [vmem:[%s1543 + $0x20] sm:$0xff]
      %v1549 = vld [vmem:[%s1543 + $0x28] sm:$0xff]
      %v1550 = vld [vmem:[%s1543 + $0x30] sm:$0xff]
      %v1551 = vld [vmem:[%s1543 + $0x38] sm:$0xff]
      %v1552 = vld [vmem:[%s1543 + $0x40] sm:$0xff]
      %v1553 = vld [vmem:[%s1543 + $0x48] sm:$0xff]
      %v1554 = vld [vmem:[%s1543 + $0x50] sm:$0xff]
      %v1555 = vld [vmem:[%s1543 + $0x58] sm:$0xff]
      %v1556 = vld [vmem:[%s1543 + $0x60] sm:$0xff]
      %v1557 = vld [vmem:[%s1543 + $0x68] sm:$0xff]
      %v1558 = vld [vmem:[%s1543 + $0x70] sm:$0xff]
      %v1559 = vld [vmem:[%s1543 + $0x78] sm:$0xff]
      %1560 = vmatpush.msra.mxu0 %v1559
      %1561 = vmatpush.msra.mxu0 %v1558
      %1562 = vmatpush.msra.mxu0 %v1557
      %1563 = vmatpush.msra.mxu0 %v1556
      %1564 = vmatpush.msra.mxu0 %v1555
      %1565 = vmatpush.msra.mxu0 %v1554
      %1566 = vmatpush.msra.mxu0 %v1553
      %1567 = vmatpush.msra.mxu0 %v1552
      %1568 = vmatpush.msra.mxu0 %v1551
      %1569 = vmatpush.msra.mxu0 %v1550
      %1570 = vmatpush.msra.mxu0 %v1549
      %1571 = vmatpush.msra.mxu0 %v1548
      %1572 = vmatpush.msra.mxu0 %v1547
      %1573 = vmatpush.msra.mxu0 %v1546
      %1574 = vmatpush.msra.mxu0 %v1545
      %1575 = vmatpush.msra.mxu0 %v1544
      %1576 = vmatmul.f32.gmra.mxu0 %v937
      %v1577 = vpop.f32.mrf.mxu0
      %v1578 = vadd.f32 0.0, %v1577
      %1579 = vmatmul.f32.gmra.mxu0 %v939
      %v1580 = vpop.f32.mrf.mxu0
      %v1581 = vadd.f32 0.0, %v1580
      %1582 = vmatmul.f32.gmra.mxu0 %v942
      %v1583 = vpop.f32.mrf.mxu0
      %v1584 = vadd.f32 0.0, %v1583
      %1585 = vmatmul.f32.gmra.mxu0 %v944
      %v1586 = vpop.f32.mrf.mxu0
      %v1587 = vadd.f32 0.0, %v1586
      %1588 = vmatmul.f32.gmra.mxu0 %v947
      %v1589 = vpop.f32.mrf.mxu0
      %v1590 = vadd.f32 0.0, %v1589
      %1591 = vmatmul.f32.gmra.mxu0 %v949
      %v1592 = vpop.f32.mrf.mxu0
      %v1593 = vadd.f32 0.0, %v1592
      %1594 = vmatmul.f32.gmra.mxu0 %v952
      %v1595 = vpop.f32.mrf.mxu0
      %v1596 = vadd.f32 0.0, %v1595
      %1597 = vmatmul.f32.gmra.mxu0 %v954
      %v1598 = vpop.f32.mrf.mxu0
      %v1599 = vadd.f32 0.0, %v1598
      %1600 = vmatmul.f32.gmra.mxu0 %v957
      %v1601 = vpop.f32.mrf.mxu0
      %v1602 = vadd.f32 0.0, %v1601
      %1603 = vmatmul.f32.gmra.mxu0 %v959
      %v1604 = vpop.f32.mrf.mxu0
      %v1605 = vadd.f32 0.0, %v1604
      %1606 = vmatmul.f32.gmra.mxu0 %v962
      %v1607 = vpop.f32.mrf.mxu0
      %v1608 = vadd.f32 0.0, %v1607
      %1609 = vmatmul.f32.gmra.mxu0 %v964
      %v1610 = vpop.f32.mrf.mxu0
      %v1611 = vadd.f32 0.0, %v1610
      %1612 = vmatmul.f32.gmra.mxu0 %v967
      %v1613 = vpop.f32.mrf.mxu0
      %v1614 = vadd.f32 0.0, %v1613
      %1615 = vmatmul.f32.gmra.mxu0 %v969
      %v1616 = vpop.f32.mrf.mxu0
      %v1617 = vadd.f32 0.0, %v1616
      %1618 = vmatmul.f32.gmra.mxu0 %v972
      %v1619 = vpop.f32.mrf.mxu0
      %v1620 = vadd.f32 0.0, %v1619
      %1621 = vmatmul.f32.gmra.mxu0 %v974
      %v1622 = vpop.f32.mrf.mxu0
      %v1623 = vadd.f32 0.0, %v1622
      %1624 = vmatmul.f32.gmra.mxu0 %v977
      %v1625 = vpop.f32.mrf.mxu0
      %v1626 = vadd.f32 0.0, %v1625
      %1627 = vmatmul.f32.gmra.mxu0 %v979
      %v1628 = vpop.f32.mrf.mxu0
      %v1629 = vadd.f32 0.0, %v1628
      %1630 = vmatmul.f32.gmra.mxu0 %v982
      %v1631 = vpop.f32.mrf.mxu0
      %v1632 = vadd.f32 0.0, %v1631
      %1633 = vmatmul.f32.gmra.mxu0 %v984
      %v1634 = vpop.f32.mrf.mxu0
      %v1635 = vadd.f32 0.0, %v1634
      %1636 = vmatmul.f32.gmra.mxu0 %v987
      %v1637 = vpop.f32.mrf.mxu0
      %v1638 = vadd.f32 0.0, %v1637
      %1639 = vmatmul.f32.gmra.mxu0 %v989
      %v1640 = vpop.f32.mrf.mxu0
      %v1641 = vadd.f32 0.0, %v1640
      %1642 = vmatmul.f32.gmra.mxu0 %v992
      %v1643 = vpop.f32.mrf.mxu0
      %v1644 = vadd.f32 0.0, %v1643
      %1645 = vmatmul.f32.gmra.mxu0 %v994
      %v1646 = vpop.f32.mrf.mxu0
      %v1647 = vadd.f32 0.0, %v1646
      %1648 = vmatmul.f32.gmra.mxu0 %v997
      %v1649 = vpop.f32.mrf.mxu0
      %v1650 = vadd.f32 0.0, %v1649
      %1651 = vmatmul.f32.gmra.mxu0 %v999
      %v1652 = vpop.f32.mrf.mxu0
      %v1653 = vadd.f32 0.0, %v1652
      %1654 = vmatmul.f32.gmra.mxu0 %v1002
      %v1655 = vpop.f32.mrf.mxu0
      %v1656 = vadd.f32 0.0, %v1655
      %1657 = vmatmul.f32.gmra.mxu0 %v1004
      %v1658 = vpop.f32.mrf.mxu0
      %v1659 = vadd.f32 0.0, %v1658
      %1660 = vmatmul.f32.gmra.mxu0 %v1007
      %v1661 = vpop.f32.mrf.mxu0
      %v1662 = vadd.f32 0.0, %v1661
      %1663 = vmatmul.f32.gmra.mxu0 %v1009
      %v1664 = vpop.f32.mrf.mxu0
      %v1665 = vadd.f32 0.0, %v1664
      %1666 = vmatmul.f32.gmra.mxu0 %v1538
      %v1667 = vpop.f32.mrf.mxu0
      %v1668 = vadd.f32 0.0, %v1667
      %1669 = vmatmul.f32.gmra.mxu0 %v1540
      %v1670 = vpop.f32.mrf.mxu0
      %v1671 = vadd.f32 0.0, %v1670
      %1672 = vdwg.mxu0
      %v1673 = vadd.f32 %v1504, %v1578
      %v1674 = vadd.f32 %v1505, %v1581
      %v1675 = vadd.f32 %v1506, %v1584
      %v1676 = vadd.f32 %v1507, %v1587
      %v1677 = vadd.f32 %v1508, %v1590
      %v1678 = vadd.f32 %v1509, %v1593
      %v1679 = vadd.f32 %v1510, %v1596
      %v1680 = vadd.f32 %v1511, %v1599
      %v1681 = vadd.f32 %v1512, %v1602
      %v1682 = vadd.f32 %v1513, %v1605
      %v1683 = vadd.f32 %v1514, %v1608
      %v1684 = vadd.f32 %v1515, %v1611
      %v1685 = vadd.f32 %v1516, %v1614
      %v1686 = vadd.f32 %v1517, %v1617
      %v1687 = vadd.f32 %v1518, %v1620
      %v1688 = vadd.f32 %v1519, %v1623
      %v1689 = vadd.f32 %v1520, %v1626
      %v1690 = vadd.f32 %v1521, %v1629
      %v1691 = vadd.f32 %v1522, %v1632
      %v1692 = vadd.f32 %v1523, %v1635
      %v1693 = vadd.f32 %v1524, %v1638
      %v1694 = vadd.f32 %v1525, %v1641
      %v1695 = vadd.f32 %v1526, %v1644
      %v1696 = vadd.f32 %v1527, %v1647
      %v1697 = vadd.f32 %v1528, %v1650
      %v1698 = vadd.f32 %v1529, %v1653
      %v1699 = vadd.f32 %v1530, %v1656
      %v1700 = vadd.f32 %v1531, %v1659
      %v1701 = vadd.f32 %v1532, %v1662
      %v1702 = vadd.f32 %v1533, %v1665
      %v1703 = vadd.f32 %v1534, %v1668
      %v1704 = vadd.f32 %v1535, %v1671
      %s1705 = scalar_lea.vmem %s3, 768
      %v1706 = vld [vmem:[%s1705] sm:$0xff]
      %v1707 = vld [vmem:[%s1705 + $0x8] sm:$0xff]
      %v1708 = vld [vmem:[%s1705 + $0x10] sm:$0xff]
      %v1709 = vld [vmem:[%s1705 + $0x18] sm:$0xff]
      %v1710 = vld [vmem:[%s1705 + $0x20] sm:$0xff]
      %v1711 = vld [vmem:[%s1705 + $0x28] sm:$0xff]
      %v1712 = vld [vmem:[%s1705 + $0x30] sm:$0xff]
      %v1713 = vld [vmem:[%s1705 + $0x38] sm:$0xff]
      %v1714 = vld [vmem:[%s1705 + $0x40] sm:$0xff]
      %v1715 = vld [vmem:[%s1705 + $0x48] sm:$0xff]
      %v1716 = vld [vmem:[%s1705 + $0x50] sm:$0xff]
      %v1717 = vld [vmem:[%s1705 + $0x58] sm:$0xff]
      %v1718 = vld [vmem:[%s1705 + $0x60] sm:$0xff]
      %v1719 = vld [vmem:[%s1705 + $0x68] sm:$0xff]
      %v1720 = vld [vmem:[%s1705 + $0x70] sm:$0xff]
      %v1721 = vld [vmem:[%s1705 + $0x78] sm:$0xff]
      %1722 = vmatpush.msra.mxu0 %v1721
      %1723 = vmatpush.msra.mxu0 %v1720
      %1724 = vmatpush.msra.mxu0 %v1719
      %1725 = vmatpush.msra.mxu0 %v1718
      %1726 = vmatpush.msra.mxu0 %v1717
      %1727 = vmatpush.msra.mxu0 %v1716
      %1728 = vmatpush.msra.mxu0 %v1715
      %1729 = vmatpush.msra.mxu0 %v1714
      %1730 = vmatpush.msra.mxu0 %v1713
      %1731 = vmatpush.msra.mxu0 %v1712
      %1732 = vmatpush.msra.mxu0 %v1711
      %1733 = vmatpush.msra.mxu0 %v1710
      %1734 = vmatpush.msra.mxu0 %v1709
      %1735 = vmatpush.msra.mxu0 %v1708
      %1736 = vmatpush.msra.mxu0 %v1707
      %1737 = vmatpush.msra.mxu0 %v1706
      %1738 = vmatmul.f32.gmra.mxu0 %v502
      %v1739 = vpop.f32.mrf.mxu0
      %v1740 = vadd.f32 0.0, %v1739
      %1741 = vmatmul.f32.gmra.mxu0 %v410
      %v1742 = vpop.f32.mrf.mxu0
      %v1743 = vadd.f32 0.0, %v1742
      %1744 = vmatmul.f32.gmra.mxu0 %v503
      %v1745 = vpop.f32.mrf.mxu0
      %v1746 = vadd.f32 0.0, %v1745
      %1747 = vmatmul.f32.gmra.mxu0 %v413
      %v1748 = vpop.f32.mrf.mxu0
      %v1749 = vadd.f32 0.0, %v1748
      %1750 = vmatmul.f32.gmra.mxu0 %v504
      %v1751 = vpop.f32.mrf.mxu0
      %v1752 = vadd.f32 0.0, %v1751
      %1753 = vmatmul.f32.gmra.mxu0 %v416
      %v1754 = vpop.f32.mrf.mxu0
      %v1755 = vadd.f32 0.0, %v1754
      %1756 = vmatmul.f32.gmra.mxu0 %v505
      %v1757 = vpop.f32.mrf.mxu0
      %v1758 = vadd.f32 0.0, %v1757
      %1759 = vmatmul.f32.gmra.mxu0 %v419
      %v1760 = vpop.f32.mrf.mxu0
      %v1761 = vadd.f32 0.0, %v1760
      %1762 = vmatmul.f32.gmra.mxu0 %v506
      %v1763 = vpop.f32.mrf.mxu0
      %v1764 = vadd.f32 0.0, %v1763
      %1765 = vmatmul.f32.gmra.mxu0 %v422
      %v1766 = vpop.f32.mrf.mxu0
      %v1767 = vadd.f32 0.0, %v1766
      %1768 = vmatmul.f32.gmra.mxu0 %v507
      %v1769 = vpop.f32.mrf.mxu0
      %v1770 = vadd.f32 0.0, %v1769
      %1771 = vmatmul.f32.gmra.mxu0 %v425
      %v1772 = vpop.f32.mrf.mxu0
      %v1773 = vadd.f32 0.0, %v1772
      %1774 = vmatmul.f32.gmra.mxu0 %v508
      %v1775 = vpop.f32.mrf.mxu0
      %v1776 = vadd.f32 0.0, %v1775
      %1777 = vmatmul.f32.gmra.mxu0 %v428
      %v1778 = vpop.f32.mrf.mxu0
      %v1779 = vadd.f32 0.0, %v1778
      %1780 = vmatmul.f32.gmra.mxu0 %v509
      %v1781 = vpop.f32.mrf.mxu0
      %v1782 = vadd.f32 0.0, %v1781
      %1783 = vmatmul.f32.gmra.mxu0 %v431
      %v1784 = vpop.f32.mrf.mxu0
      %v1785 = vadd.f32 0.0, %v1784
      %1786 = vmatmul.f32.gmra.mxu0 %v510
      %v1787 = vpop.f32.mrf.mxu0
      %v1788 = vadd.f32 0.0, %v1787
      %1789 = vmatmul.f32.gmra.mxu0 %v434
      %v1790 = vpop.f32.mrf.mxu0
      %v1791 = vadd.f32 0.0, %v1790
      %1792 = vmatmul.f32.gmra.mxu0 %v511
      %v1793 = vpop.f32.mrf.mxu0
      %v1794 = vadd.f32 0.0, %v1793
      %1795 = vmatmul.f32.gmra.mxu0 %v437
      %v1796 = vpop.f32.mrf.mxu0
      %v1797 = vadd.f32 0.0, %v1796
      %1798 = vmatmul.f32.gmra.mxu0 %v512
      %v1799 = vpop.f32.mrf.mxu0
      %v1800 = vadd.f32 0.0, %v1799
      %1801 = vmatmul.f32.gmra.mxu0 %v440
      %v1802 = vpop.f32.mrf.mxu0
      %v1803 = vadd.f32 0.0, %v1802
      %1804 = vmatmul.f32.gmra.mxu0 %v513
      %v1805 = vpop.f32.mrf.mxu0
      %v1806 = vadd.f32 0.0, %v1805
      %1807 = vmatmul.f32.gmra.mxu0 %v443
      %v1808 = vpop.f32.mrf.mxu0
      %v1809 = vadd.f32 0.0, %v1808
      %1810 = vmatmul.f32.gmra.mxu0 %v514
      %v1811 = vpop.f32.mrf.mxu0
      %v1812 = vadd.f32 0.0, %v1811
      %1813 = vmatmul.f32.gmra.mxu0 %v446
      %v1814 = vpop.f32.mrf.mxu0
      %v1815 = vadd.f32 0.0, %v1814
      %1816 = vmatmul.f32.gmra.mxu0 %v515
      %v1817 = vpop.f32.mrf.mxu0
      %v1818 = vadd.f32 0.0, %v1817
      %1819 = vmatmul.f32.gmra.mxu0 %v449
      %v1820 = vpop.f32.mrf.mxu0
      %v1821 = vadd.f32 0.0, %v1820
      %1822 = vmatmul.f32.gmra.mxu0 %v516
      %v1823 = vpop.f32.mrf.mxu0
      %v1824 = vadd.f32 0.0, %v1823
      %1825 = vmatmul.f32.gmra.mxu0 %v452
      %v1826 = vpop.f32.mrf.mxu0
      %v1827 = vadd.f32 0.0, %v1826
      %1828 = vmatmul.f32.gmra.mxu0 0.0
      %v1829 = vpop.f32.mrf.mxu0
      %v1830 = vadd.f32 0.0, %v1829
      %1831 = vmatmul.f32.gmra.mxu0 0.0
      %v1832 = vpop.f32.mrf.mxu0
      %v1833 = vadd.f32 0.0, %v1832
      %1834 = vdwg.mxu0
      %v1835 = vadd.f32 %v1673, %v1740
      %v1836 = vadd.f32 %v1674, %v1743
      %v1837 = vadd.f32 %v1675, %v1746
      %v1838 = vadd.f32 %v1676, %v1749
      %v1839 = vadd.f32 %v1677, %v1752
      %v1840 = vadd.f32 %v1678, %v1755
      %v1841 = vadd.f32 %v1679, %v1758
      %v1842 = vadd.f32 %v1680, %v1761
      %v1843 = vadd.f32 %v1681, %v1764
      %v1844 = vadd.f32 %v1682, %v1767
      %v1845 = vadd.f32 %v1683, %v1770
      %v1846 = vadd.f32 %v1684, %v1773
      %v1847 = vadd.f32 %v1685, %v1776
      %v1848 = vadd.f32 %v1686, %v1779
      %v1849 = vadd.f32 %v1687, %v1782
      %v1850 = vadd.f32 %v1688, %v1785
      %v1851 = vadd.f32 %v1689, %v1788
      %v1852 = vadd.f32 %v1690, %v1791
      %v1853 = vadd.f32 %v1691, %v1794
      %v1854 = vadd.f32 %v1692, %v1797
      %v1855 = vadd.f32 %v1693, %v1800
      %v1856 = vadd.f32 %v1694, %v1803
      %v1857 = vadd.f32 %v1695, %v1806
      %v1858 = vadd.f32 %v1696, %v1809
      %v1859 = vadd.f32 %v1697, %v1812
      %v1860 = vadd.f32 %v1698, %v1815
      %v1861 = vadd.f32 %v1699, %v1818
      %v1862 = vadd.f32 %v1700, %v1821
      %v1863 = vadd.f32 %v1701, %v1824
      %v1864 = vadd.f32 %v1702, %v1827
      %v1865 = vadd.f32 %v1703, %v1830
      %v1866 = vadd.f32 %v1704, %v1833
      %s1867 = scalar_lea.vmem %s3, 896
      %v1868 = vld [vmem:[%s1867] sm:$0xff]
      %v1869 = vld [vmem:[%s1867 + $0x8] sm:$0xff]
      %v1870 = vld [vmem:[%s1867 + $0x10] sm:$0xff]
      %v1871 = vld [vmem:[%s1867 + $0x18] sm:$0xff]
      %v1872 = vld [vmem:[%s1867 + $0x20] sm:$0xff]
      %v1873 = vld [vmem:[%s1867 + $0x28] sm:$0xff]
      %v1874 = vld [vmem:[%s1867 + $0x30] sm:$0xff]
      %v1875 = vld [vmem:[%s1867 + $0x38] sm:$0xff]
      %v1876 = vld [vmem:[%s1867 + $0x40] sm:$0xff]
      %v1877 = vld [vmem:[%s1867 + $0x48] sm:$0xff]
      %v1878 = vld [vmem:[%s1867 + $0x50] sm:$0xff]
      %v1879 = vld [vmem:[%s1867 + $0x58] sm:$0xff]
      %v1880 = vld [vmem:[%s1867 + $0x60] sm:$0xff]
      %v1881 = vld [vmem:[%s1867 + $0x68] sm:$0xff]
      %v1882 = vld [vmem:[%s1867 + $0x70] sm:$0xff]
      %v1883 = vld [vmem:[%s1867 + $0x78] sm:$0xff]
      %1884 = vmatpush.msra.mxu0 %v1883
      %1885 = vmatpush.msra.mxu0 %v1882
      %1886 = vmatpush.msra.mxu0 %v1881
      %1887 = vmatpush.msra.mxu0 %v1880
      %1888 = vmatpush.msra.mxu0 %v1879
      %1889 = vmatpush.msra.mxu0 %v1878
      %1890 = vmatpush.msra.mxu0 %v1877
      %1891 = vmatpush.msra.mxu0 %v1876
      %1892 = vmatpush.msra.mxu0 %v1875
      %1893 = vmatpush.msra.mxu0 %v1874
      %1894 = vmatpush.msra.mxu0 %v1873
      %1895 = vmatpush.msra.mxu0 %v1872
      %1896 = vmatpush.msra.mxu0 %v1871
      %1897 = vmatpush.msra.mxu0 %v1870
      %1898 = vmatpush.msra.mxu0 %v1869
      %1899 = vmatpush.msra.mxu0 %v1868
      %1900 = vmatmul.f32.gmra.mxu0 %v590
      %v1901 = vpop.f32.mrf.mxu0
      %v1902 = vadd.f32 0.0, %v1901
      %1903 = vmatmul.f32.gmra.mxu0 %v592
      %v1904 = vpop.f32.mrf.mxu0
      %v1905 = vadd.f32 0.0, %v1904
      %1906 = vmatmul.f32.gmra.mxu0 %v595
      %v1907 = vpop.f32.mrf.mxu0
      %v1908 = vadd.f32 0.0, %v1907
      %1909 = vmatmul.f32.gmra.mxu0 %v597
      %v1910 = vpop.f32.mrf.mxu0
      %v1911 = vadd.f32 0.0, %v1910
      %1912 = vmatmul.f32.gmra.mxu0 %v600
      %v1913 = vpop.f32.mrf.mxu0
      %v1914 = vadd.f32 0.0, %v1913
      %1915 = vmatmul.f32.gmra.mxu0 %v602
      %v1916 = vpop.f32.mrf.mxu0
      %v1917 = vadd.f32 0.0, %v1916
      %1918 = vmatmul.f32.gmra.mxu0 %v605
      %v1919 = vpop.f32.mrf.mxu0
      %v1920 = vadd.f32 0.0, %v1919
      %1921 = vmatmul.f32.gmra.mxu0 %v607
      %v1922 = vpop.f32.mrf.mxu0
      %v1923 = vadd.f32 0.0, %v1922
      %1924 = vmatmul.f32.gmra.mxu0 %v610
      %v1925 = vpop.f32.mrf.mxu0
      %v1926 = vadd.f32 0.0, %v1925
      %1927 = vmatmul.f32.gmra.mxu0 %v612
      %v1928 = vpop.f32.mrf.mxu0
      %v1929 = vadd.f32 0.0, %v1928
      %1930 = vmatmul.f32.gmra.mxu0 %v615
      %v1931 = vpop.f32.mrf.mxu0
      %v1932 = vadd.f32 0.0, %v1931
      %1933 = vmatmul.f32.gmra.mxu0 %v617
      %v1934 = vpop.f32.mrf.mxu0
      %v1935 = vadd.f32 0.0, %v1934
      %1936 = vmatmul.f32.gmra.mxu0 %v620
      %v1937 = vpop.f32.mrf.mxu0
      %v1938 = vadd.f32 0.0, %v1937
      %1939 = vmatmul.f32.gmra.mxu0 %v622
      %v1940 = vpop.f32.mrf.mxu0
      %v1941 = vadd.f32 0.0, %v1940
      %1942 = vmatmul.f32.gmra.mxu0 %v625
      %v1943 = vpop.f32.mrf.mxu0
      %v1944 = vadd.f32 0.0, %v1943
      %1945 = vmatmul.f32.gmra.mxu0 %v627
      %v1946 = vpop.f32.mrf.mxu0
      %v1947 = vadd.f32 0.0, %v1946
      %1948 = vmatmul.f32.gmra.mxu0 %v630
      %v1949 = vpop.f32.mrf.mxu0
      %v1950 = vadd.f32 0.0, %v1949
      %1951 = vmatmul.f32.gmra.mxu0 %v632
      %v1952 = vpop.f32.mrf.mxu0
      %v1953 = vadd.f32 0.0, %v1952
      %1954 = vmatmul.f32.gmra.mxu0 %v635
      %v1955 = vpop.f32.mrf.mxu0
      %v1956 = vadd.f32 0.0, %v1955
      %1957 = vmatmul.f32.gmra.mxu0 %v637
      %v1958 = vpop.f32.mrf.mxu0
      %v1959 = vadd.f32 0.0, %v1958
      %1960 = vmatmul.f32.gmra.mxu0 %v640
      %v1961 = vpop.f32.mrf.mxu0
      %v1962 = vadd.f32 0.0, %v1961
      %1963 = vmatmul.f32.gmra.mxu0 %v642
      %v1964 = vpop.f32.mrf.mxu0
      %v1965 = vadd.f32 0.0, %v1964
      %1966 = vmatmul.f32.gmra.mxu0 %v645
      %v1967 = vpop.f32.mrf.mxu0
      %v1968 = vadd.f32 0.0, %v1967
      %1969 = vmatmul.f32.gmra.mxu0 %v647
      %v1970 = vpop.f32.mrf.mxu0
      %v1971 = vadd.f32 0.0, %v1970
      %1972 = vmatmul.f32.gmra.mxu0 %v650
      %v1973 = vpop.f32.mrf.mxu0
      %v1974 = vadd.f32 0.0, %v1973
      %1975 = vmatmul.f32.gmra.mxu0 %v652
      %v1976 = vpop.f32.mrf.mxu0
      %v1977 = vadd.f32 0.0, %v1976
      %1978 = vmatmul.f32.gmra.mxu0 %v655
      %v1979 = vpop.f32.mrf.mxu0
      %v1980 = vadd.f32 0.0, %v1979
      %1981 = vmatmul.f32.gmra.mxu0 %v657
      %v1982 = vpop.f32.mrf.mxu0
      %v1983 = vadd.f32 0.0, %v1982
      %1984 = vmatmul.f32.gmra.mxu0 %v1369
      %v1985 = vpop.f32.mrf.mxu0
      %v1986 = vadd.f32 0.0, %v1985
      %1987 = vmatmul.f32.gmra.mxu0 %v1371
      %v1988 = vpop.f32.mrf.mxu0
      %v1989 = vadd.f32 0.0, %v1988
      %1990 = vmatmul.f32.gmra.mxu0 %v582
      %v1991 = vpop.f32.mrf.mxu0
      %v1992 = vadd.f32 0.0, %v1991
      %1993 = vmatmul.f32.gmra.mxu0 %v582
      %v1994 = vpop.f32.mrf.mxu0
      %v1995 = vadd.f32 0.0, %v1994
      %1996 = vdwg.mxu0
      %v1997 = vadd.f32 %v1835, %v1902
      %v1998 = vadd.f32 %v1836, %v1905
      %v1999 = vadd.f32 %v1837, %v1908
      %v2000 = vadd.f32 %v1838, %v1911
      %v2001 = vadd.f32 %v1839, %v1914
      %v2002 = vadd.f32 %v1840, %v1917
      %v2003 = vadd.f32 %v1841, %v1920
      %v2004 = vadd.f32 %v1842, %v1923
      %v2005 = vadd.f32 %v1843, %v1926
      %v2006 = vadd.f32 %v1844, %v1929
      %v2007 = vadd.f32 %v1845, %v1932
      %v2008 = vadd.f32 %v1846, %v1935
      %v2009 = vadd.f32 %v1847, %v1938
      %v2010 = vadd.f32 %v1848, %v1941
      %v2011 = vadd.f32 %v1849, %v1944
      %v2012 = vadd.f32 %v1850, %v1947
      %v2013 = vadd.f32 %v1851, %v1950
      %v2014 = vadd.f32 %v1852, %v1953
      %v2015 = vadd.f32 %v1853, %v1956
      %v2016 = vadd.f32 %v1854, %v1959
      %v2017 = vadd.f32 %v1855, %v1962
      %v2018 = vadd.f32 %v1856, %v1965
      %v2019 = vadd.f32 %v1857, %v1968
      %v2020 = vadd.f32 %v1858, %v1971
      %v2021 = vadd.f32 %v1859, %v1974
      %v2022 = vadd.f32 %v1860, %v1977
      %v2023 = vadd.f32 %v1861, %v1980
      %v2024 = vadd.f32 %v1862, %v1983
      %v2025 = vadd.f32 %v1863, %v1986
      %v2026 = vadd.f32 %v1864, %v1989
      %v2027 = vadd.f32 %v1865, %v1992
      %v2028 = vadd.f32 %v1866, %v1995
      %s2029 = scalar_lea.vmem %s3, 1024
      %v2030 = vld [vmem:[%s2029] sm:$0xff]
      %v2031 = vld [vmem:[%s2029 + $0x8] sm:$0xff]
      %v2032 = vld [vmem:[%s2029 + $0x10] sm:$0xff]
      %v2033 = vld [vmem:[%s2029 + $0x18] sm:$0xff]
      %v2034 = vld [vmem:[%s2029 + $0x20] sm:$0xff]
      %v2035 = vld [vmem:[%s2029 + $0x28] sm:$0xff]
      %v2036 = vld [vmem:[%s2029 + $0x30] sm:$0xff]
      %v2037 = vld [vmem:[%s2029 + $0x38] sm:$0xff]
      %v2038 = vld [vmem:[%s2029 + $0x40] sm:$0xff]
      %v2039 = vld [vmem:[%s2029 + $0x48] sm:$0xff]
      %v2040 = vld [vmem:[%s2029 + $0x50] sm:$0xff]
      %v2041 = vld [vmem:[%s2029 + $0x58] sm:$0xff]
      %v2042 = vld [vmem:[%s2029 + $0x60] sm:$0xff]
      %v2043 = vld [vmem:[%s2029 + $0x68] sm:$0xff]
      %v2044 = vld [vmem:[%s2029 + $0x70] sm:$0xff]
      %v2045 = vld [vmem:[%s2029 + $0x78] sm:$0xff]
      %2046 = vmatpush.msra.mxu0 %v2045
      %2047 = vmatpush.msra.mxu0 %v2044
      %2048 = vmatpush.msra.mxu0 %v2043
      %2049 = vmatpush.msra.mxu0 %v2042
      %2050 = vmatpush.msra.mxu0 %v2041
      %2051 = vmatpush.msra.mxu0 %v2040
      %2052 = vmatpush.msra.mxu0 %v2039
      %2053 = vmatpush.msra.mxu0 %v2038
      %2054 = vmatpush.msra.mxu0 %v2037
      %2055 = vmatpush.msra.mxu0 %v2036
      %2056 = vmatpush.msra.mxu0 %v2035
      %2057 = vmatpush.msra.mxu0 %v2034
      %2058 = vmatpush.msra.mxu0 %v2033
      %2059 = vmatpush.msra.mxu0 %v2032
      %2060 = vmatpush.msra.mxu0 %v2031
      %2061 = vmatpush.msra.mxu0 %v2030
      %2062 = vmatmul.f32.gmra.mxu0 %v942
      %v2063 = vpop.f32.mrf.mxu0
      %v2064 = vadd.f32 0.0, %v2063
      %2065 = vmatmul.f32.gmra.mxu0 %v944
      %v2066 = vpop.f32.mrf.mxu0
      %v2067 = vadd.f32 0.0, %v2066
      %2068 = vmatmul.f32.gmra.mxu0 %v947
      %v2069 = vpop.f32.mrf.mxu0
      %v2070 = vadd.f32 0.0, %v2069
      %2071 = vmatmul.f32.gmra.mxu0 %v949
      %v2072 = vpop.f32.mrf.mxu0
      %v2073 = vadd.f32 0.0, %v2072
      %2074 = vmatmul.f32.gmra.mxu0 %v952
      %v2075 = vpop.f32.mrf.mxu0
      %v2076 = vadd.f32 0.0, %v2075
      %2077 = vmatmul.f32.gmra.mxu0 %v954
      %v2078 = vpop.f32.mrf.mxu0
      %v2079 = vadd.f32 0.0, %v2078
      %2080 = vmatmul.f32.gmra.mxu0 %v957
      %v2081 = vpop.f32.mrf.mxu0
      %v2082 = vadd.f32 0.0, %v2081
      %2083 = vmatmul.f32.gmra.mxu0 %v959
      %v2084 = vpop.f32.mrf.mxu0
      %v2085 = vadd.f32 0.0, %v2084
      %2086 = vmatmul.f32.gmra.mxu0 %v962
      %v2087 = vpop.f32.mrf.mxu0
      %v2088 = vadd.f32 0.0, %v2087
      %2089 = vmatmul.f32.gmra.mxu0 %v964
      %v2090 = vpop.f32.mrf.mxu0
      %v2091 = vadd.f32 0.0, %v2090
      %2092 = vmatmul.f32.gmra.mxu0 %v967
      %v2093 = vpop.f32.mrf.mxu0
      %v2094 = vadd.f32 0.0, %v2093
      %2095 = vmatmul.f32.gmra.mxu0 %v969
      %v2096 = vpop.f32.mrf.mxu0
      %v2097 = vadd.f32 0.0, %v2096
      %2098 = vmatmul.f32.gmra.mxu0 %v972
      %v2099 = vpop.f32.mrf.mxu0
      %v2100 = vadd.f32 0.0, %v2099
      %2101 = vmatmul.f32.gmra.mxu0 %v974
      %v2102 = vpop.f32.mrf.mxu0
      %v2103 = vadd.f32 0.0, %v2102
      %2104 = vmatmul.f32.gmra.mxu0 %v977
      %v2105 = vpop.f32.mrf.mxu0
      %v2106 = vadd.f32 0.0, %v2105
      %2107 = vmatmul.f32.gmra.mxu0 %v979
      %v2108 = vpop.f32.mrf.mxu0
      %v2109 = vadd.f32 0.0, %v2108
      %2110 = vmatmul.f32.gmra.mxu0 %v982
      %v2111 = vpop.f32.mrf.mxu0
      %v2112 = vadd.f32 0.0, %v2111
      %2113 = vmatmul.f32.gmra.mxu0 %v984
      %v2114 = vpop.f32.mrf.mxu0
      %v2115 = vadd.f32 0.0, %v2114
      %2116 = vmatmul.f32.gmra.mxu0 %v987
      %v2117 = vpop.f32.mrf.mxu0
      %v2118 = vadd.f32 0.0, %v2117
      %2119 = vmatmul.f32.gmra.mxu0 %v989
      %v2120 = vpop.f32.mrf.mxu0
      %v2121 = vadd.f32 0.0, %v2120
      %2122 = vmatmul.f32.gmra.mxu0 %v992
      %v2123 = vpop.f32.mrf.mxu0
      %v2124 = vadd.f32 0.0, %v2123
      %2125 = vmatmul.f32.gmra.mxu0 %v994
      %v2126 = vpop.f32.mrf.mxu0
      %v2127 = vadd.f32 0.0, %v2126
      %2128 = vmatmul.f32.gmra.mxu0 %v997
      %v2129 = vpop.f32.mrf.mxu0
      %v2130 = vadd.f32 0.0, %v2129
      %2131 = vmatmul.f32.gmra.mxu0 %v999
      %v2132 = vpop.f32.mrf.mxu0
      %v2133 = vadd.f32 0.0, %v2132
      %2134 = vmatmul.f32.gmra.mxu0 %v1002
      %v2135 = vpop.f32.mrf.mxu0
      %v2136 = vadd.f32 0.0, %v2135
      %2137 = vmatmul.f32.gmra.mxu0 %v1004
      %v2138 = vpop.f32.mrf.mxu0
      %v2139 = vadd.f32 0.0, %v2138
      %2140 = vmatmul.f32.gmra.mxu0 %v1007
      %v2141 = vpop.f32.mrf.mxu0
      %v2142 = vadd.f32 0.0, %v2141
      %2143 = vmatmul.f32.gmra.mxu0 %v1009
      %v2144 = vpop.f32.mrf.mxu0
      %v2145 = vadd.f32 0.0, %v2144
      %2146 = vmatmul.f32.gmra.mxu0 %v1538
      %v2147 = vpop.f32.mrf.mxu0
      %v2148 = vadd.f32 0.0, %v2147
      %2149 = vmatmul.f32.gmra.mxu0 %v1540
      %v2150 = vpop.f32.mrf.mxu0
      %v2151 = vadd.f32 0.0, %v2150
      %2152 = vmatmul.f32.gmra.mxu0 %v934
      %v2153 = vpop.f32.mrf.mxu0
      %v2154 = vadd.f32 0.0, %v2153
      %2155 = vmatmul.f32.gmra.mxu0 %v934
      %v2156 = vpop.f32.mrf.mxu0
      %v2157 = vadd.f32 0.0, %v2156
      %2158 = vdwg.mxu0
      %v2159 = vadd.f32 %v1997, %v2064
      %v2160 = vadd.f32 %v1998, %v2067
      %v2161 = vadd.f32 %v1999, %v2070
      %v2162 = vadd.f32 %v2000, %v2073
      %v2163 = vadd.f32 %v2001, %v2076
      %v2164 = vadd.f32 %v2002, %v2079
      %v2165 = vadd.f32 %v2003, %v2082
      %v2166 = vadd.f32 %v2004, %v2085
      %v2167 = vadd.f32 %v2005, %v2088
      %v2168 = vadd.f32 %v2006, %v2091
      %v2169 = vadd.f32 %v2007, %v2094
      %v2170 = vadd.f32 %v2008, %v2097
      %v2171 = vadd.f32 %v2009, %v2100
      %v2172 = vadd.f32 %v2010, %v2103
      %v2173 = vadd.f32 %v2011, %v2106
      %v2174 = vadd.f32 %v2012, %v2109
      %v2175 = vadd.f32 %v2013, %v2112
      %v2176 = vadd.f32 %v2014, %v2115
      %v2177 = vadd.f32 %v2015, %v2118
      %v2178 = vadd.f32 %v2016, %v2121
      %v2179 = vadd.f32 %v2017, %v2124
      %v2180 = vadd.f32 %v2018, %v2127
      %v2181 = vadd.f32 %v2019, %v2130
      %v2182 = vadd.f32 %v2020, %v2133
      %v2183 = vadd.f32 %v2021, %v2136
      %v2184 = vadd.f32 %v2022, %v2139
      %v2185 = vadd.f32 %v2023, %v2142
      %v2186 = vadd.f32 %v2024, %v2145
      %v2187 = vadd.f32 %v2025, %v2148
      %v2188 = vadd.f32 %v2026, %v2151
      %v2189 = vadd.f32 %v2027, %v2154
      %v2190 = vadd.f32 %v2028, %v2157
      %2191 = vst [vmem:[%s231] sm:$0xff] %v2159
      %2192 = vst [vmem:[%s231 + $0x8] sm:$0xff] %v2160
      %2193 = vst [vmem:[%s231 + $0x10] sm:$0xff] %v2161
      %2194 = vst [vmem:[%s231 + $0x18] sm:$0xff] %v2162
      %2195 = vst [vmem:[%s231 + $0x20] sm:$0xff] %v2163
      %2196 = vst [vmem:[%s231 + $0x28] sm:$0xff] %v2164
      %2197 = vst [vmem:[%s231 + $0x30] sm:$0xff] %v2165
      %2198 = vst [vmem:[%s231 + $0x38] sm:$0xff] %v2166
      %2199 = vst [vmem:[%s231 + $0x40] sm:$0xff] %v2167
      %2200 = vst [vmem:[%s231 + $0x48] sm:$0xff] %v2168
      %2201 = vst [vmem:[%s231 + $0x50] sm:$0xff] %v2169
      %2202 = vst [vmem:[%s231 + $0x58] sm:$0xff] %v2170
      %2203 = vst [vmem:[%s231 + $0x60] sm:$0xff] %v2171
      %2204 = vst [vmem:[%s231 + $0x68] sm:$0xff] %v2172
      %2205 = vst [vmem:[%s231 + $0x70] sm:$0xff] %v2173
      %2206 = vst [vmem:[%s231 + $0x78] sm:$0xff] %v2174
      %2207 = vst [vmem:[%s231 + $0x80] sm:$0xff] %v2175
      %2208 = vst [vmem:[%s231 + $0x88] sm:$0xff] %v2176
      %2209 = vst [vmem:[%s231 + $0x90] sm:$0xff] %v2177
      %2210 = vst [vmem:[%s231 + $0x98] sm:$0xff] %v2178
      %2211 = vst [vmem:[%s231 + $0xa0] sm:$0xff] %v2179
      %2212 = vst [vmem:[%s231 + $0xa8] sm:$0xff] %v2180
      %2213 = vst [vmem:[%s231 + $0xb0] sm:$0xff] %v2181
      %2214 = vst [vmem:[%s231 + $0xb8] sm:$0xff] %v2182
      %2215 = vst [vmem:[%s231 + $0xc0] sm:$0xff] %v2183
      %2216 = vst [vmem:[%s231 + $0xc8] sm:$0xff] %v2184
      %2217 = vst [vmem:[%s231 + $0xd0] sm:$0xff] %v2185
      %2218 = vst [vmem:[%s231 + $0xd8] sm:$0xff] %v2186
      %2219 = vst [vmem:[%s231 + $0xe0] sm:$0xff] %v2187
      %2220 = vst [vmem:[%s231 + $0xe8] sm:$0xff] %v2188
      %2221 = vst [vmem:[%s231 + $0xf0] sm:$0xff] %v2189
      %2222 = vst [vmem:[%s231 + $0xf8] sm:$0xff] %v2190
      %v2223 = vadd.f32 %v2159, %v2160
      %v2224 = vadd.f32 %v2223, %v2161
      %v2225 = vadd.f32 %v2224, %v2162
      %v2226 = vadd.f32 %v2225, %v2163
      %v2227 = vadd.f32 %v2226, %v2164
      %v2228 = vadd.f32 %v2227, %v2165
      %v2229 = vadd.f32 %v2228, %v2166
      %v2230 = vadd.f32 %v2229, %v2167
      %v2231 = vadd.f32 %v2230, %v2168
      %v2232 = vadd.f32 %v2231, %v2169
      %v2233 = vadd.f32 %v2232, %v2170
      %v2234 = vadd.f32 %v2233, %v2171
      %v2235 = vadd.f32 %v2234, %v2172
      %v2236 = vadd.f32 %v2235, %v2173
      %v2237 = vadd.f32 %v2236, %v2174
      %v2238 = vadd.f32 %v2237, %v2175
      %v2239 = vadd.f32 %v2238, %v2176
      %v2240 = vadd.f32 %v2239, %v2177
      %v2241 = vadd.f32 %v2240, %v2178
      %v2242 = vadd.f32 %v2241, %v2179
      %v2243 = vadd.f32 %v2242, %v2180
      %v2244 = vadd.f32 %v2243, %v2181
      %v2245 = vadd.f32 %v2244, %v2182
      %v2246 = vadd.f32 %v2245, %v2183
      %v2247 = vadd.f32 %v2246, %v2184
      %v2248 = vadd.f32 %v2247, %v2185
      %v2249 = vadd.f32 %v2248, %v2186
      %v2250 = vadd.f32 %v2249, %v2187
      %v2251 = vadd.f32 %v2250, %v2188
      %v2252 = vadd.f32 %v2251, %v2189
      %v2253 = vadd.f32 %v2252, %v2190
      %v2254 = vrot.slane %v2253, 4
      %v2255 = vadd.f32 %v2253, %v2254
      %v2256 = vrot.slane %v2255, 2
      %v2257 = vadd.f32 %v2255, %v2256
      %v2258 = vrot.slane %v2257, 1
      %v2259 = vadd.f32 %v2257, %v2258
      %v2260 = vmul.f32 %v2159, %v2159
      %v2261 = vmul.f32 %v2160, %v2160
      %v2262 = vmul.f32 %v2161, %v2161
      %v2263 = vmul.f32 %v2162, %v2162
      %v2264 = vmul.f32 %v2163, %v2163
      %v2265 = vmul.f32 %v2164, %v2164
      %v2266 = vmul.f32 %v2165, %v2165
      %v2267 = vmul.f32 %v2166, %v2166
      %v2268 = vmul.f32 %v2167, %v2167
      %v2269 = vmul.f32 %v2168, %v2168
      %v2270 = vmul.f32 %v2169, %v2169
      %v2271 = vmul.f32 %v2170, %v2170
      %v2272 = vmul.f32 %v2171, %v2171
      %v2273 = vmul.f32 %v2172, %v2172
      %v2274 = vmul.f32 %v2173, %v2173
      %v2275 = vmul.f32 %v2174, %v2174
      %v2276 = vmul.f32 %v2175, %v2175
      %v2277 = vmul.f32 %v2176, %v2176
      %v2278 = vmul.f32 %v2177, %v2177
      %v2279 = vmul.f32 %v2178, %v2178
      %v2280 = vmul.f32 %v2179, %v2179
      %v2281 = vmul.f32 %v2180, %v2180
      %v2282 = vmul.f32 %v2181, %v2181
      %v2283 = vmul.f32 %v2182, %v2182
      %v2284 = vmul.f32 %v2183, %v2183
      %v2285 = vmul.f32 %v2184, %v2184
      %v2286 = vmul.f32 %v2185, %v2185
      %v2287 = vmul.f32 %v2186, %v2186
      %v2288 = vmul.f32 %v2187, %v2187
      %v2289 = vmul.f32 %v2188, %v2188
      %v2290 = vmul.f32 %v2189, %v2189
      %v2291 = vmul.f32 %v2190, %v2190
      %v2292 = vadd.f32 %v2260, %v2261
      %v2293 = vadd.f32 %v2292, %v2262
      %v2294 = vadd.f32 %v2293, %v2263
      %v2295 = vadd.f32 %v2294, %v2264
      %v2296 = vadd.f32 %v2295, %v2265
      %v2297 = vadd.f32 %v2296, %v2266
      %v2298 = vadd.f32 %v2297, %v2267
      %v2299 = vadd.f32 %v2298, %v2268
      %v2300 = vadd.f32 %v2299, %v2269
      %v2301 = vadd.f32 %v2300, %v2270
      %v2302 = vadd.f32 %v2301, %v2271
      %v2303 = vadd.f32 %v2302, %v2272
      %v2304 = vadd.f32 %v2303, %v2273
      %v2305 = vadd.f32 %v2304, %v2274
      %v2306 = vadd.f32 %v2305, %v2275
      %v2307 = vadd.f32 %v2306, %v2276
      %v2308 = vadd.f32 %v2307, %v2277
      %v2309 = vadd.f32 %v2308, %v2278
      %v2310 = vadd.f32 %v2309, %v2279
      %v2311 = vadd.f32 %v2310, %v2280
      %v2312 = vadd.f32 %v2311, %v2281
      %v2313 = vadd.f32 %v2312, %v2282
      %v2314 = vadd.f32 %v2313, %v2283
      %v2315 = vadd.f32 %v2314, %v2284
      %v2316 = vadd.f32 %v2315, %v2285
      %v2317 = vadd.f32 %v2316, %v2286
      %v2318 = vadd.f32 %v2317, %v2287
      %v2319 = vadd.f32 %v2318, %v2288
      %v2320 = vadd.f32 %v2319, %v2289
      %v2321 = vadd.f32 %v2320, %v2290
      %v2322 = vadd.f32 %v2321, %v2291
      %v2323 = vrot.slane %v2322, 4
      %v2324 = vadd.f32 %v2322, %v2323
      %v2325 = vrot.slane %v2324, 2
      %v2326 = vadd.f32 %v2324, %v2325
      %v2327 = vrot.slane %v2326, 1
      %v2328 = vadd.f32 %v2326, %v2327
      %v2329 = vsel %vm404, %v2259, %v2328
      %2330 = vst [vmem:[%s235] sm:$0x3] %v2329
      %p2331 = scmp.lt.s32.totalorder %s17, 1
      %s2332 = scalar_select %p2331, %s17, 1
      %s2333 = smul.addr %s2332, 32
      %s2334 = smul.addr %s2333, 8
      %s2335 = scalar_lea.vmem %s4, %s2334
      %p2336 = scmp.lt.s32.totalorder %s17, 1
      %s2337 = scalar_select %p2336, %s17, 1
      %s2338 = smul.addr %s2337, 2
      %s2339 = scalar_lea.vmem %s5, %s2338
      // Predicated region
      $region37: #{residual_block_nhwc.4} parent=35 // pred_check
        %p2340 = pneg %p124
      $region38: #{residual_block_nhwc.4} parent=35 // pred_check_branch
        %2342 = sbr.rel (%p2340) target = $region40
      $region39: #{residual_block_nhwc.4} parent=35 // pred_region
        _
      $region40: #{residual_block_nhwc.4} parent=35 // pred_fallthru
        _
      // Predicated region
      $region41: #{residual_block_nhwc.4} parent=35 // pred_check
        %p2343 = pneg %p150
      $region42: #{residual_block_nhwc.4} parent=35 // pred_check_branch
        %2345 = sbr.rel (%p2343) target = $region44
      $region43: #{residual_block_nhwc.4} parent=35 // pred_region
        _
      $region44: #{residual_block_nhwc.4} parent=35 // pred_fallthru
        _
    $region36: #{residual_block_nhwc.4} parent=5 // pred_fallthru
      _
    %p2346 = scmp.le.s32.totalorder 2, %s12
    // Predicated region
    $region45: #{residual_block_nhwc.4} parent=5 // pred_check
      %p2347 = pneg %p2346
    $region46: #{residual_block_nhwc.4} parent=5 // pred_check_branch
      %2349 = sbr.rel (%p2347) target = $region48
    $region47: #{residual_block_nhwc.4} parent=5 // pred_region
      %s2350 = ssub.s32 %s12, 2
      // Predicated region
      $region49: #{residual_block_nhwc.4} parent=47 // pred_check
        %p2351 = pneg %p130
      $region50: #{residual_block_nhwc.4} parent=47 // pred_check_branch
        %2353 = sbr.rel (%p2351) target = $region52
      $region51: #{residual_block_nhwc.4} parent=47 // pred_region
        %p2354 = scmp.lt.s32.totalorder %s18, 1
        %s2355 = scalar_select %p2354, %s18, 1
        %s2356 = smul.addr %s2355, 32
        %s2357 = smul.addr %s2356, 8
        %s2358 = scalar_lea.vmem %s4, %s2357
      $region52: #{residual_block_nhwc.4} parent=47 // pred_fallthru
        _
      // Predicated region
      $region53: #{residual_block_nhwc.4} parent=47 // pred_check
        %p2359 = pneg %p156
      $region54: #{residual_block_nhwc.4} parent=47 // pred_check_branch
        %2361 = sbr.rel (%p2359) target = $region56
      $region55: #{residual_block_nhwc.4} parent=47 // pred_region
        %p2362 = scmp.lt.s32.totalorder %s18, 1
        %s2363 = scalar_select %p2362, %s18, 1
        %s2364 = smul.addr %s2363, 2
        %s2365 = scalar_lea.vmem %s5, %s2364
      $region56: #{residual_block_nhwc.4} parent=47 // pred_fallthru
        _
    $region48: #{residual_block_nhwc.4} parent=5 // pred_fallthru
      _
  $region6: #{residual_block_nhwc.4} parent=0 // loop_footer
    %s16 = sadd.s32 1, %s12
  $region7: #{residual_block_nhwc.4} parent=0 // loop_footer_branch
    %11 = sbr.rel target = $region3
  $region8: #{residual_block_nhwc.4} parent=0 // loop_exit
    _

</llo_original>
